<compile_context>
chip_gen: v6e
topology: v6e:2x2x1
jax: 0.10.0
libtpu: 0.0.40
codegen_flags: <defaults>
</compile_context>

<pallas_src>
import functools

import jax
import jax.numpy as jnp
from jax.experimental import pallas as pl
from jax.experimental.pallas import tpu as pltpu


# ----------------------------------------------------------------------------
# Fused kernel: prefix MLP + TransformerEncoderLayer + mean-pool + classifier
# ----------------------------------------------------------------------------
def _layernorm(x, g, b, eps=1e-5):
    mu = jnp.mean(x, axis=-1, keepdims=True)
    var = jnp.mean((x - mu) ** 2, axis=-1, keepdims=True)
    return (x - mu) * jax.lax.rsqrt(var + eps) * g + b


def fused_forward_kernel(
    # activations
    x_ref, mask_ref,
    # prefix MLP params (get_prompt)
    wte_ref, pw1_ref, pb1_ref, pw2_ref, pb2_ref,
    # encoder layer params
    wqkv_ref, bqkv_ref, wo_ref, bo_ref,
    g1_ref, be1_ref, wf1_ref, bf1_ref, wf2_ref, bf2_ref, g2_ref, be2_ref,
    # classifier params
    wd_ref, bd_ref, wc_ref, bc_ref,
    # outputs
    pkv_ref, logits_ref, feat_ref,
    *, batch, seq, n_head, head_dim,
):
    E = n_head * head_dim
    BS = batch * seq

    # ---- prefix prompt MLP: wte -> Linear -> tanh -> Linear (eval dropout) ----
    ph = jnp.tanh(
        jnp.dot(wte_ref[...], pw1_ref[...], preferred_element_type=jnp.float32)
        + pb1_ref[...]
    )
    pkv_ref[...] = (
        jnp.dot(ph, pw2_ref[...], preferred_element_type=jnp.float32) + pb2_ref[...]
    )

    # ---- x_attention_mask multiply (mask is already expanded over E) ----
    x = (x_ref[...] * mask_ref[...]).reshape(BS, E)                    # (B*S, E)

    # ---- multi-head self-attention (heads batched, all in vregs) ----
    qkv = jnp.dot(x, wqkv_ref[...], preferred_element_type=jnp.float32) + bqkv_ref[...]
    q, k, v = qkv[:, :E], qkv[:, E:2 * E], qkv[:, 2 * E:]

    def split_heads(t):  # (B*S, E) -> (H*B, S, Dh); index = h*B + b
        parts = [
            t[:, h * head_dim:(h + 1) * head_dim].reshape(batch, seq, head_dim)
            for h in range(n_head)
        ]
        return jnp.concatenate(parts, axis=0)

    qh, kh, vh = split_heads(q), split_heads(k), split_heads(v)
    scale = 1.0 / (head_dim ** 0.5)
    scores = jnp.einsum("bqd,bkd->bqk", qh, kh,
                        preferred_element_type=jnp.float32) * scale     # (H*B, S, S)
    scores = scores - jnp.max(scores, axis=-1, keepdims=True)
    p = jnp.exp(scores)
    p = p * pl.reciprocal(jnp.sum(p, axis=-1, keepdims=True), approx=True)
    ctx = jnp.einsum("bqk,bkd->bqd", p, vh,
                     preferred_element_type=jnp.float32)                # (H*B, S, Dh)

    attn = jnp.concatenate(
        [ctx[h * batch:(h + 1) * batch].reshape(BS, head_dim) for h in range(n_head)],
        axis=1,
    )                                                                   # (B*S, E)
    attn = jnp.dot(attn, wo_ref[...], preferred_element_type=jnp.float32) + bo_ref[...]

    # ---- post-norm residual 1 ----
    x1 = _layernorm(x + attn, g1_ref[...], be1_ref[...])

    # ---- feed-forward (ReLU) + post-norm residual 2 ----
    ff = jnp.maximum(
        jnp.dot(x1, wf1_ref[...], preferred_element_type=jnp.float32) + bf1_ref[...],
        0.0,
    )
    ff = jnp.dot(ff, wf2_ref[...], preferred_element_type=jnp.float32) + bf2_ref[...]
    y = _layernorm(x1 + ff, g2_ref[...], be2_ref[...])                  # (B*S, E)

    # ---- mean-pool over seq + classifier (Linear -> ReLU -> Linear, eval) ----
    pooled = jnp.mean(y.reshape(batch, seq, E), axis=1)                 # (B, E)
    h = jnp.dot(pooled, wd_ref[...], preferred_element_type=jnp.float32) + bd_ref[...]
    feat = jnp.maximum(h, 0.0)
    feat_ref[...] = feat
    logits_ref[...] = (
        jnp.dot(feat, wc_ref[...], preferred_element_type=jnp.float32) + bc_ref[...]
    )


def fused_forward(params, hidden_states, x_attention_mask, cfg):
    B, S, E = hidden_states.shape
    pfx, enc, cls = params["prefix"], params["enc"], params["cls"]
    P = pfx["wte"].shape[0]
    L2E = pfx["w2"].shape[1]
    C = cls["wo"].shape[1]

    # lane-dense mask, same expand the PyTorch module performs
    mask = jnp.broadcast_to(
        x_attention_mask.astype(jnp.float32)[:, :, None], (B, S, E)
    )

    kern = functools.partial(
        fused_forward_kernel,
        batch=B, seq=S, n_head=cfg["n_head"], head_dim=E // cfg["n_head"],
    )

    inputs = (
        hidden_states, mask,
        pfx["wte"], pfx["w1"], pfx["b1"], pfx["w2"], pfx["b2"],
        enc["wqkv"], enc["bqkv"], enc["wo"], enc["bo"],
        enc["g1"], enc["be1"], enc["w1"], enc["bf1"], enc["w2"], enc["bf2"],
        enc["g2"], enc["be2"],
        cls["wd"], cls["bd"], cls["wo"], cls["bo"],
    )
    vspec = lambda: pl.BlockSpec(memory_space=pltpu.MemorySpace.VMEM)

    pkv, logits, feat = pl.pallas_call(
        kern,
        out_shape=(
            jax.ShapeDtypeStruct((P, L2E), jnp.float32),   # prefix past_key_values
            jax.ShapeDtypeStruct((B, C), jnp.float32),     # cls logits
            jax.ShapeDtypeStruct((B, E), jnp.float32),     # classifier features
        ),
        in_specs=[vspec() for _ in inputs],
        out_specs=(vspec(), vspec(), vspec()),
    )(*inputs)
    return pkv, logits, feat


# ----------------------------------------------------------------------------
# Glue: past_prompt assembly, cross-entropy, full Model.forward
# ----------------------------------------------------------------------------
def build_past_prompt(pkv, bsz, cfg):
    """Reshape/split of the prefix MLP output, mirroring Model.get_prompt."""
    P, L2E = pkv.shape
    n_layer, n_head = cfg["n_layer"], cfg["n_head"]
    head_dim = cfg["n_embd"] // n_head
    past = jnp.broadcast_to(pkv[None], (bsz, P, L2E))
    past = past.reshape(bsz, P, n_layer * 2, n_head, head_dim)
    past = jnp.transpose(past, (2, 0, 3, 1, 4))            # (L*2, B, H, P, Dh)
    chunks = jnp.split(past, n_layer, axis=0)
    result = []
    for kv in chunks:
        result.append(
            {
                "prev_key": kv[0],
                "prev_value": kv[1],
                "prev_key_padding_mask": jnp.zeros((bsz, P), dtype=jnp.bool_),
            }
        )
    return result


def cross_entropy(logits, labels):
    logz = jax.nn.logsumexp(logits, axis=-1)
    ll = jnp.take_along_axis(logits, labels[:, None], axis=-1)[:, 0]
    return jnp.mean(logz - ll)


def model_forward(params, input_ids, attention_mask, labels,
                  x_attention_mask, label_ids, stub_hidden_states, cfg):
    bsz = input_ids.shape[0]

    # TODO(synk): frozen pretrained GPT2LMHeadModel has no Pallas equivalent;
    # its last hidden state is the deterministic stub input and gen_loss := 0.
    hidden_states = stub_hidden_states
    gen_loss = jnp.float32(0.0)

    pkv, cls_logits, features = fused_forward(
        params, hidden_states, x_attention_mask, cfg
    )

    past_prompt = build_past_prompt(pkv, bsz, cfg)          # consumed by stubbed base model

    cls_loss = cross_entropy(cls_logits, label_ids.reshape(-1))
    total_loss = gen_loss * cfg["lambda_loss"] + cls_loss

    return {
        "loss": total_loss,
        "feature": features,
        "logits": cls_logits,
        "gen_loss": gen_loss,
        "cls_loss": cls_loss,
        # extra: returned so the prefix-MLP output is materialized/checked.
        "past_prompt": past_prompt,
    }


# ----------------------------------------------------------------------------
# Deterministic parameter init (shapes follow the module __init__)
# ----------------------------------------------------------------------------
def init_params(key, cfg):
    E = cfg["n_embd"]
    H = cfg["prefix_hidden_size"]
    P = cfg["pre_seq_len"]
    L2E = cfg["n_layer"] * 2 * E
    FF = cfg["dim_feedforward"]
    C = cfg["num_labels"]
    ks = jax.random.split(key, 12)
    s = 0.02

    def w(k, shape):
        return (jax.random.normal(k, shape, jnp.float32) * s).astype(jnp.float32)

    prefix = {
        "wte": w(ks[0], (P, E)),
        "w1": w(ks[1], (E, H)), "b1": jnp.zeros((1, H), jnp.float32),
        "w2": w(ks[2], (H, L2E)), "b2": jnp.zeros((1, L2E), jnp.float32),
    }
    enc = {
        "wqkv": w(ks[3], (E, 3 * E)), "bqkv": jnp.zeros((1, 3 * E), jnp.float32),
        "wo": w(ks[4], (E, E)), "bo": jnp.zeros((1, E), jnp.float32),
        "g1": jnp.ones((1, E), jnp.float32), "be1": jnp.zeros((1, E), jnp.float32),
        "w1": w(ks[5], (E, FF)), "bf1": jnp.zeros((1, FF), jnp.float32),
        "w2": w(ks[6], (FF, E)), "bf2": jnp.zeros((1, E), jnp.float32),
        "g2": jnp.ones((1, E), jnp.float32), "be2": jnp.zeros((1, E), jnp.float32),
    }
    cls = {
        "wd": w(ks[7], (E, E)), "bd": jnp.zeros((1, E), jnp.float32),
        "wo": w(ks[8], (E, C)), "bo": jnp.zeros((1, C), jnp.float32),
    }
    return {"prefix": prefix, "enc": enc, "cls": cls}


if __name__ == "__main__":
    cfg = dict(
        n_embd=32, n_head=4, n_layer=2,
        pre_seq_len=4, prefix_hidden_size=16,
        num_labels=3, dim_feedforward=2048,   # PyTorch TransformerEncoderLayer default
        lambda_loss=0.5,
    )
    B, S, E = 2, 8, cfg["n_embd"]

    key = jax.random.PRNGKey(0)
    k_par, k_hid, k_ids, k_lab = jax.random.split(key, 4)

    params = init_params(k_par, cfg)
    input_ids = jax.random.randint(k_ids, (B, S), 0, 100, dtype=jnp.int32)
    attention_mask = jnp.ones((B, S), jnp.int32)
    x_attention_mask = jnp.ones((B, S), jnp.int32)
    labels = input_ids
    label_ids = jax.random.randint(k_lab, (B,), 0, cfg["num_labels"], dtype=jnp.int32)
    # Stub for base_model(...).hidden_states[-1]  (see TODO(synk) above).
    stub_hidden_states = jax.random.normal(k_hid, (B, S, E), jnp.float32)

    out = model_forward(params, input_ids, attention_mask, labels,
                        x_attention_mask, label_ids, stub_hidden_states, cfg)
    jax.block_until_ready(out)
    assert out["logits"].shape == (B, cfg["num_labels"])
    assert out["feature"].shape == (B, E)
    assert out["past_prompt"][0]["prev_key"].shape == (
        B, cfg["n_head"], cfg["pre_seq_len"], E // cfg["n_head"])
    print("KERNEL_OK")
</pallas_src>

<mosaic_0001>
module attributes {stable_mosaic.version = 11 : i64} {
  func.func @fused_forward_kernel(%arg0: memref<2x8x32xf32, #tpu.memory_space<vmem>>, %arg1: memref<2x8x32xf32, #tpu.memory_space<vmem>>, %arg2: memref<4x32xf32, #tpu.memory_space<vmem>>, %arg3: memref<32x16xf32, #tpu.memory_space<vmem>>, %arg4: memref<1x16xf32, #tpu.memory_space<vmem>>, %arg5: memref<16x128xf32, #tpu.memory_space<vmem>>, %arg6: memref<1x128xf32, #tpu.memory_space<vmem>>, %arg7: memref<32x96xf32, #tpu.memory_space<vmem>>, %arg8: memref<1x96xf32, #tpu.memory_space<vmem>>, %arg9: memref<32x32xf32, #tpu.memory_space<vmem>>, %arg10: memref<1x32xf32, #tpu.memory_space<vmem>>, %arg11: memref<1x32xf32, #tpu.memory_space<vmem>>, %arg12: memref<1x32xf32, #tpu.memory_space<vmem>>, %arg13: memref<32x2048xf32, #tpu.memory_space<vmem>>, %arg14: memref<1x2048xf32, #tpu.memory_space<vmem>>, %arg15: memref<2048x32xf32, #tpu.memory_space<vmem>>, %arg16: memref<1x32xf32, #tpu.memory_space<vmem>>, %arg17: memref<1x32xf32, #tpu.memory_space<vmem>>, %arg18: memref<1x32xf32, #tpu.memory_space<vmem>>, %arg19: memref<32x32xf32, #tpu.memory_space<vmem>>, %arg20: memref<1x32xf32, #tpu.memory_space<vmem>>, %arg21: memref<32x3xf32, #tpu.memory_space<vmem>>, %arg22: memref<1x3xf32, #tpu.memory_space<vmem>>, %arg23: memref<4x128xf32, #tpu.memory_space<vmem>>, %arg24: memref<2x3xf32, #tpu.memory_space<vmem>>, %arg25: memref<2x32xf32, #tpu.memory_space<vmem>>) attributes {dimension_semantics = [], scalar_prefetch = 0 : i64, scratch_operands = 0 : i64, tpu.core_type = #tpu.core_type<tc>} {
    %c0 = arith.constant 0 : index
    %c0_0 = arith.constant 0 : index
    %0 = vector.load %arg2[%c0, %c0_0] : memref<4x32xf32, #tpu.memory_space<vmem>>, vector<4x32xf32>
    %c0_1 = arith.constant 0 : index
    %c0_2 = arith.constant 0 : index
    %1 = vector.load %arg3[%c0_1, %c0_2] : memref<32x16xf32, #tpu.memory_space<vmem>>, vector<32x16xf32>
    %cst = arith.constant dense<0.000000e+00> : vector<4x16xf32>
    %2 = tpu.matmul %0, %1, %cst {dimension_numbers = #tpu.dot_dimension_numbers<[1], [0], [0], [1], [0, 0, 1, 1], [], []>} : vector<4x32xf32>, vector<32x16xf32>, vector<4x16xf32> -> vector<4x16xf32>
    %c0_3 = arith.constant 0 : index
    %c0_4 = arith.constant 0 : index
    %3 = vector.load %arg4[%c0_3, %c0_4] : memref<1x16xf32, #tpu.memory_space<vmem>>, vector<1x16xf32>
    %4 = vector.broadcast %3 : vector<1x16xf32> to vector<4x16xf32>
    %5 = arith.addf %2, %4 : vector<4x16xf32>
    %6 = math.tanh %5 : vector<4x16xf32>
    %c0_5 = arith.constant 0 : index
    %c0_6 = arith.constant 0 : index
    %7 = vector.load %arg5[%c0_5, %c0_6] : memref<16x128xf32, #tpu.memory_space<vmem>>, vector<16x128xf32>
    %cst_7 = arith.constant dense<0.000000e+00> : vector<4x128xf32>
    %8 = tpu.matmul %6, %7, %cst_7 {dimension_numbers = #tpu.dot_dimension_numbers<[1], [0], [0], [1], [0, 0, 1, 1], [], []>} : vector<4x16xf32>, vector<16x128xf32>, vector<4x128xf32> -> vector<4x128xf32>
    %c0_8 = arith.constant 0 : index
    %c0_9 = arith.constant 0 : index
    %9 = vector.load %arg6[%c0_8, %c0_9] : memref<1x128xf32, #tpu.memory_space<vmem>>, vector<1x128xf32>
    %10 = vector.broadcast %9 : vector<1x128xf32> to vector<4x128xf32>
    %11 = arith.addf %8, %10 : vector<4x128xf32>
    %c0_10 = arith.constant 0 : index
    %c0_11 = arith.constant 0 : index
    %12 = vector.load %arg23[%c0_10, %c0_11] : memref<4x128xf32, #tpu.memory_space<vmem>>, vector<4x128xf32>
    tpu.vector_store %arg23[%c0_10, %c0_11], %11 {strides = array<i32>} : memref<4x128xf32, #tpu.memory_space<vmem>>, vector<4x128xf32>,
    %c0_12 = arith.constant 0 : index
    %c0_13 = arith.constant 0 : index
    %c0_14 = arith.constant 0 : index
    %13 = vector.load %arg0[%c0_12, %c0_13, %c0_14] : memref<2x8x32xf32, #tpu.memory_space<vmem>>, vector<2x8x32xf32>
    %c0_15 = arith.constant 0 : index
    %c0_16 = arith.constant 0 : index
    %c0_17 = arith.constant 0 : index
    %14 = vector.load %arg1[%c0_15, %c0_16, %c0_17] : memref<2x8x32xf32, #tpu.memory_space<vmem>>, vector<2x8x32xf32>
    %15 = arith.mulf %13, %14 : vector<2x8x32xf32>
    %16 = vector.shape_cast %15 : vector<2x8x32xf32> to vector<16x32xf32>
    %c0_18 = arith.constant 0 : index
    %c0_19 = arith.constant 0 : index
    %17 = vector.load %arg7[%c0_18, %c0_19] : memref<32x96xf32, #tpu.memory_space<vmem>>, vector<32x96xf32>
    %cst_20 = arith.constant dense<0.000000e+00> : vector<16x96xf32>
    %18 = tpu.matmul %16, %17, %cst_20 {dimension_numbers = #tpu.dot_dimension_numbers<[1], [0], [0], [1], [0, 0, 1, 1], [], []>} : vector<16x32xf32>, vector<32x96xf32>, vector<16x96xf32> -> vector<16x96xf32>
    %c0_21 = arith.constant 0 : index
    %c0_22 = arith.constant 0 : index
    %19 = vector.load %arg8[%c0_21, %c0_22] : memref<1x96xf32, #tpu.memory_space<vmem>>, vector<1x96xf32>
    %20 = vector.broadcast %19 : vector<1x96xf32> to vector<16x96xf32>
    %21 = arith.addf %18, %20 : vector<16x96xf32>
    %22 = vector.extract_strided_slice %21 {offsets = [0, 0], sizes = [16, 32], strides = [1, 1]} : vector<16x96xf32> to vector<16x32xf32>
    %23 = vector.extract_strided_slice %21 {offsets = [0, 32], sizes = [16, 32], strides = [1, 1]} : vector<16x96xf32> to vector<16x32xf32>
    %24 = vector.extract_strided_slice %21 {offsets = [0, 64], sizes = [16, 32], strides = [1, 1]} : vector<16x96xf32> to vector<16x32xf32>
    %25 = vector.extract_strided_slice %22 {offsets = [0, 0], sizes = [16, 8], strides = [1, 1]} : vector<16x32xf32> to vector<16x8xf32>
    %26 = vector.shape_cast %25 : vector<16x8xf32> to vector<2x8x8xf32>
    %27 = vector.extract_strided_slice %22 {offsets = [0, 8], sizes = [16, 8], strides = [1, 1]} : vector<16x32xf32> to vector<16x8xf32>
    %28 = vector.shape_cast %27 : vector<16x8xf32> to vector<2x8x8xf32>
    %29 = vector.extract_strided_slice %22 {offsets = [0, 16], sizes = [16, 8], strides = [1, 1]} : vector<16x32xf32> to vector<16x8xf32>
    %30 = vector.shape_cast %29 : vector<16x8xf32> to vector<2x8x8xf32>
    %31 = vector.extract_strided_slice %22 {offsets = [0, 24], sizes = [16, 8], strides = [1, 1]} : vector<16x32xf32> to vector<16x8xf32>
    %32 = vector.shape_cast %31 : vector<16x8xf32> to vector<2x8x8xf32>
    %33 = tpu.concatenate %26, %28, %30, %32 in 0 : vector<2x8x8xf32>, vector<2x8x8xf32>, vector<2x8x8xf32>, vector<2x8x8xf32> -> vector<8x8x8xf32>
    %34 = vector.extract_strided_slice %23 {offsets = [0, 0], sizes = [16, 8], strides = [1, 1]} : vector<16x32xf32> to vector<16x8xf32>
    %35 = vector.shape_cast %34 : vector<16x8xf32> to vector<2x8x8xf32>
    %36 = vector.extract_strided_slice %23 {offsets = [0, 8], sizes = [16, 8], strides = [1, 1]} : vector<16x32xf32> to vector<16x8xf32>
    %37 = vector.shape_cast %36 : vector<16x8xf32> to vector<2x8x8xf32>
    %38 = vector.extract_strided_slice %23 {offsets = [0, 16], sizes = [16, 8], strides = [1, 1]} : vector<16x32xf32> to vector<16x8xf32>
    %39 = vector.shape_cast %38 : vector<16x8xf32> to vector<2x8x8xf32>
    %40 = vector.extract_strided_slice %23 {offsets = [0, 24], sizes = [16, 8], strides = [1, 1]} : vector<16x32xf32> to vector<16x8xf32>
    %41 = vector.shape_cast %40 : vector<16x8xf32> to vector<2x8x8xf32>
    %42 = tpu.concatenate %35, %37, %39, %41 in 0 : vector<2x8x8xf32>, vector<2x8x8xf32>, vector<2x8x8xf32>, vector<2x8x8xf32> -> vector<8x8x8xf32>
    %43 = vector.extract_strided_slice %24 {offsets = [0, 0], sizes = [16, 8], strides = [1, 1]} : vector<16x32xf32> to vector<16x8xf32>
    %44 = vector.shape_cast %43 : vector<16x8xf32> to vector<2x8x8xf32>
    %45 = vector.extract_strided_slice %24 {offsets = [0, 8], sizes = [16, 8], strides = [1, 1]} : vector<16x32xf32> to vector<16x8xf32>
    %46 = vector.shape_cast %45 : vector<16x8xf32> to vector<2x8x8xf32>
    %47 = vector.extract_strided_slice %24 {offsets = [0, 16], sizes = [16, 8], strides = [1, 1]} : vector<16x32xf32> to vector<16x8xf32>
    %48 = vector.shape_cast %47 : vector<16x8xf32> to vector<2x8x8xf32>
    %49 = vector.extract_strided_slice %24 {offsets = [0, 24], sizes = [16, 8], strides = [1, 1]} : vector<16x32xf32> to vector<16x8xf32>
    %50 = vector.shape_cast %49 : vector<16x8xf32> to vector<2x8x8xf32>
    %51 = tpu.concatenate %44, %46, %48, %50 in 0 : vector<2x8x8xf32>, vector<2x8x8xf32>, vector<2x8x8xf32>, vector<2x8x8xf32> -> vector<8x8x8xf32>
    "tpu.trace_start"() <{level = 10 : i32, message = "bqd,bkd->bqk"}> : () -> ()
    %cst_23 = arith.constant dense<0.000000e+00> : vector<8x8x8xf32>
    %52 = tpu.matmul %33, %42, %cst_23 {dimension_numbers = #tpu.dot_dimension_numbers<[2], [2], [1], [1], [0, 0, 0, 1, 1, 1], [0], [0]>} : vector<8x8x8xf32>, vector<8x8x8xf32>, vector<8x8x8xf32> -> vector<8x8x8xf32>
    "tpu.trace_stop"() : () -> ()
    %cst_24 = arith.constant 0.353553385 : f32
    %53 = vector.broadcast %cst_24 : f32 to vector<8x8x8xf32>
    %54 = arith.mulf %52, %53 : vector<8x8x8xf32>
    %cst_25 = arith.constant dense<0xFF800000> : vector<8x8xf32>
    %55 = vector.multi_reduction <maximumf>, %54, %cst_25 [2] : vector<8x8x8xf32> to vector<8x8xf32>
    %56 = vector.shape_cast %55 : vector<8x8xf32> to vector<8x8x1xf32>
    %57 = vector.broadcast %56 : vector<8x8x1xf32> to vector<8x8x8xf32>
    %58 = arith.subf %54, %57 : vector<8x8x8xf32>
    %59 = math.exp %58 : vector<8x8x8xf32>
    %cst_26 = arith.constant dense<0.000000e+00> : vector<8x8xf32>
    %60 = vector.multi_reduction <add>, %59, %cst_26 [2] : vector<8x8x8xf32> to vector<8x8xf32>
    %61 = vector.shape_cast %60 : vector<8x8xf32> to vector<8x8x1xf32>
    %62 = tpu.reciprocal %61 {approx = true} : vector<8x8x1xf32> -> vector<8x8x1xf32>
    %63 = vector.broadcast %62 : vector<8x8x1xf32> to vector<8x8x8xf32>
    %64 = arith.mulf %59, %63 : vector<8x8x8xf32>
    "tpu.trace_start"() <{level = 10 : i32, message = "bqk,bkd->bqd"}> : () -> ()
    %cst_27 = arith.constant dense<0.000000e+00> : vector<8x8x8xf32>
    %65 = tpu.matmul %64, %51, %cst_27 {dimension_numbers = #tpu.dot_dimension_numbers<[2], [1], [1], [2], [0, 0, 0, 1, 1, 2], [0], [0]>} : vector<8x8x8xf32>, vector<8x8x8xf32>, vector<8x8x8xf32> -> vector<8x8x8xf32>
    "tpu.trace_stop"() : () -> ()
    %66 = vector.extract_strided_slice %65 {offsets = [0, 0, 0], sizes = [2, 8, 8], strides = [1, 1, 1]} : vector<8x8x8xf32> to vector<2x8x8xf32>
    %67 = vector.shape_cast %66 : vector<2x8x8xf32> to vector<16x8xf32>
    %68 = vector.extract_strided_slice %65 {offsets = [2, 0, 0], sizes = [2, 8, 8], strides = [1, 1, 1]} : vector<8x8x8xf32> to vector<2x8x8xf32>
    %69 = vector.shape_cast %68 : vector<2x8x8xf32> to vector<16x8xf32>
    %70 = vector.extract_strided_slice %65 {offsets = [4, 0, 0], sizes = [2, 8, 8], strides = [1, 1, 1]} : vector<8x8x8xf32> to vector<2x8x8xf32>
    %71 = vector.shape_cast %70 : vector<2x8x8xf32> to vector<16x8xf32>
    %72 = vector.extract_strided_slice %65 {offsets = [6, 0, 0], sizes = [2, 8, 8], strides = [1, 1, 1]} : vector<8x8x8xf32> to vector<2x8x8xf32>
    %73 = vector.shape_cast %72 : vector<2x8x8xf32> to vector<16x8xf32>
    %74 = tpu.concatenate %67, %69, %71, %73 in 1 : vector<16x8xf32>, vector<16x8xf32>, vector<16x8xf32>, vector<16x8xf32> -> vector<16x32xf32>
    %c0_28 = arith.constant 0 : index
    %c0_29 = arith.constant 0 : index
    %75 = vector.load %arg9[%c0_28, %c0_29] : memref<32x32xf32, #tpu.memory_space<vmem>>, vector<32x32xf32>
    %cst_30 = arith.constant dense<0.000000e+00> : vector<16x32xf32>
    %76 = tpu.matmul %74, %75, %cst_30 {dimension_numbers = #tpu.dot_dimension_numbers<[1], [0], [0], [1], [0, 0, 1, 1], [], []>} : vector<16x32xf32>, vector<32x32xf32>, vector<16x32xf32> -> vector<16x32xf32>
    %c0_31 = arith.constant 0 : index
    %c0_32 = arith.constant 0 : index
    %77 = vector.load %arg10[%c0_31, %c0_32] : memref<1x32xf32, #tpu.memory_space<vmem>>, vector<1x32xf32>
    %78 = vector.broadcast %77 : vector<1x32xf32> to vector<16x32xf32>
    %79 = arith.addf %76, %78 : vector<16x32xf32>
    %80 = arith.addf %16, %79 : vector<16x32xf32>
    %c0_33 = arith.constant 0 : index
    %c0_34 = arith.constant 0 : index
    %81 = vector.load %arg11[%c0_33, %c0_34] : memref<1x32xf32, #tpu.memory_space<vmem>>, vector<1x32xf32>
    %c0_35 = arith.constant 0 : index
    %c0_36 = arith.constant 0 : index
    %82 = vector.load %arg12[%c0_35, %c0_36] : memref<1x32xf32, #tpu.memory_space<vmem>>, vector<1x32xf32>
    %cst_37 = arith.constant dense<0.000000e+00> : vector<16xf32>
    %83 = vector.multi_reduction <add>, %80, %cst_37 [1] : vector<16x32xf32> to vector<16xf32>
    %84 = vector.shape_cast %83 : vector<16xf32> to vector<16x1xf32>
    %cst_38 = arith.constant 3.200000e+01 : f32
    %85 = vector.broadcast %cst_38 : f32 to vector<16x1xf32>
    %86 = arith.divf %84, %85 : vector<16x1xf32>
    %87 = vector.broadcast %86 : vector<16x1xf32> to vector<16x32xf32>
    %88 = arith.subf %80, %87 : vector<16x32xf32>
    %89 = arith.mulf %88, %88 : vector<16x32xf32>
    %cst_39 = arith.constant dense<0.000000e+00> : vector<16xf32>
    %90 = vector.multi_reduction <add>, %89, %cst_39 [1] : vector<16x32xf32> to vector<16xf32>
    %91 = vector.shape_cast %90 : vector<16xf32> to vector<16x1xf32>
    %cst_40 = arith.constant 3.200000e+01 : f32
    %92 = vector.broadcast %cst_40 : f32 to vector<16x1xf32>
    %93 = arith.divf %91, %92 : vector<16x1xf32>
    %94 = vector.broadcast %86 : vector<16x1xf32> to vector<16x32xf32>
    %95 = arith.subf %80, %94 : vector<16x32xf32>
    %cst_41 = arith.constant 9.99999974E-6 : f32
    %96 = vector.broadcast %cst_41 : f32 to vector<16x1xf32>
    %97 = arith.addf %93, %96 : vector<16x1xf32>
    %98 = math.rsqrt %97 : vector<16x1xf32>
    %99 = vector.broadcast %98 : vector<16x1xf32> to vector<16x32xf32>
    %100 = arith.mulf %95, %99 : vector<16x32xf32>
    %101 = vector.broadcast %81 : vector<1x32xf32> to vector<16x32xf32>
    %102 = arith.mulf %100, %101 : vector<16x32xf32>
    %103 = vector.broadcast %82 : vector<1x32xf32> to vector<16x32xf32>
    %104 = arith.addf %102, %103 : vector<16x32xf32>
    %c0_42 = arith.constant 0 : index
    %c0_43 = arith.constant 0 : index
    %105 = vector.load %arg13[%c0_42, %c0_43] : memref<32x2048xf32, #tpu.memory_space<vmem>>, vector<32x2048xf32>
    %cst_44 = arith.constant dense<0.000000e+00> : vector<16x2048xf32>
    %106 = tpu.matmul %104, %105, %cst_44 {dimension_numbers = #tpu.dot_dimension_numbers<[1], [0], [0], [1], [0, 0, 1, 1], [], []>} : vector<16x32xf32>, vector<32x2048xf32>, vector<16x2048xf32> -> vector<16x2048xf32>
    %c0_45 = arith.constant 0 : index
    %c0_46 = arith.constant 0 : index
    %107 = vector.load %arg14[%c0_45, %c0_46] : memref<1x2048xf32, #tpu.memory_space<vmem>>, vector<1x2048xf32>
    %108 = vector.broadcast %107 : vector<1x2048xf32> to vector<16x2048xf32>
    %109 = arith.addf %106, %108 : vector<16x2048xf32>
    %cst_47 = arith.constant 0.000000e+00 : f32
    %110 = vector.broadcast %cst_47 : f32 to vector<16x2048xf32>
    %111 = arith.maximumf %109, %110 : vector<16x2048xf32>
    %c0_48 = arith.constant 0 : index
    %c0_49 = arith.constant 0 : index
    %112 = vector.load %arg15[%c0_48, %c0_49] : memref<2048x32xf32, #tpu.memory_space<vmem>>, vector<2048x32xf32>
    %cst_50 = arith.constant dense<0.000000e+00> : vector<16x32xf32>
    %113 = tpu.matmul %111, %112, %cst_50 {dimension_numbers = #tpu.dot_dimension_numbers<[1], [0], [0], [1], [0, 0, 1, 1], [], []>} : vector<16x2048xf32>, vector<2048x32xf32>, vector<16x32xf32> -> vector<16x32xf32>
    %c0_51 = arith.constant 0 : index
    %c0_52 = arith.constant 0 : index
    %114 = vector.load %arg16[%c0_51, %c0_52] : memref<1x32xf32, #tpu.memory_space<vmem>>, vector<1x32xf32>
    %115 = vector.broadcast %114 : vector<1x32xf32> to vector<16x32xf32>
    %116 = arith.addf %113, %115 : vector<16x32xf32>
    %117 = arith.addf %104, %116 : vector<16x32xf32>
    %c0_53 = arith.constant 0 : index
    %c0_54 = arith.constant 0 : index
    %118 = vector.load %arg17[%c0_53, %c0_54] : memref<1x32xf32, #tpu.memory_space<vmem>>, vector<1x32xf32>
    %c0_55 = arith.constant 0 : index
    %c0_56 = arith.constant 0 : index
    %119 = vector.load %arg18[%c0_55, %c0_56] : memref<1x32xf32, #tpu.memory_space<vmem>>, vector<1x32xf32>
    %cst_57 = arith.constant dense<0.000000e+00> : vector<16xf32>
    %120 = vector.multi_reduction <add>, %117, %cst_57 [1] : vector<16x32xf32> to vector<16xf32>
    %121 = vector.shape_cast %120 : vector<16xf32> to vector<16x1xf32>
    %cst_58 = arith.constant 3.200000e+01 : f32
    %122 = vector.broadcast %cst_58 : f32 to vector<16x1xf32>
    %123 = arith.divf %121, %122 : vector<16x1xf32>
    %124 = vector.broadcast %123 : vector<16x1xf32> to vector<16x32xf32>
    %125 = arith.subf %117, %124 : vector<16x32xf32>
    %126 = arith.mulf %125, %125 : vector<16x32xf32>
    %cst_59 = arith.constant dense<0.000000e+00> : vector<16xf32>
    %127 = vector.multi_reduction <add>, %126, %cst_59 [1] : vector<16x32xf32> to vector<16xf32>
    %128 = vector.shape_cast %127 : vector<16xf32> to vector<16x1xf32>
    %cst_60 = arith.constant 3.200000e+01 : f32
    %129 = vector.broadcast %cst_60 : f32 to vector<16x1xf32>
    %130 = arith.divf %128, %129 : vector<16x1xf32>
    %131 = vector.broadcast %123 : vector<16x1xf32> to vector<16x32xf32>
    %132 = arith.subf %117, %131 : vector<16x32xf32>
    %cst_61 = arith.constant 9.99999974E-6 : f32
    %133 = vector.broadcast %cst_61 : f32 to vector<16x1xf32>
    %134 = arith.addf %130, %133 : vector<16x1xf32>
    %135 = math.rsqrt %134 : vector<16x1xf32>
    %136 = vector.broadcast %135 : vector<16x1xf32> to vector<16x32xf32>
    %137 = arith.mulf %132, %136 : vector<16x32xf32>
    %138 = vector.broadcast %118 : vector<1x32xf32> to vector<16x32xf32>
    %139 = arith.mulf %137, %138 : vector<16x32xf32>
    %140 = vector.broadcast %119 : vector<1x32xf32> to vector<16x32xf32>
    %141 = arith.addf %139, %140 : vector<16x32xf32>
    %142 = vector.shape_cast %141 : vector<16x32xf32> to vector<2x8x32xf32>
    %cst_62 = arith.constant dense<0.000000e+00> : vector<2x32xf32>
    %143 = vector.multi_reduction <add>, %142, %cst_62 [1] : vector<2x8x32xf32> to vector<2x32xf32>
    %cst_63 = arith.constant 8.000000e+00 : f32
    %144 = vector.broadcast %cst_63 : f32 to vector<2x32xf32>
    %145 = arith.divf %143, %144 : vector<2x32xf32>
    %c0_64 = arith.constant 0 : index
    %c0_65 = arith.constant 0 : index
    %146 = vector.load %arg19[%c0_64, %c0_65] : memref<32x32xf32, #tpu.memory_space<vmem>>, vector<32x32xf32>
    %cst_66 = arith.constant dense<0.000000e+00> : vector<2x32xf32>
    %147 = tpu.matmul %145, %146, %cst_66 {dimension_numbers = #tpu.dot_dimension_numbers<[1], [0], [0], [1], [0, 0, 1, 1], [], []>} : vector<2x32xf32>, vector<32x32xf32>, vector<2x32xf32> -> vector<2x32xf32>
    %c0_67 = arith.constant 0 : index
    %c0_68 = arith.constant 0 : index
    %148 = vector.load %arg20[%c0_67, %c0_68] : memref<1x32xf32, #tpu.memory_space<vmem>>, vector<1x32xf32>
    %149 = vector.broadcast %148 : vector<1x32xf32> to vector<2x32xf32>
    %150 = arith.addf %147, %149 : vector<2x32xf32>
    %cst_69 = arith.constant 0.000000e+00 : f32
    %151 = vector.broadcast %cst_69 : f32 to vector<2x32xf32>
    %152 = arith.maximumf %150, %151 : vector<2x32xf32>
    %c0_70 = arith.constant 0 : index
    %c0_71 = arith.constant 0 : index
    %153 = vector.load %arg25[%c0_70, %c0_71] : memref<2x32xf32, #tpu.memory_space<vmem>>, vector<2x32xf32>
    tpu.vector_store %arg25[%c0_70, %c0_71], %152 {strides = array<i32>} : memref<2x32xf32, #tpu.memory_space<vmem>>, vector<2x32xf32>,
    %c0_72 = arith.constant 0 : index
    %c0_73 = arith.constant 0 : index
    %154 = vector.load %arg21[%c0_72, %c0_73] : memref<32x3xf32, #tpu.memory_space<vmem>>, vector<32x3xf32>
    %cst_74 = arith.constant dense<0.000000e+00> : vector<2x3xf32>
    %155 = tpu.matmul %152, %154, %cst_74 {dimension_numbers = #tpu.dot_dimension_numbers<[1], [0], [0], [1], [0, 0, 1, 1], [], []>} : vector<2x32xf32>, vector<32x3xf32>, vector<2x3xf32> -> vector<2x3xf32>
    %c0_75 = arith.constant 0 : index
    %c0_76 = arith.constant 0 : index
    %156 = vector.load %arg22[%c0_75, %c0_76] : memref<1x3xf32, #tpu.memory_space<vmem>>, vector<1x3xf32>
    %157 = vector.broadcast %156 : vector<1x3xf32> to vector<2x3xf32>
    %158 = arith.addf %155, %157 : vector<2x3xf32>
    %c0_77 = arith.constant 0 : index
    %c0_78 = arith.constant 0 : index
    %159 = vector.load %arg24[%c0_77, %c0_78] : memref<2x3xf32, #tpu.memory_space<vmem>>, vector<2x3xf32>
    tpu.vector_store %arg24[%c0_77, %c0_78], %158 {strides = array<i32>} : memref<2x3xf32, #tpu.memory_space<vmem>>, vector<2x3xf32>,
    return
  }
}

</mosaic_0001>

<llo_original>
// kernel: tpu_custom_call.1
$region0: #{tpu_custom_call.1}
  #allocation0 [shape = 'u32[]', space=smem, size = 0x4, offset = 0x4, fixed_abs, tag = 'smem constant byte address 0x4 - core index']
  #allocation1 [shape = 'u32[144,128]{1,0:T(1,128)}', space=vmem, size = 0x12000, scoped, tag = 'internal scratch']
  %s0 = inlined_call_operand.vmem [shape: f32[2,8,32], index: 0, kind: input, shape index: {}]
  %s1 = inlined_call_operand.vmem [shape: f32[2,8,32], index: 1, kind: input, shape index: {}]
  %s2 = inlined_call_operand.vmem [shape: f32[4,32], index: 2, kind: input, shape index: {}]
  %s3 = inlined_call_operand.vmem [shape: f32[32,16], index: 3, kind: input, shape index: {}]
  %s4 = inlined_call_operand.vmem [shape: f32[1,16], index: 4, kind: input, shape index: {}]
  %s5 = inlined_call_operand.vmem [shape: f32[16,128], index: 5, kind: input, shape index: {}]
  %s6 = inlined_call_operand.vmem [shape: f32[1,128], index: 6, kind: input, shape index: {}]
  %s7 = inlined_call_operand.vmem [shape: f32[32,96], index: 7, kind: input, shape index: {}]
  %s8 = inlined_call_operand.vmem [shape: f32[1,96], index: 8, kind: input, shape index: {}]
  %s9 = inlined_call_operand.vmem [shape: f32[32,32], index: 9, kind: input, shape index: {}]
  %s10 = inlined_call_operand.vmem [shape: f32[1,32], index: 10, kind: input, shape index: {}]
  %s11 = inlined_call_operand.vmem [shape: f32[1,32], index: 11, kind: input, shape index: {}]
  %s12 = inlined_call_operand.vmem [shape: f32[1,32], index: 12, kind: input, shape index: {}]
  %s13 = inlined_call_operand.vmem [shape: f32[32,2048], index: 13, kind: input, shape index: {}]
  %s14 = inlined_call_operand.vmem [shape: f32[1,2048], index: 14, kind: input, shape index: {}]
  %s15 = inlined_call_operand.vmem [shape: f32[2048,32], index: 15, kind: input, shape index: {}]
  %s16 = inlined_call_operand.vmem [shape: f32[1,32], index: 16, kind: input, shape index: {}]
  %s17 = inlined_call_operand.vmem [shape: f32[1,32], index: 17, kind: input, shape index: {}]
  %s18 = inlined_call_operand.vmem [shape: f32[1,32], index: 18, kind: input, shape index: {}]
  %s19 = inlined_call_operand.vmem [shape: f32[32,32], index: 19, kind: input, shape index: {}]
  %s20 = inlined_call_operand.vmem [shape: f32[1,32], index: 20, kind: input, shape index: {}]
  %s21 = inlined_call_operand.vmem [shape: f32[32,3], index: 21, kind: input, shape index: {}]
  %s22 = inlined_call_operand.vmem [shape: f32[1,3], index: 22, kind: input, shape index: {}]
  %s23 = inlined_call_operand.hbm [shape: f32[4,128], index: 23, kind: output, shape index: {0}]
  %s24 = inlined_call_operand.hbm [shape: f32[2,3], index: 24, kind: output, shape index: {1}]
  %s25 = inlined_call_operand.hbm [shape: f32[2,32], index: 25, kind: output, shape index: {2}]
  %26 = xla_tuple %s23, %s24, %s25
  %s27 = sld [smem:[#allocation0]]
  $region118: #{tpu_custom_call.1} parent=0
    _
  %s29 = ssub.s32 1, %s27
  %s30 = scalar_select 0, %s29, %s27
  $region1: #{tpu_custom_call.1} parent=0
    #allocation2 [shape = 'u8[2048]{0}', space=vmem, size = 0x800, scoped, tag = 'output window, operand 0, single buffered']
    #allocation3 [shape = 's32[1]{0}', space=sflag, size = 0x4, scoped, tag = 'scoped memory for tpu_custom_call.1']
    #allocation4 [shape = 'u8[1024]{0}', space=vmem, size = 0x400, scoped, tag = 'output window, operand 1, single buffered']
    #allocation5 [shape = 's32[1]{0}', space=sflag, size = 0x4, scoped, tag = 'scoped memory for tpu_custom_call.1']
    #allocation6 [shape = 'u8[1024]{0}', space=vmem, size = 0x400, scoped, tag = 'output window, operand 2, single buffered']
    %31 = vsyncpa [#allocation3], 0
    %32 = vsyncpa [#allocation5], 0
    // Predicated region
    $region2: #{tpu_custom_call.1} parent=1 // pred_check
      _
    $region3: #{tpu_custom_call.1} parent=1 // pred_check_branch
      %34 = sbr.rel (0) target = $region5
    $region4: #{tpu_custom_call.1} parent=1 // pred_region
      _
    $region5: #{tpu_custom_call.1} parent=1 // pred_fallthru
      _
    // Predicated region
    $region6: #{tpu_custom_call.1} parent=1 // pred_check
      _
    $region7: #{tpu_custom_call.1} parent=1 // pred_check_branch
      %36 = sbr.rel (0) target = $region9
    $region8: #{tpu_custom_call.1} parent=1 // pred_region
      _
    $region9: #{tpu_custom_call.1} parent=1 // pred_fallthru
      _
    // Predicated region
    $region10: #{tpu_custom_call.1} parent=1 // pred_check
      _
    $region11: #{tpu_custom_call.1} parent=1 // pred_check_branch
      %38 = sbr.rel (0) target = $region13
    $region12: #{tpu_custom_call.1} parent=1 // pred_region
      _
    $region13: #{tpu_custom_call.1} parent=1 // pred_fallthru
      _
    // Predicated region
    $region14: #{tpu_custom_call.1} parent=1 // pred_check
      _
    $region15: #{tpu_custom_call.1} parent=1 // pred_check_branch
      %40 = sbr.rel (0) target = $region17
    $region16: #{tpu_custom_call.1} parent=1 // pred_region
      _
    $region17: #{tpu_custom_call.1} parent=1 // pred_fallthru
      _
    // Predicated region
    $region18: #{tpu_custom_call.1} parent=1 // pred_check
      _
    $region19: #{tpu_custom_call.1} parent=1 // pred_check_branch
      %42 = sbr.rel (0) target = $region21
    $region20: #{tpu_custom_call.1} parent=1 // pred_region
      _
    $region21: #{tpu_custom_call.1} parent=1 // pred_fallthru
      _
    // Predicated region
    $region22: #{tpu_custom_call.1} parent=1 // pred_check
      _
    $region23: #{tpu_custom_call.1} parent=1 // pred_check_branch
      %44 = sbr.rel (0) target = $region25
    $region24: #{tpu_custom_call.1} parent=1 // pred_region
      _
    $region25: #{tpu_custom_call.1} parent=1 // pred_fallthru
      _
    // Predicated region
    $region26: #{tpu_custom_call.1} parent=1 // pred_check
      _
    $region27: #{tpu_custom_call.1} parent=1 // pred_check_branch
      %46 = sbr.rel (0) target = $region29
    $region28: #{tpu_custom_call.1} parent=1 // pred_region
      _
    $region29: #{tpu_custom_call.1} parent=1 // pred_fallthru
      _
    // Predicated region
    $region30: #{tpu_custom_call.1} parent=1 // pred_check
      _
    $region31: #{tpu_custom_call.1} parent=1 // pred_check_branch
      %48 = sbr.rel (0) target = $region33
    $region32: #{tpu_custom_call.1} parent=1 // pred_region
      _
    $region33: #{tpu_custom_call.1} parent=1 // pred_fallthru
      _
    // Predicated region
    $region34: #{tpu_custom_call.1} parent=1 // pred_check
      _
    $region35: #{tpu_custom_call.1} parent=1 // pred_check_branch
      %50 = sbr.rel (0) target = $region37
    $region36: #{tpu_custom_call.1} parent=1 // pred_region
      _
    $region37: #{tpu_custom_call.1} parent=1 // pred_fallthru
      _
    // Predicated region
    $region38: #{tpu_custom_call.1} parent=1 // pred_check
      _
    $region39: #{tpu_custom_call.1} parent=1 // pred_check_branch
      %52 = sbr.rel (0) target = $region41
    $region40: #{tpu_custom_call.1} parent=1 // pred_region
      _
    $region41: #{tpu_custom_call.1} parent=1 // pred_fallthru
      _
    // Predicated region
    $region42: #{tpu_custom_call.1} parent=1 // pred_check
      _
    $region43: #{tpu_custom_call.1} parent=1 // pred_check_branch
      %54 = sbr.rel (0) target = $region45
    $region44: #{tpu_custom_call.1} parent=1 // pred_region
      _
    $region45: #{tpu_custom_call.1} parent=1 // pred_fallthru
      _
    // Predicated region
    $region46: #{tpu_custom_call.1} parent=1 // pred_check
      _
    $region47: #{tpu_custom_call.1} parent=1 // pred_check_branch
      %56 = sbr.rel (0) target = $region49
    $region48: #{tpu_custom_call.1} parent=1 // pred_region
      _
    $region49: #{tpu_custom_call.1} parent=1 // pred_fallthru
      _
    // Predicated region
    $region50: #{tpu_custom_call.1} parent=1 // pred_check
      _
    $region51: #{tpu_custom_call.1} parent=1 // pred_check_branch
      %58 = sbr.rel (0) target = $region53
    $region52: #{tpu_custom_call.1} parent=1 // pred_region
      _
    $region53: #{tpu_custom_call.1} parent=1 // pred_fallthru
      _
    // Predicated region
    $region54: #{tpu_custom_call.1} parent=1 // pred_check
      _
    $region55: #{tpu_custom_call.1} parent=1 // pred_check_branch
      %60 = sbr.rel (0) target = $region57
    $region56: #{tpu_custom_call.1} parent=1 // pred_region
      _
    $region57: #{tpu_custom_call.1} parent=1 // pred_fallthru
      _
    // Predicated region
    $region58: #{tpu_custom_call.1} parent=1 // pred_check
      _
    $region59: #{tpu_custom_call.1} parent=1 // pred_check_branch
      %62 = sbr.rel (0) target = $region61
    $region60: #{tpu_custom_call.1} parent=1 // pred_region
      _
    $region61: #{tpu_custom_call.1} parent=1 // pred_fallthru
      _
    // Predicated region
    $region62: #{tpu_custom_call.1} parent=1 // pred_check
      _
    $region63: #{tpu_custom_call.1} parent=1 // pred_check_branch
      %64 = sbr.rel (0) target = $region65
    $region64: #{tpu_custom_call.1} parent=1 // pred_region
      _
    $region65: #{tpu_custom_call.1} parent=1 // pred_fallthru
      _
    // Predicated region
    $region66: #{tpu_custom_call.1} parent=1 // pred_check
      _
    $region67: #{tpu_custom_call.1} parent=1 // pred_check_branch
      %66 = sbr.rel (0) target = $region69
    $region68: #{tpu_custom_call.1} parent=1 // pred_region
      _
    $region69: #{tpu_custom_call.1} parent=1 // pred_fallthru
      _
    // Predicated region
    $region70: #{tpu_custom_call.1} parent=1 // pred_check
      _
    $region71: #{tpu_custom_call.1} parent=1 // pred_check_branch
      %68 = sbr.rel (0) target = $region73
    $region72: #{tpu_custom_call.1} parent=1 // pred_region
      _
    $region73: #{tpu_custom_call.1} parent=1 // pred_fallthru
      _
    // Predicated region
    $region74: #{tpu_custom_call.1} parent=1 // pred_check
      _
    $region75: #{tpu_custom_call.1} parent=1 // pred_check_branch
      %70 = sbr.rel (0) target = $region77
    $region76: #{tpu_custom_call.1} parent=1 // pred_region
      _
    $region77: #{tpu_custom_call.1} parent=1 // pred_fallthru
      _
    // Predicated region
    $region78: #{tpu_custom_call.1} parent=1 // pred_check
      _
    $region79: #{tpu_custom_call.1} parent=1 // pred_check_branch
      %72 = sbr.rel (0) target = $region81
    $region80: #{tpu_custom_call.1} parent=1 // pred_region
      _
    $region81: #{tpu_custom_call.1} parent=1 // pred_fallthru
      _
    // Predicated region
    $region82: #{tpu_custom_call.1} parent=1 // pred_check
      _
    $region83: #{tpu_custom_call.1} parent=1 // pred_check_branch
      %74 = sbr.rel (0) target = $region85
    $region84: #{tpu_custom_call.1} parent=1 // pred_region
      _
    $region85: #{tpu_custom_call.1} parent=1 // pred_fallthru
      _
    // Predicated region
    $region86: #{tpu_custom_call.1} parent=1 // pred_check
      _
    $region87: #{tpu_custom_call.1} parent=1 // pred_check_branch
      %76 = sbr.rel (0) target = $region89
    $region88: #{tpu_custom_call.1} parent=1 // pred_region
      _
    $region89: #{tpu_custom_call.1} parent=1 // pred_fallthru
      _
    // Predicated region
    $region90: #{tpu_custom_call.1} parent=1 // pred_check
      _
    $region91: #{tpu_custom_call.1} parent=1 // pred_check_branch
      %78 = sbr.rel (0) target = $region93
    $region92: #{tpu_custom_call.1} parent=1 // pred_region
      _
    $region93: #{tpu_custom_call.1} parent=1 // pred_fallthru
      _
    %v79 = vld [vmem:[%s2] sm:$0xf]
    %v80 = vld [vmem:[%s3] sm:$0xff]
    %v81 = vld [vmem:[%s3 + $0x8] sm:$0xff]
    %v82 = vld [vmem:[%s3 + $0x10] sm:$0xff]
    %v83 = vld [vmem:[%s3 + $0x18] sm:$0xff]
    %v84 = vld [vmem:[%s4] sm:$0x1]
    %v86 = vlaneseq
    %v87 = vshrl.u32 %v86, 7
    %v88 = vsub.s32 0, %v87
    %v89 = vrot.slane %v84, %v88
    %vm91 = vcmask 261120
    %v93 = vsel %vm91, %v79, 0
    %95 = vmatprep.subr.mxu0 0.0
    %96 = vmatpush1.msra.mxu0 0.0
    %97 = vmatprep.subr.mxu0 0.0
    %98 = vmatpush1.msra.mxu0 0.0
    %99 = vmatprep.subr.mxu0 0.0
    %100 = vmatpush1.msra.mxu0 0.0
    %101 = vmatprep.subr.mxu0 0.0
    %102 = vmatpush1.msra.mxu0 0.0
    %103 = vmatprep.subr.mxu0 0.0
    %104 = vmatpush1.msra.mxu0 0.0
    %105 = vmatprep.subr.mxu0 0.0
    %106 = vmatpush1.msra.mxu0 0.0
    %107 = vmatprep.subr.mxu0 0.0
    %108 = vmatpush1.msra.mxu0 0.0
    %109 = vmatprep.subr.mxu0 0.0
    %110 = vmatpush1.msra.mxu0 0.0
    %111 = vmatprep.subr.mxu0 0.0
    %112 = vmatpush1.msra.mxu0 0.0
    %113 = vmatprep.subr.mxu0 0.0
    %114 = vmatpush1.msra.mxu0 0.0
    %115 = vmatprep.subr.mxu0 0.0
    %116 = vmatpush1.msra.mxu0 0.0
    %117 = vmatprep.subr.mxu0 0.0
    %118 = vmatpush1.msra.mxu0 0.0
    %119 = vmatprep.subr.mxu0 0.0
    %120 = vmatpush1.msra.mxu0 %v83
    %121 = vmatprep.subr.mxu0 0.0
    %122 = vmatpush1.msra.mxu0 %v82
    %123 = vmatprep.subr.mxu0 0.0
    %124 = vmatpush1.msra.mxu0 %v81
    %125 = vmatprep.subr.mxu0 0.0
    %126 = vmatpush1.msra.mxu0 %v80
    %127 = vmatprep.subr.mxu0 0.0
    %128 = vmatpush2.msra.mxu0 0.0
    %129 = vmatprep.subr.mxu0 0.0
    %130 = vmatpush2.msra.mxu0 0.0
    %131 = vmatprep.subr.mxu0 0.0
    %132 = vmatpush2.msra.mxu0 0.0
    %133 = vmatprep.subr.mxu0 0.0
    %134 = vmatpush2.msra.mxu0 0.0
    %135 = vmatprep.subr.mxu0 0.0
    %136 = vmatpush2.msra.mxu0 0.0
    %137 = vmatprep.subr.mxu0 0.0
    %138 = vmatpush2.msra.mxu0 0.0
    %139 = vmatprep.subr.mxu0 0.0
    %140 = vmatpush2.msra.mxu0 0.0
    %141 = vmatprep.subr.mxu0 0.0
    %142 = vmatpush2.msra.mxu0 0.0
    %143 = vmatprep.subr.mxu0 0.0
    %144 = vmatpush2.msra.mxu0 0.0
    %145 = vmatprep.subr.mxu0 0.0
    %146 = vmatpush2.msra.mxu0 0.0
    %147 = vmatprep.subr.mxu0 0.0
    %148 = vmatpush2.msra.mxu0 0.0
    %149 = vmatprep.subr.mxu0 0.0
    %150 = vmatpush2.msra.mxu0 0.0
    %151 = vmatprep.subr.mxu0 0.0
    %152 = vmatpush2.msra.mxu0 0.0
    %153 = vmatprep.subr.mxu0 0.0
    %154 = vmatpush2.msra.mxu0 0.0
    %155 = vmatprep.subr.mxu0 0.0
    %156 = vmatpush2.msra.mxu0 0.0
    %157 = vmatprep.subr.mxu0 0.0
    %158 = vmatpush2.msra.mxu0 0.0
    %159 = vmatprep.mubr.f32.mxu0 0.0
    %160 = vmatmul.mubr.f32.gmra.mxu0 %v93
    %v161 = vpop.f32.mrf.mxu0
    %v162 = vadd.f32 %v89, %v161
    %v163 = vpop.f32.mrf.mxu0
    %164 = vdwg.mxu0
    %v165 = vtanh.pop %v162
    %v166 = vld [vmem:[%s5] sm:$0xff]
    %v167 = vld [vmem:[%s5 + $0x8] sm:$0xff]
    %v168 = vld [vmem:[%s6] sm:$0x1]
    %v170 = vlaneseq
    %v171 = vshrl.u32 %v170, 7
    %v172 = vsub.s32 0, %v171
    %v173 = vrot.slane %v168, %v172
    %vm175 = vcmask 130048
    %v177 = vsel %vm175, %v165, 0
    %179 = vmatprep.subr.mxu0 0.0
    %180 = vmatpush1.msra.mxu0 0.0
    %181 = vmatprep.subr.mxu0 0.0
    %182 = vmatpush1.msra.mxu0 0.0
    %183 = vmatprep.subr.mxu0 0.0
    %184 = vmatpush1.msra.mxu0 0.0
    %185 = vmatprep.subr.mxu0 0.0
    %186 = vmatpush1.msra.mxu0 0.0
    %187 = vmatprep.subr.mxu0 0.0
    %188 = vmatpush1.msra.mxu0 0.0
    %189 = vmatprep.subr.mxu0 0.0
    %190 = vmatpush1.msra.mxu0 0.0
    %191 = vmatprep.subr.mxu0 0.0
    %192 = vmatpush1.msra.mxu0 0.0
    %193 = vmatprep.subr.mxu0 0.0
    %194 = vmatpush1.msra.mxu0 0.0
    %195 = vmatprep.subr.mxu0 0.0
    %196 = vmatpush1.msra.mxu0 0.0
    %197 = vmatprep.subr.mxu0 0.0
    %198 = vmatpush1.msra.mxu0 0.0
    %199 = vmatprep.subr.mxu0 0.0
    %200 = vmatpush1.msra.mxu0 0.0
    %201 = vmatprep.subr.mxu0 0.0
    %202 = vmatpush1.msra.mxu0 0.0
    %203 = vmatprep.subr.mxu0 0.0
    %204 = vmatpush1.msra.mxu0 0.0
    %205 = vmatprep.subr.mxu0 0.0
    %206 = vmatpush1.msra.mxu0 0.0
    %207 = vmatprep.subr.mxu0 0.0
    %208 = vmatpush1.msra.mxu0 %v167
    %209 = vmatprep.subr.mxu0 0.0
    %210 = vmatpush1.msra.mxu0 %v166
    %211 = vmatprep.subr.mxu0 0.0
    %212 = vmatpush2.msra.mxu0 0.0
    %213 = vmatprep.subr.mxu0 0.0
    %214 = vmatpush2.msra.mxu0 0.0
    %215 = vmatprep.subr.mxu0 0.0
    %216 = vmatpush2.msra.mxu0 0.0
    %217 = vmatprep.subr.mxu0 0.0
    %218 = vmatpush2.msra.mxu0 0.0
    %219 = vmatprep.subr.mxu0 0.0
    %220 = vmatpush2.msra.mxu0 0.0
    %221 = vmatprep.subr.mxu0 0.0
    %222 = vmatpush2.msra.mxu0 0.0
    %223 = vmatprep.subr.mxu0 0.0
    %224 = vmatpush2.msra.mxu0 0.0
    %225 = vmatprep.subr.mxu0 0.0
    %226 = vmatpush2.msra.mxu0 0.0
    %227 = vmatprep.subr.mxu0 0.0
    %228 = vmatpush2.msra.mxu0 0.0
    %229 = vmatprep.subr.mxu0 0.0
    %230 = vmatpush2.msra.mxu0 0.0
    %231 = vmatprep.subr.mxu0 0.0
    %232 = vmatpush2.msra.mxu0 0.0
    %233 = vmatprep.subr.mxu0 0.0
    %234 = vmatpush2.msra.mxu0 0.0
    %235 = vmatprep.subr.mxu0 0.0
    %236 = vmatpush2.msra.mxu0 0.0
    %237 = vmatprep.subr.mxu0 0.0
    %238 = vmatpush2.msra.mxu0 0.0
    %239 = vmatprep.subr.mxu0 0.0
    %240 = vmatpush2.msra.mxu0 0.0
    %241 = vmatprep.subr.mxu0 0.0
    %242 = vmatpush2.msra.mxu0 0.0
    %243 = vmatprep.mubr.f32.mxu0 0.0
    %244 = vmatmul.mubr.f32.gmra.mxu0 %v177
    %v245 = vpop.f32.mrf.mxu0
    %v246 = vadd.f32 %v173, %v245
    %v247 = vpop.f32.mrf.mxu0
    %248 = vdwg.mxu0
    %249 = vst [vmem:[#allocation2] sm:$0xf] %v246
    %v250 = vld [vmem:[%s0] sm:$0xff]
    %v251 = vld [vmem:[%s0 + $0x8] sm:$0xff]
    %v252 = vld [vmem:[%s1] sm:$0xff]
    %v253 = vld [vmem:[%s1 + $0x8] sm:$0xff]
    %v254 = vmul.f32 %v250, %v252
    %v255 = vmul.f32 %v251, %v253
    %v256 = vld [vmem:[%s7] sm:$0xff]
    %v257 = vld [vmem:[%s7 + $0x8] sm:$0xff]
    %v258 = vld [vmem:[%s7 + $0x10] sm:$0xff]
    %v259 = vld [vmem:[%s7 + $0x18] sm:$0xff]
    %v260 = vld [vmem:[%s8] sm:$0x1]
    %v262 = vlaneseq
    %v263 = vshrl.u32 %v262, 7
    %v264 = vsub.s32 0, %v263
    %v265 = vrot.slane %v260, %v264
    %v268 = vsel %vm91, %v254, 0
    %v271 = vsel %vm91, %v255, 0
    %273 = vmatprep.subr.mxu0 0.0
    %274 = vmatpush1.msra.mxu0 0.0
    %275 = vmatprep.subr.mxu0 0.0
    %276 = vmatpush1.msra.mxu0 0.0
    %277 = vmatprep.subr.mxu0 0.0
    %278 = vmatpush1.msra.mxu0 0.0
    %279 = vmatprep.subr.mxu0 0.0
    %280 = vmatpush1.msra.mxu0 0.0
    %281 = vmatprep.subr.mxu0 0.0
    %282 = vmatpush1.msra.mxu0 0.0
    %283 = vmatprep.subr.mxu0 0.0
    %284 = vmatpush1.msra.mxu0 0.0
    %285 = vmatprep.subr.mxu0 0.0
    %286 = vmatpush1.msra.mxu0 0.0
    %287 = vmatprep.subr.mxu0 0.0
    %288 = vmatpush1.msra.mxu0 0.0
    %289 = vmatprep.subr.mxu0 0.0
    %290 = vmatpush1.msra.mxu0 0.0
    %291 = vmatprep.subr.mxu0 0.0
    %292 = vmatpush1.msra.mxu0 0.0
    %293 = vmatprep.subr.mxu0 0.0
    %294 = vmatpush1.msra.mxu0 0.0
    %295 = vmatprep.subr.mxu0 0.0
    %296 = vmatpush1.msra.mxu0 0.0
    %297 = vmatprep.subr.mxu0 0.0
    %298 = vmatpush1.msra.mxu0 %v259
    %299 = vmatprep.subr.mxu0 0.0
    %300 = vmatpush1.msra.mxu0 %v258
    %301 = vmatprep.subr.mxu0 0.0
    %302 = vmatpush1.msra.mxu0 %v257
    %303 = vmatprep.subr.mxu0 0.0
    %304 = vmatpush1.msra.mxu0 %v256
    %305 = vmatprep.subr.mxu0 0.0
    %306 = vmatpush2.msra.mxu0 0.0
    %307 = vmatprep.subr.mxu0 0.0
    %308 = vmatpush2.msra.mxu0 0.0
    %309 = vmatprep.subr.mxu0 0.0
    %310 = vmatpush2.msra.mxu0 0.0
    %311 = vmatprep.subr.mxu0 0.0
    %312 = vmatpush2.msra.mxu0 0.0
    %313 = vmatprep.subr.mxu0 0.0
    %314 = vmatpush2.msra.mxu0 0.0
    %315 = vmatprep.subr.mxu0 0.0
    %316 = vmatpush2.msra.mxu0 0.0
    %317 = vmatprep.subr.mxu0 0.0
    %318 = vmatpush2.msra.mxu0 0.0
    %319 = vmatprep.subr.mxu0 0.0
    %320 = vmatpush2.msra.mxu0 0.0
    %321 = vmatprep.subr.mxu0 0.0
    %322 = vmatpush2.msra.mxu0 0.0
    %323 = vmatprep.subr.mxu0 0.0
    %324 = vmatpush2.msra.mxu0 0.0
    %325 = vmatprep.subr.mxu0 0.0
    %326 = vmatpush2.msra.mxu0 0.0
    %327 = vmatprep.subr.mxu0 0.0
    %328 = vmatpush2.msra.mxu0 0.0
    %329 = vmatprep.subr.mxu0 0.0
    %330 = vmatpush2.msra.mxu0 0.0
    %331 = vmatprep.subr.mxu0 0.0
    %332 = vmatpush2.msra.mxu0 0.0
    %333 = vmatprep.subr.mxu0 0.0
    %334 = vmatpush2.msra.mxu0 0.0
    %335 = vmatprep.subr.mxu0 0.0
    %336 = vmatpush2.msra.mxu0 0.0
    %337 = vmatprep.mubr.f32.mxu0 0.0
    %338 = vmatmul.mubr.f32.gmra.mxu0 %v268
    %v339 = vpop.f32.mrf.mxu0
    %v340 = vadd.f32 %v265, %v339
    %v341 = vpop.f32.mrf.mxu0
    %342 = vmatprep.mubr.f32.mxu0 0.0
    %343 = vmatmul.mubr.f32.gmra.mxu0 %v271
    %v344 = vpop.f32.mrf.mxu0
    %v345 = vadd.f32 %v265, %v344
    %v346 = vpop.f32.mrf.mxu0
    %347 = vdwg.mxu0
    %350 = vrot.lane.b32.xlu0 %v340, 120
    %v351 = vpop.permute.xlu0 %350
    %352 = vrot.lane.b32.xlu0 %v345, 120
    %v353 = vpop.permute.xlu0 %352
    %354 = vrot.lane.b32.xlu0 %v340, 112
    %v355 = vpop.permute.xlu0 %354
    %356 = vrot.lane.b32.xlu0 %v345, 112
    %v357 = vpop.permute.xlu0 %356
    %358 = vrot.lane.b32.xlu0 %v340, 104
    %v359 = vpop.permute.xlu0 %358
    %360 = vrot.lane.b32.xlu0 %v345, 104
    %v361 = vpop.permute.xlu0 %360
    %362 = vrot.lane.b32.xlu0 %v340, 96
    %v363 = vpop.permute.xlu0 %362
    %vm364 = vcmask 64512
    %v365 = vsel %vm364, %v340, 0
    %v367 = vsel %vm364, %v363, 0
    %369 = vmatprep.subr.mxu0 0.0
    %370 = vmatpush1.xpose.msra.mxu0 0.0
    %371 = vmatprep.subr.mxu0 0.0
    %372 = vmatpush1.xpose.msra.mxu0 0.0
    %373 = vmatprep.subr.mxu0 0.0
    %374 = vmatpush1.xpose.msra.mxu0 0.0
    %375 = vmatprep.subr.mxu0 0.0
    %376 = vmatpush1.xpose.msra.mxu0 0.0
    %377 = vmatprep.subr.mxu0 0.0
    %378 = vmatpush1.xpose.msra.mxu0 0.0
    %379 = vmatprep.subr.mxu0 0.0
    %380 = vmatpush1.xpose.msra.mxu0 0.0
    %381 = vmatprep.subr.mxu0 0.0
    %382 = vmatpush1.xpose.msra.mxu0 0.0
    %383 = vmatprep.subr.mxu0 0.0
    %384 = vmatpush1.xpose.msra.mxu0 0.0
    %385 = vmatprep.subr.mxu0 0.0
    %386 = vmatpush1.xpose.msra.mxu0 0.0
    %387 = vmatprep.subr.mxu0 0.0
    %388 = vmatpush1.xpose.msra.mxu0 0.0
    %389 = vmatprep.subr.mxu0 0.0
    %390 = vmatpush1.xpose.msra.mxu0 0.0
    %391 = vmatprep.subr.mxu0 0.0
    %392 = vmatpush1.xpose.msra.mxu0 0.0
    %393 = vmatprep.subr.mxu0 0.0
    %394 = vmatpush1.xpose.msra.mxu0 0.0
    %395 = vmatprep.subr.mxu0 0.0
    %396 = vmatpush1.xpose.msra.mxu0 0.0
    %397 = vmatprep.subr.mxu0 0.0
    %398 = vmatpush1.xpose.msra.mxu0 0.0
    %399 = vmatprep.subr.mxu0 0.0
    %400 = vmatpush1.xpose.msra.mxu0 %v367
    %401 = vmatprep.subr.mxu0 0.0
    %402 = vmatpush2.xpose.msra.mxu0 0.0
    %403 = vmatprep.subr.mxu0 0.0
    %404 = vmatpush2.xpose.msra.mxu0 0.0
    %405 = vmatprep.subr.mxu0 0.0
    %406 = vmatpush2.xpose.msra.mxu0 0.0
    %407 = vmatprep.subr.mxu0 0.0
    %408 = vmatpush2.xpose.msra.mxu0 0.0
    %409 = vmatprep.subr.mxu0 0.0
    %410 = vmatpush2.xpose.msra.mxu0 0.0
    %411 = vmatprep.subr.mxu0 0.0
    %412 = vmatpush2.xpose.msra.mxu0 0.0
    %413 = vmatprep.subr.mxu0 0.0
    %414 = vmatpush2.xpose.msra.mxu0 0.0
    %415 = vmatprep.subr.mxu0 0.0
    %416 = vmatpush2.xpose.msra.mxu0 0.0
    %417 = vmatprep.subr.mxu0 0.0
    %418 = vmatpush2.xpose.msra.mxu0 0.0
    %419 = vmatprep.subr.mxu0 0.0
    %420 = vmatpush2.xpose.msra.mxu0 0.0
    %421 = vmatprep.subr.mxu0 0.0
    %422 = vmatpush2.xpose.msra.mxu0 0.0
    %423 = vmatprep.subr.mxu0 0.0
    %424 = vmatpush2.xpose.msra.mxu0 0.0
    %425 = vmatprep.subr.mxu0 0.0
    %426 = vmatpush2.xpose.msra.mxu0 0.0
    %427 = vmatprep.subr.mxu0 0.0
    %428 = vmatpush2.xpose.msra.mxu0 0.0
    %429 = vmatprep.subr.mxu0 0.0
    %430 = vmatpush2.xpose.msra.mxu0 0.0
    %431 = vmatprep.subr.mxu0 0.0
    %432 = vmatpush2.xpose.msra.mxu0 0.0
    %433 = vmatprep.mubr.f32.mxu0 0.0
    %434 = vmatmul.mubr.f32.gmra.mxu0 %v365
    %v435 = vpop.f32.mrf.mxu0
    %v436 = vadd.f32 0.0, %v435
    %v437 = vpop.f32.mrf.mxu0
    %438 = vdwg.mxu0
    %439 = vrot.lane.b32.xlu0 %v345, 96
    %v440 = vpop.permute.xlu0 %439
    %v441 = vsel %vm364, %v345, 0
    %v443 = vsel %vm364, %v440, 0
    %445 = vmatprep.subr.mxu0 0.0
    %446 = vmatpush1.xpose.msra.mxu0 0.0
    %447 = vmatprep.subr.mxu0 0.0
    %448 = vmatpush1.xpose.msra.mxu0 0.0
    %449 = vmatprep.subr.mxu0 0.0
    %450 = vmatpush1.xpose.msra.mxu0 0.0
    %451 = vmatprep.subr.mxu0 0.0
    %452 = vmatpush1.xpose.msra.mxu0 0.0
    %453 = vmatprep.subr.mxu0 0.0
    %454 = vmatpush1.xpose.msra.mxu0 0.0
    %455 = vmatprep.subr.mxu0 0.0
    %456 = vmatpush1.xpose.msra.mxu0 0.0
    %457 = vmatprep.subr.mxu0 0.0
    %458 = vmatpush1.xpose.msra.mxu0 0.0
    %459 = vmatprep.subr.mxu0 0.0
    %460 = vmatpush1.xpose.msra.mxu0 0.0
    %461 = vmatprep.subr.mxu0 0.0
    %462 = vmatpush1.xpose.msra.mxu0 0.0
    %463 = vmatprep.subr.mxu0 0.0
    %464 = vmatpush1.xpose.msra.mxu0 0.0
    %465 = vmatprep.subr.mxu0 0.0
    %466 = vmatpush1.xpose.msra.mxu0 0.0
    %467 = vmatprep.subr.mxu0 0.0
    %468 = vmatpush1.xpose.msra.mxu0 0.0
    %469 = vmatprep.subr.mxu0 0.0
    %470 = vmatpush1.xpose.msra.mxu0 0.0
    %471 = vmatprep.subr.mxu0 0.0
    %472 = vmatpush1.xpose.msra.mxu0 0.0
    %473 = vmatprep.subr.mxu0 0.0
    %474 = vmatpush1.xpose.msra.mxu0 0.0
    %475 = vmatprep.subr.mxu0 0.0
    %476 = vmatpush1.xpose.msra.mxu0 %v443
    %477 = vmatprep.subr.mxu0 0.0
    %478 = vmatpush2.xpose.msra.mxu0 0.0
    %479 = vmatprep.subr.mxu0 0.0
    %480 = vmatpush2.xpose.msra.mxu0 0.0
    %481 = vmatprep.subr.mxu0 0.0
    %482 = vmatpush2.xpose.msra.mxu0 0.0
    %483 = vmatprep.subr.mxu0 0.0
    %484 = vmatpush2.xpose.msra.mxu0 0.0
    %485 = vmatprep.subr.mxu0 0.0
    %486 = vmatpush2.xpose.msra.mxu0 0.0
    %487 = vmatprep.subr.mxu0 0.0
    %488 = vmatpush2.xpose.msra.mxu0 0.0
    %489 = vmatprep.subr.mxu0 0.0
    %490 = vmatpush2.xpose.msra.mxu0 0.0
    %491 = vmatprep.subr.mxu0 0.0
    %492 = vmatpush2.xpose.msra.mxu0 0.0
    %493 = vmatprep.subr.mxu0 0.0
    %494 = vmatpush2.xpose.msra.mxu0 0.0
    %495 = vmatprep.subr.mxu0 0.0
    %496 = vmatpush2.xpose.msra.mxu0 0.0
    %497 = vmatprep.subr.mxu0 0.0
    %498 = vmatpush2.xpose.msra.mxu0 0.0
    %499 = vmatprep.subr.mxu0 0.0
    %500 = vmatpush2.xpose.msra.mxu0 0.0
    %501 = vmatprep.subr.mxu0 0.0
    %502 = vmatpush2.xpose.msra.mxu0 0.0
    %503 = vmatprep.subr.mxu0 0.0
    %504 = vmatpush2.xpose.msra.mxu0 0.0
    %505 = vmatprep.subr.mxu0 0.0
    %506 = vmatpush2.xpose.msra.mxu0 0.0
    %507 = vmatprep.subr.mxu0 0.0
    %508 = vmatpush2.xpose.msra.mxu0 0.0
    %509 = vmatprep.mubr.f32.mxu0 0.0
    %510 = vmatmul.mubr.f32.gmra.mxu0 %v441
    %v511 = vpop.f32.mrf.mxu0
    %v512 = vadd.f32 0.0, %v511
    %v513 = vpop.f32.mrf.mxu0
    %514 = vdwg.mxu0
    %515 = vrot.lane.b32.xlu0 %v351, 96
    %v516 = vpop.permute.xlu0 %515
    %v517 = vsel %vm364, %v351, 0
    %v519 = vsel %vm364, %v516, 0
    %521 = vmatprep.subr.mxu0 0.0
    %522 = vmatpush1.xpose.msra.mxu0 0.0
    %523 = vmatprep.subr.mxu0 0.0
    %524 = vmatpush1.xpose.msra.mxu0 0.0
    %525 = vmatprep.subr.mxu0 0.0
    %526 = vmatpush1.xpose.msra.mxu0 0.0
    %527 = vmatprep.subr.mxu0 0.0
    %528 = vmatpush1.xpose.msra.mxu0 0.0
    %529 = vmatprep.subr.mxu0 0.0
    %530 = vmatpush1.xpose.msra.mxu0 0.0
    %531 = vmatprep.subr.mxu0 0.0
    %532 = vmatpush1.xpose.msra.mxu0 0.0
    %533 = vmatprep.subr.mxu0 0.0
    %534 = vmatpush1.xpose.msra.mxu0 0.0
    %535 = vmatprep.subr.mxu0 0.0
    %536 = vmatpush1.xpose.msra.mxu0 0.0
    %537 = vmatprep.subr.mxu0 0.0
    %538 = vmatpush1.xpose.msra.mxu0 0.0
    %539 = vmatprep.subr.mxu0 0.0
    %540 = vmatpush1.xpose.msra.mxu0 0.0
    %541 = vmatprep.subr.mxu0 0.0
    %542 = vmatpush1.xpose.msra.mxu0 0.0
    %543 = vmatprep.subr.mxu0 0.0
    %544 = vmatpush1.xpose.msra.mxu0 0.0
    %545 = vmatprep.subr.mxu0 0.0
    %546 = vmatpush1.xpose.msra.mxu0 0.0
    %547 = vmatprep.subr.mxu0 0.0
    %548 = vmatpush1.xpose.msra.mxu0 0.0
    %549 = vmatprep.subr.mxu0 0.0
    %550 = vmatpush1.xpose.msra.mxu0 0.0
    %551 = vmatprep.subr.mxu0 0.0
    %552 = vmatpush1.xpose.msra.mxu0 %v519
    %553 = vmatprep.subr.mxu0 0.0
    %554 = vmatpush2.xpose.msra.mxu0 0.0
    %555 = vmatprep.subr.mxu0 0.0
    %556 = vmatpush2.xpose.msra.mxu0 0.0
    %557 = vmatprep.subr.mxu0 0.0
    %558 = vmatpush2.xpose.msra.mxu0 0.0
    %559 = vmatprep.subr.mxu0 0.0
    %560 = vmatpush2.xpose.msra.mxu0 0.0
    %561 = vmatprep.subr.mxu0 0.0
    %562 = vmatpush2.xpose.msra.mxu0 0.0
    %563 = vmatprep.subr.mxu0 0.0
    %564 = vmatpush2.xpose.msra.mxu0 0.0
    %565 = vmatprep.subr.mxu0 0.0
    %566 = vmatpush2.xpose.msra.mxu0 0.0
    %567 = vmatprep.subr.mxu0 0.0
    %568 = vmatpush2.xpose.msra.mxu0 0.0
    %569 = vmatprep.subr.mxu0 0.0
    %570 = vmatpush2.xpose.msra.mxu0 0.0
    %571 = vmatprep.subr.mxu0 0.0
    %572 = vmatpush2.xpose.msra.mxu0 0.0
    %573 = vmatprep.subr.mxu0 0.0
    %574 = vmatpush2.xpose.msra.mxu0 0.0
    %575 = vmatprep.subr.mxu0 0.0
    %576 = vmatpush2.xpose.msra.mxu0 0.0
    %577 = vmatprep.subr.mxu0 0.0
    %578 = vmatpush2.xpose.msra.mxu0 0.0
    %579 = vmatprep.subr.mxu0 0.0
    %580 = vmatpush2.xpose.msra.mxu0 0.0
    %581 = vmatprep.subr.mxu0 0.0
    %582 = vmatpush2.xpose.msra.mxu0 0.0
    %583 = vmatprep.subr.mxu0 0.0
    %584 = vmatpush2.xpose.msra.mxu0 0.0
    %585 = vmatprep.mubr.f32.mxu0 0.0
    %586 = vmatmul.mubr.f32.gmra.mxu0 %v517
    %v587 = vpop.f32.mrf.mxu0
    %v588 = vadd.f32 0.0, %v587
    %v589 = vpop.f32.mrf.mxu0
    %590 = vdwg.mxu0
    %591 = vrot.lane.b32.xlu0 %v353, 96
    %v592 = vpop.permute.xlu0 %591
    %v593 = vsel %vm364, %v353, 0
    %v595 = vsel %vm364, %v592, 0
    %597 = vmatprep.subr.mxu0 0.0
    %598 = vmatpush1.xpose.msra.mxu0 0.0
    %599 = vmatprep.subr.mxu0 0.0
    %600 = vmatpush1.xpose.msra.mxu0 0.0
    %601 = vmatprep.subr.mxu0 0.0
    %602 = vmatpush1.xpose.msra.mxu0 0.0
    %603 = vmatprep.subr.mxu0 0.0
    %604 = vmatpush1.xpose.msra.mxu0 0.0
    %605 = vmatprep.subr.mxu0 0.0
    %606 = vmatpush1.xpose.msra.mxu0 0.0
    %607 = vmatprep.subr.mxu0 0.0
    %608 = vmatpush1.xpose.msra.mxu0 0.0
    %609 = vmatprep.subr.mxu0 0.0
    %610 = vmatpush1.xpose.msra.mxu0 0.0
    %611 = vmatprep.subr.mxu0 0.0
    %612 = vmatpush1.xpose.msra.mxu0 0.0
    %613 = vmatprep.subr.mxu0 0.0
    %614 = vmatpush1.xpose.msra.mxu0 0.0
    %615 = vmatprep.subr.mxu0 0.0
    %616 = vmatpush1.xpose.msra.mxu0 0.0
    %617 = vmatprep.subr.mxu0 0.0
    %618 = vmatpush1.xpose.msra.mxu0 0.0
    %619 = vmatprep.subr.mxu0 0.0
    %620 = vmatpush1.xpose.msra.mxu0 0.0
    %621 = vmatprep.subr.mxu0 0.0
    %622 = vmatpush1.xpose.msra.mxu0 0.0
    %623 = vmatprep.subr.mxu0 0.0
    %624 = vmatpush1.xpose.msra.mxu0 0.0
    %625 = vmatprep.subr.mxu0 0.0
    %626 = vmatpush1.xpose.msra.mxu0 0.0
    %627 = vmatprep.subr.mxu0 0.0
    %628 = vmatpush1.xpose.msra.mxu0 %v595
    %629 = vmatprep.subr.mxu0 0.0
    %630 = vmatpush2.xpose.msra.mxu0 0.0
    %631 = vmatprep.subr.mxu0 0.0
    %632 = vmatpush2.xpose.msra.mxu0 0.0
    %633 = vmatprep.subr.mxu0 0.0
    %634 = vmatpush2.xpose.msra.mxu0 0.0
    %635 = vmatprep.subr.mxu0 0.0
    %636 = vmatpush2.xpose.msra.mxu0 0.0
    %637 = vmatprep.subr.mxu0 0.0
    %638 = vmatpush2.xpose.msra.mxu0 0.0
    %639 = vmatprep.subr.mxu0 0.0
    %640 = vmatpush2.xpose.msra.mxu0 0.0
    %641 = vmatprep.subr.mxu0 0.0
    %642 = vmatpush2.xpose.msra.mxu0 0.0
    %643 = vmatprep.subr.mxu0 0.0
    %644 = vmatpush2.xpose.msra.mxu0 0.0
    %645 = vmatprep.subr.mxu0 0.0
    %646 = vmatpush2.xpose.msra.mxu0 0.0
    %647 = vmatprep.subr.mxu0 0.0
    %648 = vmatpush2.xpose.msra.mxu0 0.0
    %649 = vmatprep.subr.mxu0 0.0
    %650 = vmatpush2.xpose.msra.mxu0 0.0
    %651 = vmatprep.subr.mxu0 0.0
    %652 = vmatpush2.xpose.msra.mxu0 0.0
    %653 = vmatprep.subr.mxu0 0.0
    %654 = vmatpush2.xpose.msra.mxu0 0.0
    %655 = vmatprep.subr.mxu0 0.0
    %656 = vmatpush2.xpose.msra.mxu0 0.0
    %657 = vmatprep.subr.mxu0 0.0
    %658 = vmatpush2.xpose.msra.mxu0 0.0
    %659 = vmatprep.subr.mxu0 0.0
    %660 = vmatpush2.xpose.msra.mxu0 0.0
    %661 = vmatprep.mubr.f32.mxu0 0.0
    %662 = vmatmul.mubr.f32.gmra.mxu0 %v593
    %v663 = vpop.f32.mrf.mxu0
    %v664 = vadd.f32 0.0, %v663
    %v665 = vpop.f32.mrf.mxu0
    %666 = vdwg.mxu0
    %667 = vrot.lane.b32.xlu0 %v355, 96
    %v668 = vpop.permute.xlu0 %667
    %v669 = vsel %vm364, %v355, 0
    %v671 = vsel %vm364, %v668, 0
    %673 = vmatprep.subr.mxu0 0.0
    %674 = vmatpush1.xpose.msra.mxu0 0.0
    %675 = vmatprep.subr.mxu0 0.0
    %676 = vmatpush1.xpose.msra.mxu0 0.0
    %677 = vmatprep.subr.mxu0 0.0
    %678 = vmatpush1.xpose.msra.mxu0 0.0
    %679 = vmatprep.subr.mxu0 0.0
    %680 = vmatpush1.xpose.msra.mxu0 0.0
    %681 = vmatprep.subr.mxu0 0.0
    %682 = vmatpush1.xpose.msra.mxu0 0.0
    %683 = vmatprep.subr.mxu0 0.0
    %684 = vmatpush1.xpose.msra.mxu0 0.0
    %685 = vmatprep.subr.mxu0 0.0
    %686 = vmatpush1.xpose.msra.mxu0 0.0
    %687 = vmatprep.subr.mxu0 0.0
    %688 = vmatpush1.xpose.msra.mxu0 0.0
    %689 = vmatprep.subr.mxu0 0.0
    %690 = vmatpush1.xpose.msra.mxu0 0.0
    %691 = vmatprep.subr.mxu0 0.0
    %692 = vmatpush1.xpose.msra.mxu0 0.0
    %693 = vmatprep.subr.mxu0 0.0
    %694 = vmatpush1.xpose.msra.mxu0 0.0
    %695 = vmatprep.subr.mxu0 0.0
    %696 = vmatpush1.xpose.msra.mxu0 0.0
    %697 = vmatprep.subr.mxu0 0.0
    %698 = vmatpush1.xpose.msra.mxu0 0.0
    %699 = vmatprep.subr.mxu0 0.0
    %700 = vmatpush1.xpose.msra.mxu0 0.0
    %701 = vmatprep.subr.mxu0 0.0
    %702 = vmatpush1.xpose.msra.mxu0 0.0
    %703 = vmatprep.subr.mxu0 0.0
    %704 = vmatpush1.xpose.msra.mxu0 %v671
    %705 = vmatprep.subr.mxu0 0.0
    %706 = vmatpush2.xpose.msra.mxu0 0.0
    %707 = vmatprep.subr.mxu0 0.0
    %708 = vmatpush2.xpose.msra.mxu0 0.0
    %709 = vmatprep.subr.mxu0 0.0
    %710 = vmatpush2.xpose.msra.mxu0 0.0
    %711 = vmatprep.subr.mxu0 0.0
    %712 = vmatpush2.xpose.msra.mxu0 0.0
    %713 = vmatprep.subr.mxu0 0.0
    %714 = vmatpush2.xpose.msra.mxu0 0.0
    %715 = vmatprep.subr.mxu0 0.0
    %716 = vmatpush2.xpose.msra.mxu0 0.0
    %717 = vmatprep.subr.mxu0 0.0
    %718 = vmatpush2.xpose.msra.mxu0 0.0
    %719 = vmatprep.subr.mxu0 0.0
    %720 = vmatpush2.xpose.msra.mxu0 0.0
    %721 = vmatprep.subr.mxu0 0.0
    %722 = vmatpush2.xpose.msra.mxu0 0.0
    %723 = vmatprep.subr.mxu0 0.0
    %724 = vmatpush2.xpose.msra.mxu0 0.0
    %725 = vmatprep.subr.mxu0 0.0
    %726 = vmatpush2.xpose.msra.mxu0 0.0
    %727 = vmatprep.subr.mxu0 0.0
    %728 = vmatpush2.xpose.msra.mxu0 0.0
    %729 = vmatprep.subr.mxu0 0.0
    %730 = vmatpush2.xpose.msra.mxu0 0.0
    %731 = vmatprep.subr.mxu0 0.0
    %732 = vmatpush2.xpose.msra.mxu0 0.0
    %733 = vmatprep.subr.mxu0 0.0
    %734 = vmatpush2.xpose.msra.mxu0 0.0
    %735 = vmatprep.subr.mxu0 0.0
    %736 = vmatpush2.xpose.msra.mxu0 0.0
    %737 = vmatprep.mubr.f32.mxu0 0.0
    %738 = vmatmul.mubr.f32.gmra.mxu0 %v669
    %v739 = vpop.f32.mrf.mxu0
    %v740 = vadd.f32 0.0, %v739
    %v741 = vpop.f32.mrf.mxu0
    %742 = vdwg.mxu0
    %743 = vrot.lane.b32.xlu0 %v357, 96
    %v744 = vpop.permute.xlu0 %743
    %v745 = vsel %vm364, %v357, 0
    %v747 = vsel %vm364, %v744, 0
    %749 = vmatprep.subr.mxu0 0.0
    %750 = vmatpush1.xpose.msra.mxu0 0.0
    %751 = vmatprep.subr.mxu0 0.0
    %752 = vmatpush1.xpose.msra.mxu0 0.0
    %753 = vmatprep.subr.mxu0 0.0
    %754 = vmatpush1.xpose.msra.mxu0 0.0
    %755 = vmatprep.subr.mxu0 0.0
    %756 = vmatpush1.xpose.msra.mxu0 0.0
    %757 = vmatprep.subr.mxu0 0.0
    %758 = vmatpush1.xpose.msra.mxu0 0.0
    %759 = vmatprep.subr.mxu0 0.0
    %760 = vmatpush1.xpose.msra.mxu0 0.0
    %761 = vmatprep.subr.mxu0 0.0
    %762 = vmatpush1.xpose.msra.mxu0 0.0
    %763 = vmatprep.subr.mxu0 0.0
    %764 = vmatpush1.xpose.msra.mxu0 0.0
    %765 = vmatprep.subr.mxu0 0.0
    %766 = vmatpush1.xpose.msra.mxu0 0.0
    %767 = vmatprep.subr.mxu0 0.0
    %768 = vmatpush1.xpose.msra.mxu0 0.0
    %769 = vmatprep.subr.mxu0 0.0
    %770 = vmatpush1.xpose.msra.mxu0 0.0
    %771 = vmatprep.subr.mxu0 0.0
    %772 = vmatpush1.xpose.msra.mxu0 0.0
    %773 = vmatprep.subr.mxu0 0.0
    %774 = vmatpush1.xpose.msra.mxu0 0.0
    %775 = vmatprep.subr.mxu0 0.0
    %776 = vmatpush1.xpose.msra.mxu0 0.0
    %777 = vmatprep.subr.mxu0 0.0
    %778 = vmatpush1.xpose.msra.mxu0 0.0
    %779 = vmatprep.subr.mxu0 0.0
    %780 = vmatpush1.xpose.msra.mxu0 %v747
    %781 = vmatprep.subr.mxu0 0.0
    %782 = vmatpush2.xpose.msra.mxu0 0.0
    %783 = vmatprep.subr.mxu0 0.0
    %784 = vmatpush2.xpose.msra.mxu0 0.0
    %785 = vmatprep.subr.mxu0 0.0
    %786 = vmatpush2.xpose.msra.mxu0 0.0
    %787 = vmatprep.subr.mxu0 0.0
    %788 = vmatpush2.xpose.msra.mxu0 0.0
    %789 = vmatprep.subr.mxu0 0.0
    %790 = vmatpush2.xpose.msra.mxu0 0.0
    %791 = vmatprep.subr.mxu0 0.0
    %792 = vmatpush2.xpose.msra.mxu0 0.0
    %793 = vmatprep.subr.mxu0 0.0
    %794 = vmatpush2.xpose.msra.mxu0 0.0
    %795 = vmatprep.subr.mxu0 0.0
    %796 = vmatpush2.xpose.msra.mxu0 0.0
    %797 = vmatprep.subr.mxu0 0.0
    %798 = vmatpush2.xpose.msra.mxu0 0.0
    %799 = vmatprep.subr.mxu0 0.0
    %800 = vmatpush2.xpose.msra.mxu0 0.0
    %801 = vmatprep.subr.mxu0 0.0
    %802 = vmatpush2.xpose.msra.mxu0 0.0
    %803 = vmatprep.subr.mxu0 0.0
    %804 = vmatpush2.xpose.msra.mxu0 0.0
    %805 = vmatprep.subr.mxu0 0.0
    %806 = vmatpush2.xpose.msra.mxu0 0.0
    %807 = vmatprep.subr.mxu0 0.0
    %808 = vmatpush2.xpose.msra.mxu0 0.0
    %809 = vmatprep.subr.mxu0 0.0
    %810 = vmatpush2.xpose.msra.mxu0 0.0
    %811 = vmatprep.subr.mxu0 0.0
    %812 = vmatpush2.xpose.msra.mxu0 0.0
    %813 = vmatprep.mubr.f32.mxu0 0.0
    %814 = vmatmul.mubr.f32.gmra.mxu0 %v745
    %v815 = vpop.f32.mrf.mxu0
    %v816 = vadd.f32 0.0, %v815
    %v817 = vpop.f32.mrf.mxu0
    %818 = vdwg.mxu0
    %819 = vrot.lane.b32.xlu0 %v359, 96
    %v820 = vpop.permute.xlu0 %819
    %v821 = vsel %vm364, %v359, 0
    %v823 = vsel %vm364, %v820, 0
    %825 = vmatprep.subr.mxu0 0.0
    %826 = vmatpush1.xpose.msra.mxu0 0.0
    %827 = vmatprep.subr.mxu0 0.0
    %828 = vmatpush1.xpose.msra.mxu0 0.0
    %829 = vmatprep.subr.mxu0 0.0
    %830 = vmatpush1.xpose.msra.mxu0 0.0
    %831 = vmatprep.subr.mxu0 0.0
    %832 = vmatpush1.xpose.msra.mxu0 0.0
    %833 = vmatprep.subr.mxu0 0.0
    %834 = vmatpush1.xpose.msra.mxu0 0.0
    %835 = vmatprep.subr.mxu0 0.0
    %836 = vmatpush1.xpose.msra.mxu0 0.0
    %837 = vmatprep.subr.mxu0 0.0
    %838 = vmatpush1.xpose.msra.mxu0 0.0
    %839 = vmatprep.subr.mxu0 0.0
    %840 = vmatpush1.xpose.msra.mxu0 0.0
    %841 = vmatprep.subr.mxu0 0.0
    %842 = vmatpush1.xpose.msra.mxu0 0.0
    %843 = vmatprep.subr.mxu0 0.0
    %844 = vmatpush1.xpose.msra.mxu0 0.0
    %845 = vmatprep.subr.mxu0 0.0
    %846 = vmatpush1.xpose.msra.mxu0 0.0
    %847 = vmatprep.subr.mxu0 0.0
    %848 = vmatpush1.xpose.msra.mxu0 0.0
    %849 = vmatprep.subr.mxu0 0.0
    %850 = vmatpush1.xpose.msra.mxu0 0.0
    %851 = vmatprep.subr.mxu0 0.0
    %852 = vmatpush1.xpose.msra.mxu0 0.0
    %853 = vmatprep.subr.mxu0 0.0
    %854 = vmatpush1.xpose.msra.mxu0 0.0
    %855 = vmatprep.subr.mxu0 0.0
    %856 = vmatpush1.xpose.msra.mxu0 %v823
    %857 = vmatprep.subr.mxu0 0.0
    %858 = vmatpush2.xpose.msra.mxu0 0.0
    %859 = vmatprep.subr.mxu0 0.0
    %860 = vmatpush2.xpose.msra.mxu0 0.0
    %861 = vmatprep.subr.mxu0 0.0
    %862 = vmatpush2.xpose.msra.mxu0 0.0
    %863 = vmatprep.subr.mxu0 0.0
    %864 = vmatpush2.xpose.msra.mxu0 0.0
    %865 = vmatprep.subr.mxu0 0.0
    %866 = vmatpush2.xpose.msra.mxu0 0.0
    %867 = vmatprep.subr.mxu0 0.0
    %868 = vmatpush2.xpose.msra.mxu0 0.0
    %869 = vmatprep.subr.mxu0 0.0
    %870 = vmatpush2.xpose.msra.mxu0 0.0
    %871 = vmatprep.subr.mxu0 0.0
    %872 = vmatpush2.xpose.msra.mxu0 0.0
    %873 = vmatprep.subr.mxu0 0.0
    %874 = vmatpush2.xpose.msra.mxu0 0.0
    %875 = vmatprep.subr.mxu0 0.0
    %876 = vmatpush2.xpose.msra.mxu0 0.0
    %877 = vmatprep.subr.mxu0 0.0
    %878 = vmatpush2.xpose.msra.mxu0 0.0
    %879 = vmatprep.subr.mxu0 0.0
    %880 = vmatpush2.xpose.msra.mxu0 0.0
    %881 = vmatprep.subr.mxu0 0.0
    %882 = vmatpush2.xpose.msra.mxu0 0.0
    %883 = vmatprep.subr.mxu0 0.0
    %884 = vmatpush2.xpose.msra.mxu0 0.0
    %885 = vmatprep.subr.mxu0 0.0
    %886 = vmatpush2.xpose.msra.mxu0 0.0
    %887 = vmatprep.subr.mxu0 0.0
    %888 = vmatpush2.xpose.msra.mxu0 0.0
    %889 = vmatprep.mubr.f32.mxu0 0.0
    %890 = vmatmul.mubr.f32.gmra.mxu0 %v821
    %v891 = vpop.f32.mrf.mxu0
    %v892 = vadd.f32 0.0, %v891
    %v893 = vpop.f32.mrf.mxu0
    %894 = vdwg.mxu0
    %895 = vrot.lane.b32.xlu0 %v361, 96
    %v896 = vpop.permute.xlu0 %895
    %v897 = vsel %vm364, %v361, 0
    %v899 = vsel %vm364, %v896, 0
    %901 = vmatprep.subr.mxu0 0.0
    %902 = vmatpush1.xpose.msra.mxu0 0.0
    %903 = vmatprep.subr.mxu0 0.0
    %904 = vmatpush1.xpose.msra.mxu0 0.0
    %905 = vmatprep.subr.mxu0 0.0
    %906 = vmatpush1.xpose.msra.mxu0 0.0
    %907 = vmatprep.subr.mxu0 0.0
    %908 = vmatpush1.xpose.msra.mxu0 0.0
    %909 = vmatprep.subr.mxu0 0.0
    %910 = vmatpush1.xpose.msra.mxu0 0.0
    %911 = vmatprep.subr.mxu0 0.0
    %912 = vmatpush1.xpose.msra.mxu0 0.0
    %913 = vmatprep.subr.mxu0 0.0
    %914 = vmatpush1.xpose.msra.mxu0 0.0
    %915 = vmatprep.subr.mxu0 0.0
    %916 = vmatpush1.xpose.msra.mxu0 0.0
    %917 = vmatprep.subr.mxu0 0.0
    %918 = vmatpush1.xpose.msra.mxu0 0.0
    %919 = vmatprep.subr.mxu0 0.0
    %920 = vmatpush1.xpose.msra.mxu0 0.0
    %921 = vmatprep.subr.mxu0 0.0
    %922 = vmatpush1.xpose.msra.mxu0 0.0
    %923 = vmatprep.subr.mxu0 0.0
    %924 = vmatpush1.xpose.msra.mxu0 0.0
    %925 = vmatprep.subr.mxu0 0.0
    %926 = vmatpush1.xpose.msra.mxu0 0.0
    %927 = vmatprep.subr.mxu0 0.0
    %928 = vmatpush1.xpose.msra.mxu0 0.0
    %929 = vmatprep.subr.mxu0 0.0
    %930 = vmatpush1.xpose.msra.mxu0 0.0
    %931 = vmatprep.subr.mxu0 0.0
    %932 = vmatpush1.xpose.msra.mxu0 %v899
    %933 = vmatprep.subr.mxu0 0.0
    %934 = vmatpush2.xpose.msra.mxu0 0.0
    %935 = vmatprep.subr.mxu0 0.0
    %936 = vmatpush2.xpose.msra.mxu0 0.0
    %937 = vmatprep.subr.mxu0 0.0
    %938 = vmatpush2.xpose.msra.mxu0 0.0
    %939 = vmatprep.subr.mxu0 0.0
    %940 = vmatpush2.xpose.msra.mxu0 0.0
    %941 = vmatprep.subr.mxu0 0.0
    %942 = vmatpush2.xpose.msra.mxu0 0.0
    %943 = vmatprep.subr.mxu0 0.0
    %944 = vmatpush2.xpose.msra.mxu0 0.0
    %945 = vmatprep.subr.mxu0 0.0
    %946 = vmatpush2.xpose.msra.mxu0 0.0
    %947 = vmatprep.subr.mxu0 0.0
    %948 = vmatpush2.xpose.msra.mxu0 0.0
    %949 = vmatprep.subr.mxu0 0.0
    %950 = vmatpush2.xpose.msra.mxu0 0.0
    %951 = vmatprep.subr.mxu0 0.0
    %952 = vmatpush2.xpose.msra.mxu0 0.0
    %953 = vmatprep.subr.mxu0 0.0
    %954 = vmatpush2.xpose.msra.mxu0 0.0
    %955 = vmatprep.subr.mxu0 0.0
    %956 = vmatpush2.xpose.msra.mxu0 0.0
    %957 = vmatprep.subr.mxu0 0.0
    %958 = vmatpush2.xpose.msra.mxu0 0.0
    %959 = vmatprep.subr.mxu0 0.0
    %960 = vmatpush2.xpose.msra.mxu0 0.0
    %961 = vmatprep.subr.mxu0 0.0
    %962 = vmatpush2.xpose.msra.mxu0 0.0
    %963 = vmatprep.subr.mxu0 0.0
    %964 = vmatpush2.xpose.msra.mxu0 0.0
    %965 = vmatprep.mubr.f32.mxu0 0.0
    %966 = vmatmul.mubr.f32.gmra.mxu0 %v897
    %v967 = vpop.f32.mrf.mxu0
    %v968 = vadd.f32 0.0, %v967
    %v969 = vpop.f32.mrf.mxu0
    %970 = vdwg.mxu0
    %v971 = vmul.f32 %v436, 0.35355338
    %v972 = vmul.f32 %v512, 0.35355338
    %v973 = vmul.f32 %v588, 0.35355338
    %v974 = vmul.f32 %v664, 0.35355338
    %v975 = vmul.f32 %v740, 0.35355338
    %v976 = vmul.f32 %v816, 0.35355338
    %v977 = vmul.f32 %v892, 0.35355338
    %v978 = vmul.f32 %v968, 0.35355338
    %v979 = vsel %vm364, %v971, -inf
    %980 = vmax.xlane.f32.xlu0 %v979
    %v981 = vpop.xlane.xlu0 %980
    %v982 = vsel %vm364, %v972, -inf
    %983 = vmax.xlane.f32.xlu0 %v982
    %v984 = vpop.xlane.xlu0 %983
    %v985 = vsel %vm364, %v973, -inf
    %986 = vmax.xlane.f32.xlu0 %v985
    %v987 = vpop.xlane.xlu0 %986
    %v988 = vsel %vm364, %v974, -inf
    %989 = vmax.xlane.f32.xlu0 %v988
    %v990 = vpop.xlane.xlu0 %989
    %v991 = vsel %vm364, %v975, -inf
    %992 = vmax.xlane.f32.xlu0 %v991
    %v993 = vpop.xlane.xlu0 %992
    %v994 = vsel %vm364, %v976, -inf
    %995 = vmax.xlane.f32.xlu0 %v994
    %v996 = vpop.xlane.xlu0 %995
    %v997 = vsel %vm364, %v977, -inf
    %998 = vmax.xlane.f32.xlu0 %v997
    %v999 = vpop.xlane.xlu0 %998
    %v1000 = vsel %vm364, %v978, -inf
    %1001 = vmax.xlane.f32.xlu0 %v1000
    %v1002 = vpop.xlane.xlu0 %1001
    %v1003 = vsub.f32 %v971, %v981
    %v1004 = vsub.f32 %v972, %v984
    %v1005 = vsub.f32 %v973, %v987
    %v1006 = vsub.f32 %v974, %v990
    %v1007 = vsub.f32 %v975, %v993
    %v1008 = vsub.f32 %v976, %v996
    %v1009 = vsub.f32 %v977, %v999
    %v1010 = vsub.f32 %v978, %v1002
    %v1011 = vmul.f32 %v1003, 1.442695
    %v1012 = vpow.pop %v1011
    %v1013 = vmul.f32 %v1004, 1.442695
    %v1014 = vpow.pop %v1013
    %v1015 = vmul.f32 %v1005, 1.442695
    %v1016 = vpow.pop %v1015
    %v1017 = vmul.f32 %v1006, 1.442695
    %v1018 = vpow.pop %v1017
    %v1019 = vmul.f32 %v1007, 1.442695
    %v1020 = vpow.pop %v1019
    %v1021 = vmul.f32 %v1008, 1.442695
    %v1022 = vpow.pop %v1021
    %v1023 = vmul.f32 %v1009, 1.442695
    %v1024 = vpow.pop %v1023
    %v1025 = vmul.f32 %v1010, 1.442695
    %v1026 = vpow.pop %v1025
    %v1027 = vsel %vm364, %v1012, 0.0
    %1028 = vadd.xlane.f32.xlu0 %v1027
    %v1029 = vpop.xlane.xlu0 %1028
    %v1030 = vsel %vm364, %v1014, 0.0
    %1031 = vadd.xlane.f32.xlu0 %v1030
    %v1032 = vpop.xlane.xlu0 %1031
    %v1033 = vsel %vm364, %v1016, 0.0
    %1034 = vadd.xlane.f32.xlu0 %v1033
    %v1035 = vpop.xlane.xlu0 %1034
    %v1036 = vsel %vm364, %v1018, 0.0
    %1037 = vadd.xlane.f32.xlu0 %v1036
    %v1038 = vpop.xlane.xlu0 %1037
    %v1039 = vsel %vm364, %v1020, 0.0
    %1040 = vadd.xlane.f32.xlu0 %v1039
    %v1041 = vpop.xlane.xlu0 %1040
    %v1042 = vsel %vm364, %v1022, 0.0
    %1043 = vadd.xlane.f32.xlu0 %v1042
    %v1044 = vpop.xlane.xlu0 %1043
    %v1045 = vsel %vm364, %v1024, 0.0
    %1046 = vadd.xlane.f32.xlu0 %v1045
    %v1047 = vpop.xlane.xlu0 %1046
    %v1048 = vsel %vm364, %v1026, 0.0
    %1049 = vadd.xlane.f32.xlu0 %v1048
    %v1050 = vpop.xlane.xlu0 %1049
    %v1051 = vrcp.pop %v1029
    %v1052 = vrcp.pop %v1032
    %v1053 = vrcp.pop %v1035
    %v1054 = vrcp.pop %v1038
    %v1055 = vrcp.pop %v1041
    %v1056 = vrcp.pop %v1044
    %v1057 = vrcp.pop %v1047
    %v1058 = vrcp.pop %v1050
    %v1059 = vmul.f32 %v1012, %v1051
    %v1060 = vmul.f32 %v1014, %v1052
    %v1061 = vmul.f32 %v1016, %v1053
    %v1062 = vmul.f32 %v1018, %v1054
    %v1063 = vmul.f32 %v1020, %v1055
    %v1064 = vmul.f32 %v1022, %v1056
    %v1065 = vmul.f32 %v1024, %v1057
    %v1066 = vmul.f32 %v1026, %v1058
    %1067 = vrot.lane.b32.xlu0 %v340, 64
    %v1068 = vpop.permute.xlu0 %1067
    %v1071 = vsel %vm364, %v1059, 0
    %1073 = vmatprep.subr.mxu0 0.0
    %1074 = vmatpush1.msra.mxu0 0.0
    %1075 = vmatprep.subr.mxu0 0.0
    %1076 = vmatpush1.msra.mxu0 0.0
    %1077 = vmatprep.subr.mxu0 0.0
    %1078 = vmatpush1.msra.mxu0 0.0
    %1079 = vmatprep.subr.mxu0 0.0
    %1080 = vmatpush1.msra.mxu0 0.0
    %1081 = vmatprep.subr.mxu0 0.0
    %1082 = vmatpush1.msra.mxu0 0.0
    %1083 = vmatprep.subr.mxu0 0.0
    %1084 = vmatpush1.msra.mxu0 0.0
    %1085 = vmatprep.subr.mxu0 0.0
    %1086 = vmatpush1.msra.mxu0 0.0
    %1087 = vmatprep.subr.mxu0 0.0
    %1088 = vmatpush1.msra.mxu0 0.0
    %1089 = vmatprep.subr.mxu0 0.0
    %1090 = vmatpush1.msra.mxu0 0.0
    %1091 = vmatprep.subr.mxu0 0.0
    %1092 = vmatpush1.msra.mxu0 0.0
    %1093 = vmatprep.subr.mxu0 0.0
    %1094 = vmatpush1.msra.mxu0 0.0
    %1095 = vmatprep.subr.mxu0 0.0
    %1096 = vmatpush1.msra.mxu0 0.0
    %1097 = vmatprep.subr.mxu0 0.0
    %1098 = vmatpush1.msra.mxu0 0.0
    %1099 = vmatprep.subr.mxu0 0.0
    %1100 = vmatpush1.msra.mxu0 0.0
    %1101 = vmatprep.subr.mxu0 0.0
    %1102 = vmatpush1.msra.mxu0 0.0
    %1103 = vmatprep.subr.mxu0 0.0
    %1104 = vmatpush1.msra.mxu0 %v1068
    %1105 = vmatprep.subr.mxu0 0.0
    %1106 = vmatpush2.msra.mxu0 0.0
    %1107 = vmatprep.subr.mxu0 0.0
    %1108 = vmatpush2.msra.mxu0 0.0
    %1109 = vmatprep.subr.mxu0 0.0
    %1110 = vmatpush2.msra.mxu0 0.0
    %1111 = vmatprep.subr.mxu0 0.0
    %1112 = vmatpush2.msra.mxu0 0.0
    %1113 = vmatprep.subr.mxu0 0.0
    %1114 = vmatpush2.msra.mxu0 0.0
    %1115 = vmatprep.subr.mxu0 0.0
    %1116 = vmatpush2.msra.mxu0 0.0
    %1117 = vmatprep.subr.mxu0 0.0
    %1118 = vmatpush2.msra.mxu0 0.0
    %1119 = vmatprep.subr.mxu0 0.0
    %1120 = vmatpush2.msra.mxu0 0.0
    %1121 = vmatprep.subr.mxu0 0.0
    %1122 = vmatpush2.msra.mxu0 0.0
    %1123 = vmatprep.subr.mxu0 0.0
    %1124 = vmatpush2.msra.mxu0 0.0
    %1125 = vmatprep.subr.mxu0 0.0
    %1126 = vmatpush2.msra.mxu0 0.0
    %1127 = vmatprep.subr.mxu0 0.0
    %1128 = vmatpush2.msra.mxu0 0.0
    %1129 = vmatprep.subr.mxu0 0.0
    %1130 = vmatpush2.msra.mxu0 0.0
    %1131 = vmatprep.subr.mxu0 0.0
    %1132 = vmatpush2.msra.mxu0 0.0
    %1133 = vmatprep.subr.mxu0 0.0
    %1134 = vmatpush2.msra.mxu0 0.0
    %1135 = vmatprep.subr.mxu0 0.0
    %1136 = vmatpush2.msra.mxu0 0.0
    %1137 = vmatprep.mubr.f32.mxu0 0.0
    %1138 = vmatmul.mubr.f32.gmra.mxu0 %v1071
    %v1139 = vpop.f32.mrf.mxu0
    %v1140 = vadd.f32 0.0, %v1139
    %v1141 = vpop.f32.mrf.mxu0
    %1142 = vdwg.mxu0
    %1143 = vrot.lane.b32.xlu0 %v345, 64
    %v1144 = vpop.permute.xlu0 %1143
    %v1147 = vsel %vm364, %v1060, 0
    %1149 = vmatprep.subr.mxu0 0.0
    %1150 = vmatpush1.msra.mxu0 0.0
    %1151 = vmatprep.subr.mxu0 0.0
    %1152 = vmatpush1.msra.mxu0 0.0
    %1153 = vmatprep.subr.mxu0 0.0
    %1154 = vmatpush1.msra.mxu0 0.0
    %1155 = vmatprep.subr.mxu0 0.0
    %1156 = vmatpush1.msra.mxu0 0.0
    %1157 = vmatprep.subr.mxu0 0.0
    %1158 = vmatpush1.msra.mxu0 0.0
    %1159 = vmatprep.subr.mxu0 0.0
    %1160 = vmatpush1.msra.mxu0 0.0
    %1161 = vmatprep.subr.mxu0 0.0
    %1162 = vmatpush1.msra.mxu0 0.0
    %1163 = vmatprep.subr.mxu0 0.0
    %1164 = vmatpush1.msra.mxu0 0.0
    %1165 = vmatprep.subr.mxu0 0.0
    %1166 = vmatpush1.msra.mxu0 0.0
    %1167 = vmatprep.subr.mxu0 0.0
    %1168 = vmatpush1.msra.mxu0 0.0
    %1169 = vmatprep.subr.mxu0 0.0
    %1170 = vmatpush1.msra.mxu0 0.0
    %1171 = vmatprep.subr.mxu0 0.0
    %1172 = vmatpush1.msra.mxu0 0.0
    %1173 = vmatprep.subr.mxu0 0.0
    %1174 = vmatpush1.msra.mxu0 0.0
    %1175 = vmatprep.subr.mxu0 0.0
    %1176 = vmatpush1.msra.mxu0 0.0
    %1177 = vmatprep.subr.mxu0 0.0
    %1178 = vmatpush1.msra.mxu0 0.0
    %1179 = vmatprep.subr.mxu0 0.0
    %1180 = vmatpush1.msra.mxu0 %v1144
    %1181 = vmatprep.subr.mxu0 0.0
    %1182 = vmatpush2.msra.mxu0 0.0
    %1183 = vmatprep.subr.mxu0 0.0
    %1184 = vmatpush2.msra.mxu0 0.0
    %1185 = vmatprep.subr.mxu0 0.0
    %1186 = vmatpush2.msra.mxu0 0.0
    %1187 = vmatprep.subr.mxu0 0.0
    %1188 = vmatpush2.msra.mxu0 0.0
    %1189 = vmatprep.subr.mxu0 0.0
    %1190 = vmatpush2.msra.mxu0 0.0
    %1191 = vmatprep.subr.mxu0 0.0
    %1192 = vmatpush2.msra.mxu0 0.0
    %1193 = vmatprep.subr.mxu0 0.0
    %1194 = vmatpush2.msra.mxu0 0.0
    %1195 = vmatprep.subr.mxu0 0.0
    %1196 = vmatpush2.msra.mxu0 0.0
    %1197 = vmatprep.subr.mxu0 0.0
    %1198 = vmatpush2.msra.mxu0 0.0
    %1199 = vmatprep.subr.mxu0 0.0
    %1200 = vmatpush2.msra.mxu0 0.0
    %1201 = vmatprep.subr.mxu0 0.0
    %1202 = vmatpush2.msra.mxu0 0.0
    %1203 = vmatprep.subr.mxu0 0.0
    %1204 = vmatpush2.msra.mxu0 0.0
    %1205 = vmatprep.subr.mxu0 0.0
    %1206 = vmatpush2.msra.mxu0 0.0
    %1207 = vmatprep.subr.mxu0 0.0
    %1208 = vmatpush2.msra.mxu0 0.0
    %1209 = vmatprep.subr.mxu0 0.0
    %1210 = vmatpush2.msra.mxu0 0.0
    %1211 = vmatprep.subr.mxu0 0.0
    %1212 = vmatpush2.msra.mxu0 0.0
    %1213 = vmatprep.mubr.f32.mxu0 0.0
    %1214 = vmatmul.mubr.f32.gmra.mxu0 %v1147
    %v1215 = vpop.f32.mrf.mxu0
    %v1216 = vadd.f32 0.0, %v1215
    %v1217 = vpop.f32.mrf.mxu0
    %1218 = vdwg.mxu0
    %1219 = vrot.lane.b32.xlu0 %v351, 64
    %v1220 = vpop.permute.xlu0 %1219
    %v1223 = vsel %vm364, %v1061, 0
    %1225 = vmatprep.subr.mxu0 0.0
    %1226 = vmatpush1.msra.mxu0 0.0
    %1227 = vmatprep.subr.mxu0 0.0
    %1228 = vmatpush1.msra.mxu0 0.0
    %1229 = vmatprep.subr.mxu0 0.0
    %1230 = vmatpush1.msra.mxu0 0.0
    %1231 = vmatprep.subr.mxu0 0.0
    %1232 = vmatpush1.msra.mxu0 0.0
    %1233 = vmatprep.subr.mxu0 0.0
    %1234 = vmatpush1.msra.mxu0 0.0
    %1235 = vmatprep.subr.mxu0 0.0
    %1236 = vmatpush1.msra.mxu0 0.0
    %1237 = vmatprep.subr.mxu0 0.0
    %1238 = vmatpush1.msra.mxu0 0.0
    %1239 = vmatprep.subr.mxu0 0.0
    %1240 = vmatpush1.msra.mxu0 0.0
    %1241 = vmatprep.subr.mxu0 0.0
    %1242 = vmatpush1.msra.mxu0 0.0
    %1243 = vmatprep.subr.mxu0 0.0
    %1244 = vmatpush1.msra.mxu0 0.0
    %1245 = vmatprep.subr.mxu0 0.0
    %1246 = vmatpush1.msra.mxu0 0.0
    %1247 = vmatprep.subr.mxu0 0.0
    %1248 = vmatpush1.msra.mxu0 0.0
    %1249 = vmatprep.subr.mxu0 0.0
    %1250 = vmatpush1.msra.mxu0 0.0
    %1251 = vmatprep.subr.mxu0 0.0
    %1252 = vmatpush1.msra.mxu0 0.0
    %1253 = vmatprep.subr.mxu0 0.0
    %1254 = vmatpush1.msra.mxu0 0.0
    %1255 = vmatprep.subr.mxu0 0.0
    %1256 = vmatpush1.msra.mxu0 %v1220
    %1257 = vmatprep.subr.mxu0 0.0
    %1258 = vmatpush2.msra.mxu0 0.0
    %1259 = vmatprep.subr.mxu0 0.0
    %1260 = vmatpush2.msra.mxu0 0.0
    %1261 = vmatprep.subr.mxu0 0.0
    %1262 = vmatpush2.msra.mxu0 0.0
    %1263 = vmatprep.subr.mxu0 0.0
    %1264 = vmatpush2.msra.mxu0 0.0
    %1265 = vmatprep.subr.mxu0 0.0
    %1266 = vmatpush2.msra.mxu0 0.0
    %1267 = vmatprep.subr.mxu0 0.0
    %1268 = vmatpush2.msra.mxu0 0.0
    %1269 = vmatprep.subr.mxu0 0.0
    %1270 = vmatpush2.msra.mxu0 0.0
    %1271 = vmatprep.subr.mxu0 0.0
    %1272 = vmatpush2.msra.mxu0 0.0
    %1273 = vmatprep.subr.mxu0 0.0
    %1274 = vmatpush2.msra.mxu0 0.0
    %1275 = vmatprep.subr.mxu0 0.0
    %1276 = vmatpush2.msra.mxu0 0.0
    %1277 = vmatprep.subr.mxu0 0.0
    %1278 = vmatpush2.msra.mxu0 0.0
    %1279 = vmatprep.subr.mxu0 0.0
    %1280 = vmatpush2.msra.mxu0 0.0
    %1281 = vmatprep.subr.mxu0 0.0
    %1282 = vmatpush2.msra.mxu0 0.0
    %1283 = vmatprep.subr.mxu0 0.0
    %1284 = vmatpush2.msra.mxu0 0.0
    %1285 = vmatprep.subr.mxu0 0.0
    %1286 = vmatpush2.msra.mxu0 0.0
    %1287 = vmatprep.subr.mxu0 0.0
    %1288 = vmatpush2.msra.mxu0 0.0
    %1289 = vmatprep.mubr.f32.mxu0 0.0
    %1290 = vmatmul.mubr.f32.gmra.mxu0 %v1223
    %v1291 = vpop.f32.mrf.mxu0
    %v1292 = vadd.f32 0.0, %v1291
    %v1293 = vpop.f32.mrf.mxu0
    %1294 = vdwg.mxu0
    %1295 = vrot.lane.b32.xlu0 %v353, 64
    %v1296 = vpop.permute.xlu0 %1295
    %v1299 = vsel %vm364, %v1062, 0
    %1301 = vmatprep.subr.mxu0 0.0
    %1302 = vmatpush1.msra.mxu0 0.0
    %1303 = vmatprep.subr.mxu0 0.0
    %1304 = vmatpush1.msra.mxu0 0.0
    %1305 = vmatprep.subr.mxu0 0.0
    %1306 = vmatpush1.msra.mxu0 0.0
    %1307 = vmatprep.subr.mxu0 0.0
    %1308 = vmatpush1.msra.mxu0 0.0
    %1309 = vmatprep.subr.mxu0 0.0
    %1310 = vmatpush1.msra.mxu0 0.0
    %1311 = vmatprep.subr.mxu0 0.0
    %1312 = vmatpush1.msra.mxu0 0.0
    %1313 = vmatprep.subr.mxu0 0.0
    %1314 = vmatpush1.msra.mxu0 0.0
    %1315 = vmatprep.subr.mxu0 0.0
    %1316 = vmatpush1.msra.mxu0 0.0
    %1317 = vmatprep.subr.mxu0 0.0
    %1318 = vmatpush1.msra.mxu0 0.0
    %1319 = vmatprep.subr.mxu0 0.0
    %1320 = vmatpush1.msra.mxu0 0.0
    %1321 = vmatprep.subr.mxu0 0.0
    %1322 = vmatpush1.msra.mxu0 0.0
    %1323 = vmatprep.subr.mxu0 0.0
    %1324 = vmatpush1.msra.mxu0 0.0
    %1325 = vmatprep.subr.mxu0 0.0
    %1326 = vmatpush1.msra.mxu0 0.0
    %1327 = vmatprep.subr.mxu0 0.0
    %1328 = vmatpush1.msra.mxu0 0.0
    %1329 = vmatprep.subr.mxu0 0.0
    %1330 = vmatpush1.msra.mxu0 0.0
    %1331 = vmatprep.subr.mxu0 0.0
    %1332 = vmatpush1.msra.mxu0 %v1296
    %1333 = vmatprep.subr.mxu0 0.0
    %1334 = vmatpush2.msra.mxu0 0.0
    %1335 = vmatprep.subr.mxu0 0.0
    %1336 = vmatpush2.msra.mxu0 0.0
    %1337 = vmatprep.subr.mxu0 0.0
    %1338 = vmatpush2.msra.mxu0 0.0
    %1339 = vmatprep.subr.mxu0 0.0
    %1340 = vmatpush2.msra.mxu0 0.0
    %1341 = vmatprep.subr.mxu0 0.0
    %1342 = vmatpush2.msra.mxu0 0.0
    %1343 = vmatprep.subr.mxu0 0.0
    %1344 = vmatpush2.msra.mxu0 0.0
    %1345 = vmatprep.subr.mxu0 0.0
    %1346 = vmatpush2.msra.mxu0 0.0
    %1347 = vmatprep.subr.mxu0 0.0
    %1348 = vmatpush2.msra.mxu0 0.0
    %1349 = vmatprep.subr.mxu0 0.0
    %1350 = vmatpush2.msra.mxu0 0.0
    %1351 = vmatprep.subr.mxu0 0.0
    %1352 = vmatpush2.msra.mxu0 0.0
    %1353 = vmatprep.subr.mxu0 0.0
    %1354 = vmatpush2.msra.mxu0 0.0
    %1355 = vmatprep.subr.mxu0 0.0
    %1356 = vmatpush2.msra.mxu0 0.0
    %1357 = vmatprep.subr.mxu0 0.0
    %1358 = vmatpush2.msra.mxu0 0.0
    %1359 = vmatprep.subr.mxu0 0.0
    %1360 = vmatpush2.msra.mxu0 0.0
    %1361 = vmatprep.subr.mxu0 0.0
    %1362 = vmatpush2.msra.mxu0 0.0
    %1363 = vmatprep.subr.mxu0 0.0
    %1364 = vmatpush2.msra.mxu0 0.0
    %1365 = vmatprep.mubr.f32.mxu0 0.0
    %1366 = vmatmul.mubr.f32.gmra.mxu0 %v1299
    %v1367 = vpop.f32.mrf.mxu0
    %v1368 = vadd.f32 0.0, %v1367
    %v1369 = vpop.f32.mrf.mxu0
    %1370 = vdwg.mxu0
    %1371 = vrot.lane.b32.xlu0 %v355, 64
    %v1372 = vpop.permute.xlu0 %1371
    %v1375 = vsel %vm364, %v1063, 0
    %1377 = vmatprep.subr.mxu0 0.0
    %1378 = vmatpush1.msra.mxu0 0.0
    %1379 = vmatprep.subr.mxu0 0.0
    %1380 = vmatpush1.msra.mxu0 0.0
    %1381 = vmatprep.subr.mxu0 0.0
    %1382 = vmatpush1.msra.mxu0 0.0
    %1383 = vmatprep.subr.mxu0 0.0
    %1384 = vmatpush1.msra.mxu0 0.0
    %1385 = vmatprep.subr.mxu0 0.0
    %1386 = vmatpush1.msra.mxu0 0.0
    %1387 = vmatprep.subr.mxu0 0.0
    %1388 = vmatpush1.msra.mxu0 0.0
    %1389 = vmatprep.subr.mxu0 0.0
    %1390 = vmatpush1.msra.mxu0 0.0
    %1391 = vmatprep.subr.mxu0 0.0
    %1392 = vmatpush1.msra.mxu0 0.0
    %1393 = vmatprep.subr.mxu0 0.0
    %1394 = vmatpush1.msra.mxu0 0.0
    %1395 = vmatprep.subr.mxu0 0.0
    %1396 = vmatpush1.msra.mxu0 0.0
    %1397 = vmatprep.subr.mxu0 0.0
    %1398 = vmatpush1.msra.mxu0 0.0
    %1399 = vmatprep.subr.mxu0 0.0
    %1400 = vmatpush1.msra.mxu0 0.0
    %1401 = vmatprep.subr.mxu0 0.0
    %1402 = vmatpush1.msra.mxu0 0.0
    %1403 = vmatprep.subr.mxu0 0.0
    %1404 = vmatpush1.msra.mxu0 0.0
    %1405 = vmatprep.subr.mxu0 0.0
    %1406 = vmatpush1.msra.mxu0 0.0
    %1407 = vmatprep.subr.mxu0 0.0
    %1408 = vmatpush1.msra.mxu0 %v1372
    %1409 = vmatprep.subr.mxu0 0.0
    %1410 = vmatpush2.msra.mxu0 0.0
    %1411 = vmatprep.subr.mxu0 0.0
    %1412 = vmatpush2.msra.mxu0 0.0
    %1413 = vmatprep.subr.mxu0 0.0
    %1414 = vmatpush2.msra.mxu0 0.0
    %1415 = vmatprep.subr.mxu0 0.0
    %1416 = vmatpush2.msra.mxu0 0.0
    %1417 = vmatprep.subr.mxu0 0.0
    %1418 = vmatpush2.msra.mxu0 0.0
    %1419 = vmatprep.subr.mxu0 0.0
    %1420 = vmatpush2.msra.mxu0 0.0
    %1421 = vmatprep.subr.mxu0 0.0
    %1422 = vmatpush2.msra.mxu0 0.0
    %1423 = vmatprep.subr.mxu0 0.0
    %1424 = vmatpush2.msra.mxu0 0.0
    %1425 = vmatprep.subr.mxu0 0.0
    %1426 = vmatpush2.msra.mxu0 0.0
    %1427 = vmatprep.subr.mxu0 0.0
    %1428 = vmatpush2.msra.mxu0 0.0
    %1429 = vmatprep.subr.mxu0 0.0
    %1430 = vmatpush2.msra.mxu0 0.0
    %1431 = vmatprep.subr.mxu0 0.0
    %1432 = vmatpush2.msra.mxu0 0.0
    %1433 = vmatprep.subr.mxu0 0.0
    %1434 = vmatpush2.msra.mxu0 0.0
    %1435 = vmatprep.subr.mxu0 0.0
    %1436 = vmatpush2.msra.mxu0 0.0
    %1437 = vmatprep.subr.mxu0 0.0
    %1438 = vmatpush2.msra.mxu0 0.0
    %1439 = vmatprep.subr.mxu0 0.0
    %1440 = vmatpush2.msra.mxu0 0.0
    %1441 = vmatprep.mubr.f32.mxu0 0.0
    %1442 = vmatmul.mubr.f32.gmra.mxu0 %v1375
    %v1443 = vpop.f32.mrf.mxu0
    %v1444 = vadd.f32 0.0, %v1443
    %v1445 = vpop.f32.mrf.mxu0
    %1446 = vdwg.mxu0
    %1447 = vrot.lane.b32.xlu0 %v357, 64
    %v1448 = vpop.permute.xlu0 %1447
    %v1451 = vsel %vm364, %v1064, 0
    %1453 = vmatprep.subr.mxu0 0.0
    %1454 = vmatpush1.msra.mxu0 0.0
    %1455 = vmatprep.subr.mxu0 0.0
    %1456 = vmatpush1.msra.mxu0 0.0
    %1457 = vmatprep.subr.mxu0 0.0
    %1458 = vmatpush1.msra.mxu0 0.0
    %1459 = vmatprep.subr.mxu0 0.0
    %1460 = vmatpush1.msra.mxu0 0.0
    %1461 = vmatprep.subr.mxu0 0.0
    %1462 = vmatpush1.msra.mxu0 0.0
    %1463 = vmatprep.subr.mxu0 0.0
    %1464 = vmatpush1.msra.mxu0 0.0
    %1465 = vmatprep.subr.mxu0 0.0
    %1466 = vmatpush1.msra.mxu0 0.0
    %1467 = vmatprep.subr.mxu0 0.0
    %1468 = vmatpush1.msra.mxu0 0.0
    %1469 = vmatprep.subr.mxu0 0.0
    %1470 = vmatpush1.msra.mxu0 0.0
    %1471 = vmatprep.subr.mxu0 0.0
    %1472 = vmatpush1.msra.mxu0 0.0
    %1473 = vmatprep.subr.mxu0 0.0
    %1474 = vmatpush1.msra.mxu0 0.0
    %1475 = vmatprep.subr.mxu0 0.0
    %1476 = vmatpush1.msra.mxu0 0.0
    %1477 = vmatprep.subr.mxu0 0.0
    %1478 = vmatpush1.msra.mxu0 0.0
    %1479 = vmatprep.subr.mxu0 0.0
    %1480 = vmatpush1.msra.mxu0 0.0
    %1481 = vmatprep.subr.mxu0 0.0
    %1482 = vmatpush1.msra.mxu0 0.0
    %1483 = vmatprep.subr.mxu0 0.0
    %1484 = vmatpush1.msra.mxu0 %v1448
    %1485 = vmatprep.subr.mxu0 0.0
    %1486 = vmatpush2.msra.mxu0 0.0
    %1487 = vmatprep.subr.mxu0 0.0
    %1488 = vmatpush2.msra.mxu0 0.0
    %1489 = vmatprep.subr.mxu0 0.0
    %1490 = vmatpush2.msra.mxu0 0.0
    %1491 = vmatprep.subr.mxu0 0.0
    %1492 = vmatpush2.msra.mxu0 0.0
    %1493 = vmatprep.subr.mxu0 0.0
    %1494 = vmatpush2.msra.mxu0 0.0
    %1495 = vmatprep.subr.mxu0 0.0
    %1496 = vmatpush2.msra.mxu0 0.0
    %1497 = vmatprep.subr.mxu0 0.0
    %1498 = vmatpush2.msra.mxu0 0.0
    %1499 = vmatprep.subr.mxu0 0.0
    %1500 = vmatpush2.msra.mxu0 0.0
    %1501 = vmatprep.subr.mxu0 0.0
    %1502 = vmatpush2.msra.mxu0 0.0
    %1503 = vmatprep.subr.mxu0 0.0
    %1504 = vmatpush2.msra.mxu0 0.0
    %1505 = vmatprep.subr.mxu0 0.0
    %1506 = vmatpush2.msra.mxu0 0.0
    %1507 = vmatprep.subr.mxu0 0.0
    %1508 = vmatpush2.msra.mxu0 0.0
    %1509 = vmatprep.subr.mxu0 0.0
    %1510 = vmatpush2.msra.mxu0 0.0
    %1511 = vmatprep.subr.mxu0 0.0
    %1512 = vmatpush2.msra.mxu0 0.0
    %1513 = vmatprep.subr.mxu0 0.0
    %1514 = vmatpush2.msra.mxu0 0.0
    %1515 = vmatprep.subr.mxu0 0.0
    %1516 = vmatpush2.msra.mxu0 0.0
    %1517 = vmatprep.mubr.f32.mxu0 0.0
    %1518 = vmatmul.mubr.f32.gmra.mxu0 %v1451
    %v1519 = vpop.f32.mrf.mxu0
    %v1520 = vadd.f32 0.0, %v1519
    %v1521 = vpop.f32.mrf.mxu0
    %1522 = vdwg.mxu0
    %1523 = vrot.lane.b32.xlu0 %v359, 64
    %v1524 = vpop.permute.xlu0 %1523
    %v1527 = vsel %vm364, %v1065, 0
    %1529 = vmatprep.subr.mxu0 0.0
    %1530 = vmatpush1.msra.mxu0 0.0
    %1531 = vmatprep.subr.mxu0 0.0
    %1532 = vmatpush1.msra.mxu0 0.0
    %1533 = vmatprep.subr.mxu0 0.0
    %1534 = vmatpush1.msra.mxu0 0.0
    %1535 = vmatprep.subr.mxu0 0.0
    %1536 = vmatpush1.msra.mxu0 0.0
    %1537 = vmatprep.subr.mxu0 0.0
    %1538 = vmatpush1.msra.mxu0 0.0
    %1539 = vmatprep.subr.mxu0 0.0
    %1540 = vmatpush1.msra.mxu0 0.0
    %1541 = vmatprep.subr.mxu0 0.0
    %1542 = vmatpush1.msra.mxu0 0.0
    %1543 = vmatprep.subr.mxu0 0.0
    %1544 = vmatpush1.msra.mxu0 0.0
    %1545 = vmatprep.subr.mxu0 0.0
    %1546 = vmatpush1.msra.mxu0 0.0
    %1547 = vmatprep.subr.mxu0 0.0
    %1548 = vmatpush1.msra.mxu0 0.0
    %1549 = vmatprep.subr.mxu0 0.0
    %1550 = vmatpush1.msra.mxu0 0.0
    %1551 = vmatprep.subr.mxu0 0.0
    %1552 = vmatpush1.msra.mxu0 0.0
    %1553 = vmatprep.subr.mxu0 0.0
    %1554 = vmatpush1.msra.mxu0 0.0
    %1555 = vmatprep.subr.mxu0 0.0
    %1556 = vmatpush1.msra.mxu0 0.0
    %1557 = vmatprep.subr.mxu0 0.0
    %1558 = vmatpush1.msra.mxu0 0.0
    %1559 = vmatprep.subr.mxu0 0.0
    %1560 = vmatpush1.msra.mxu0 %v1524
    %1561 = vmatprep.subr.mxu0 0.0
    %1562 = vmatpush2.msra.mxu0 0.0
    %1563 = vmatprep.subr.mxu0 0.0
    %1564 = vmatpush2.msra.mxu0 0.0
    %1565 = vmatprep.subr.mxu0 0.0
    %1566 = vmatpush2.msra.mxu0 0.0
    %1567 = vmatprep.subr.mxu0 0.0
    %1568 = vmatpush2.msra.mxu0 0.0
    %1569 = vmatprep.subr.mxu0 0.0
    %1570 = vmatpush2.msra.mxu0 0.0
    %1571 = vmatprep.subr.mxu0 0.0
    %1572 = vmatpush2.msra.mxu0 0.0
    %1573 = vmatprep.subr.mxu0 0.0
    %1574 = vmatpush2.msra.mxu0 0.0
    %1575 = vmatprep.subr.mxu0 0.0
    %1576 = vmatpush2.msra.mxu0 0.0
    %1577 = vmatprep.subr.mxu0 0.0
    %1578 = vmatpush2.msra.mxu0 0.0
    %1579 = vmatprep.subr.mxu0 0.0
    %1580 = vmatpush2.msra.mxu0 0.0
    %1581 = vmatprep.subr.mxu0 0.0
    %1582 = vmatpush2.msra.mxu0 0.0
    %1583 = vmatprep.subr.mxu0 0.0
    %1584 = vmatpush2.msra.mxu0 0.0
    %1585 = vmatprep.subr.mxu0 0.0
    %1586 = vmatpush2.msra.mxu0 0.0
    %1587 = vmatprep.subr.mxu0 0.0
    %1588 = vmatpush2.msra.mxu0 0.0
    %1589 = vmatprep.subr.mxu0 0.0
    %1590 = vmatpush2.msra.mxu0 0.0
    %1591 = vmatprep.subr.mxu0 0.0
    %1592 = vmatpush2.msra.mxu0 0.0
    %1593 = vmatprep.mubr.f32.mxu0 0.0
    %1594 = vmatmul.mubr.f32.gmra.mxu0 %v1527
    %v1595 = vpop.f32.mrf.mxu0
    %v1596 = vadd.f32 0.0, %v1595
    %v1597 = vpop.f32.mrf.mxu0
    %1598 = vdwg.mxu0
    %1599 = vrot.lane.b32.xlu0 %v361, 64
    %v1600 = vpop.permute.xlu0 %1599
    %v1603 = vsel %vm364, %v1066, 0
    %1605 = vmatprep.subr.mxu0 0.0
    %1606 = vmatpush1.msra.mxu0 0.0
    %1607 = vmatprep.subr.mxu0 0.0
    %1608 = vmatpush1.msra.mxu0 0.0
    %1609 = vmatprep.subr.mxu0 0.0
    %1610 = vmatpush1.msra.mxu0 0.0
    %1611 = vmatprep.subr.mxu0 0.0
    %1612 = vmatpush1.msra.mxu0 0.0
    %1613 = vmatprep.subr.mxu0 0.0
    %1614 = vmatpush1.msra.mxu0 0.0
    %1615 = vmatprep.subr.mxu0 0.0
    %1616 = vmatpush1.msra.mxu0 0.0
    %1617 = vmatprep.subr.mxu0 0.0
    %1618 = vmatpush1.msra.mxu0 0.0
    %1619 = vmatprep.subr.mxu0 0.0
    %1620 = vmatpush1.msra.mxu0 0.0
    %1621 = vmatprep.subr.mxu0 0.0
    %1622 = vmatpush1.msra.mxu0 0.0
    %1623 = vmatprep.subr.mxu0 0.0
    %1624 = vmatpush1.msra.mxu0 0.0
    %1625 = vmatprep.subr.mxu0 0.0
    %1626 = vmatpush1.msra.mxu0 0.0
    %1627 = vmatprep.subr.mxu0 0.0
    %1628 = vmatpush1.msra.mxu0 0.0
    %1629 = vmatprep.subr.mxu0 0.0
    %1630 = vmatpush1.msra.mxu0 0.0
    %1631 = vmatprep.subr.mxu0 0.0
    %1632 = vmatpush1.msra.mxu0 0.0
    %1633 = vmatprep.subr.mxu0 0.0
    %1634 = vmatpush1.msra.mxu0 0.0
    %1635 = vmatprep.subr.mxu0 0.0
    %1636 = vmatpush1.msra.mxu0 %v1600
    %1637 = vmatprep.subr.mxu0 0.0
    %1638 = vmatpush2.msra.mxu0 0.0
    %1639 = vmatprep.subr.mxu0 0.0
    %1640 = vmatpush2.msra.mxu0 0.0
    %1641 = vmatprep.subr.mxu0 0.0
    %1642 = vmatpush2.msra.mxu0 0.0
    %1643 = vmatprep.subr.mxu0 0.0
    %1644 = vmatpush2.msra.mxu0 0.0
    %1645 = vmatprep.subr.mxu0 0.0
    %1646 = vmatpush2.msra.mxu0 0.0
    %1647 = vmatprep.subr.mxu0 0.0
    %1648 = vmatpush2.msra.mxu0 0.0
    %1649 = vmatprep.subr.mxu0 0.0
    %1650 = vmatpush2.msra.mxu0 0.0
    %1651 = vmatprep.subr.mxu0 0.0
    %1652 = vmatpush2.msra.mxu0 0.0
    %1653 = vmatprep.subr.mxu0 0.0
    %1654 = vmatpush2.msra.mxu0 0.0
    %1655 = vmatprep.subr.mxu0 0.0
    %1656 = vmatpush2.msra.mxu0 0.0
    %1657 = vmatprep.subr.mxu0 0.0
    %1658 = vmatpush2.msra.mxu0 0.0
    %1659 = vmatprep.subr.mxu0 0.0
    %1660 = vmatpush2.msra.mxu0 0.0
    %1661 = vmatprep.subr.mxu0 0.0
    %1662 = vmatpush2.msra.mxu0 0.0
    %1663 = vmatprep.subr.mxu0 0.0
    %1664 = vmatpush2.msra.mxu0 0.0
    %1665 = vmatprep.subr.mxu0 0.0
    %1666 = vmatpush2.msra.mxu0 0.0
    %1667 = vmatprep.subr.mxu0 0.0
    %1668 = vmatpush2.msra.mxu0 0.0
    %1669 = vmatprep.mubr.f32.mxu0 0.0
    %1670 = vmatmul.mubr.f32.gmra.mxu0 %v1603
    %v1671 = vpop.f32.mrf.mxu0
    %v1672 = vadd.f32 0.0, %v1671
    %v1673 = vpop.f32.mrf.mxu0
    %1674 = vdwg.mxu0
    %1677 = vrot.lane.b32.xlu0 %v1292, 8
    %v1678 = vpop.permute.xlu0 %1677
    %1679 = vrot.lane.b32.xlu0 %v1368, 8
    %v1680 = vpop.permute.xlu0 %1679
    %1685 = vrot.lane.b32.xlu0 %v1444, 16
    %v1686 = vpop.permute.xlu0 %1685
    %1687 = vrot.lane.b32.xlu0 %v1520, 16
    %v1688 = vpop.permute.xlu0 %1687
    %1693 = vrot.lane.b32.xlu0 %v1596, 24
    %v1694 = vpop.permute.xlu0 %1693
    %1695 = vrot.lane.b32.xlu0 %v1672, 24
    %v1696 = vpop.permute.xlu0 %1695
    %v1699 = vsel %vm364, %v1140, %v1678
    %v1700 = vsel %vm364, %v1216, %v1680
    %v1701 = vsel %vm175, %v1699, %v1686
    %v1702 = vsel %vm175, %v1700, %v1688
    %vm1703 = vcmask 195584
    %v1704 = vsel %vm1703, %v1701, %v1694
    %v1705 = vsel %vm1703, %v1702, %v1696
    %v1706 = vld [vmem:[%s9] sm:$0xff]
    %v1707 = vld [vmem:[%s9 + $0x8] sm:$0xff]
    %v1708 = vld [vmem:[%s9 + $0x10] sm:$0xff]
    %v1709 = vld [vmem:[%s9 + $0x18] sm:$0xff]
    %v1710 = vld [vmem:[%s10] sm:$0x1]
    %v1712 = vlaneseq
    %v1713 = vshrl.u32 %v1712, 7
    %v1714 = vsub.s32 0, %v1713
    %v1715 = vrot.slane %v1710, %v1714
    %v1718 = vsel %vm91, %v1704, 0
    %v1721 = vsel %vm91, %v1705, 0
    %1723 = vmatprep.subr.mxu0 0.0
    %1724 = vmatpush1.msra.mxu0 0.0
    %1725 = vmatprep.subr.mxu0 0.0
    %1726 = vmatpush1.msra.mxu0 0.0
    %1727 = vmatprep.subr.mxu0 0.0
    %1728 = vmatpush1.msra.mxu0 0.0
    %1729 = vmatprep.subr.mxu0 0.0
    %1730 = vmatpush1.msra.mxu0 0.0
    %1731 = vmatprep.subr.mxu0 0.0
    %1732 = vmatpush1.msra.mxu0 0.0
    %1733 = vmatprep.subr.mxu0 0.0
    %1734 = vmatpush1.msra.mxu0 0.0
    %1735 = vmatprep.subr.mxu0 0.0
    %1736 = vmatpush1.msra.mxu0 0.0
    %1737 = vmatprep.subr.mxu0 0.0
    %1738 = vmatpush1.msra.mxu0 0.0
    %1739 = vmatprep.subr.mxu0 0.0
    %1740 = vmatpush1.msra.mxu0 0.0
    %1741 = vmatprep.subr.mxu0 0.0
    %1742 = vmatpush1.msra.mxu0 0.0
    %1743 = vmatprep.subr.mxu0 0.0
    %1744 = vmatpush1.msra.mxu0 0.0
    %1745 = vmatprep.subr.mxu0 0.0
    %1746 = vmatpush1.msra.mxu0 0.0
    %1747 = vmatprep.subr.mxu0 0.0
    %1748 = vmatpush1.msra.mxu0 %v1709
    %1749 = vmatprep.subr.mxu0 0.0
    %1750 = vmatpush1.msra.mxu0 %v1708
    %1751 = vmatprep.subr.mxu0 0.0
    %1752 = vmatpush1.msra.mxu0 %v1707
    %1753 = vmatprep.subr.mxu0 0.0
    %1754 = vmatpush1.msra.mxu0 %v1706
    %1755 = vmatprep.subr.mxu0 0.0
    %1756 = vmatpush2.msra.mxu0 0.0
    %1757 = vmatprep.subr.mxu0 0.0
    %1758 = vmatpush2.msra.mxu0 0.0
    %1759 = vmatprep.subr.mxu0 0.0
    %1760 = vmatpush2.msra.mxu0 0.0
    %1761 = vmatprep.subr.mxu0 0.0
    %1762 = vmatpush2.msra.mxu0 0.0
    %1763 = vmatprep.subr.mxu0 0.0
    %1764 = vmatpush2.msra.mxu0 0.0
    %1765 = vmatprep.subr.mxu0 0.0
    %1766 = vmatpush2.msra.mxu0 0.0
    %1767 = vmatprep.subr.mxu0 0.0
    %1768 = vmatpush2.msra.mxu0 0.0
    %1769 = vmatprep.subr.mxu0 0.0
    %1770 = vmatpush2.msra.mxu0 0.0
    %1771 = vmatprep.subr.mxu0 0.0
    %1772 = vmatpush2.msra.mxu0 0.0
    %1773 = vmatprep.subr.mxu0 0.0
    %1774 = vmatpush2.msra.mxu0 0.0
    %1775 = vmatprep.subr.mxu0 0.0
    %1776 = vmatpush2.msra.mxu0 0.0
    %1777 = vmatprep.subr.mxu0 0.0
    %1778 = vmatpush2.msra.mxu0 0.0
    %1779 = vmatprep.subr.mxu0 0.0
    %1780 = vmatpush2.msra.mxu0 0.0
    %1781 = vmatprep.subr.mxu0 0.0
    %1782 = vmatpush2.msra.mxu0 0.0
    %1783 = vmatprep.subr.mxu0 0.0
    %1784 = vmatpush2.msra.mxu0 0.0
    %1785 = vmatprep.subr.mxu0 0.0
    %1786 = vmatpush2.msra.mxu0 0.0
    %1787 = vmatprep.mubr.f32.mxu0 0.0
    %1788 = vmatmul.mubr.f32.gmra.mxu0 %v1718
    %v1789 = vpop.f32.mrf.mxu0
    %v1790 = vadd.f32 %v1715, %v1789
    %v1791 = vpop.f32.mrf.mxu0
    %1792 = vmatprep.mubr.f32.mxu0 0.0
    %1793 = vmatmul.mubr.f32.gmra.mxu0 %v1721
    %v1794 = vpop.f32.mrf.mxu0
    %v1795 = vadd.f32 %v1715, %v1794
    %v1796 = vpop.f32.mrf.mxu0
    %1797 = vdwg.mxu0
    %v1798 = vadd.f32 %v254, %v1790
    %v1799 = vadd.f32 %v255, %v1795
    %v1800 = vld [vmem:[%s11] sm:$0x1]
    %v1801 = vld [vmem:[%s12] sm:$0x1]
    %v1802 = vsel %vm91, %v1798, 0.0
    %1803 = vadd.xlane.f32.xlu0 %v1802
    %v1804 = vpop.xlane.xlu0 %1803
    %v1805 = vsel %vm91, %v1799, 0.0
    %1806 = vadd.xlane.f32.xlu0 %v1805
    %v1807 = vpop.xlane.xlu0 %1806
    %v1808 = vrcp.pop 32.0
    %v1809 = vmul.f32 %v1804, %v1808
    %v1810 = vmul.f32 %v1807, %v1808
    %v1811 = vsub.f32 %v1798, %v1809
    %v1812 = vsub.f32 %v1799, %v1810
    %v1813 = vmul.f32 %v1811, %v1811
    %v1814 = vmul.f32 %v1812, %v1812
    %v1815 = vsel %vm91, %v1813, 0.0
    %1816 = vadd.xlane.f32.xlu0 %v1815
    %v1817 = vpop.xlane.xlu0 %1816
    %v1818 = vsel %vm91, %v1814, 0.0
    %1819 = vadd.xlane.f32.xlu0 %v1818
    %v1820 = vpop.xlane.xlu0 %1819
    %v1821 = vmul.f32 %v1817, %v1808
    %v1822 = vmul.f32 %v1820, %v1808
    %v1823 = vadd.f32 %v1821, 1e-05
    %v1824 = vadd.f32 %v1822, 1e-05
    %v1825 = vrsqrt.pop %v1823
    %v1826 = vrsqrt.pop %v1824
    %v1827 = vmul.f32 %v1811, %v1825
    %v1828 = vmul.f32 %v1812, %v1826
    %v1830 = vlaneseq
    %v1831 = vshrl.u32 %v1830, 7
    %v1832 = vsub.s32 0, %v1831
    %v1833 = vrot.slane %v1800, %v1832
    %v1835 = vmul.f32 %v1827, %v1833
    %v1836 = vmul.f32 %v1828, %v1833
    %v1838 = vlaneseq
    %v1839 = vshrl.u32 %v1838, 7
    %v1840 = vsub.s32 0, %v1839
    %v1841 = vrot.slane %v1801, %v1840
    %v1843 = vadd.f32 %v1835, %v1841
    %v1844 = vadd.f32 %v1836, %v1841
    %v1845 = vld [vmem:[%s13] sm:$0xff]
    %v1846 = vld [vmem:[%s13 + $0x8] sm:$0xff]
    %v1847 = vld [vmem:[%s13 + $0x10] sm:$0xff]
    %v1848 = vld [vmem:[%s13 + $0x18] sm:$0xff]
    %v1849 = vld [vmem:[%s13 + $0x20] sm:$0xff]
    %v1850 = vld [vmem:[%s13 + $0x28] sm:$0xff]
    %v1851 = vld [vmem:[%s13 + $0x30] sm:$0xff]
    %v1852 = vld [vmem:[%s13 + $0x38] sm:$0xff]
    %v1853 = vld [vmem:[%s13 + $0x40] sm:$0xff]
    %v1854 = vld [vmem:[%s13 + $0x48] sm:$0xff]
    %v1855 = vld [vmem:[%s13 + $0x50] sm:$0xff]
    %v1856 = vld [vmem:[%s13 + $0x58] sm:$0xff]
    %v1857 = vld [vmem:[%s13 + $0x60] sm:$0xff]
    %v1858 = vld [vmem:[%s13 + $0x68] sm:$0xff]
    %v1859 = vld [vmem:[%s13 + $0x70] sm:$0xff]
    %v1860 = vld [vmem:[%s13 + $0x78] sm:$0xff]
    %v1861 = vld [vmem:[%s13 + $0x80] sm:$0xff]
    %v1862 = vld [vmem:[%s13 + $0x88] sm:$0xff]
    %v1863 = vld [vmem:[%s13 + $0x90] sm:$0xff]
    %v1864 = vld [vmem:[%s13 + $0x98] sm:$0xff]
    %v1865 = vld [vmem:[%s13 + $0xa0] sm:$0xff]
    %v1866 = vld [vmem:[%s13 + $0xa8] sm:$0xff]
    %v1867 = vld [vmem:[%s13 + $0xb0] sm:$0xff]
    %v1868 = vld [vmem:[%s13 + $0xb8] sm:$0xff]
    %v1869 = vld [vmem:[%s13 + $0xc0] sm:$0xff]
    %v1870 = vld [vmem:[%s13 + $0xc8] sm:$0xff]
    %v1871 = vld [vmem:[%s13 + $0xd0] sm:$0xff]
    %v1872 = vld [vmem:[%s13 + $0xd8] sm:$0xff]
    %v1873 = vld [vmem:[%s13 + $0xe0] sm:$0xff]
    %v1874 = vld [vmem:[%s13 + $0xe8] sm:$0xff]
    %v1875 = vld [vmem:[%s13 + $0xf0] sm:$0xff]
    %v1876 = vld [vmem:[%s13 + $0xf8] sm:$0xff]
    %v1877 = vld [vmem:[%s13 + $0x100] sm:$0xff]
    %v1878 = vld [vmem:[%s13 + $0x108] sm:$0xff]
    %v1879 = vld [vmem:[%s13 + $0x110] sm:$0xff]
    %v1880 = vld [vmem:[%s13 + $0x118] sm:$0xff]
    %v1881 = vld [vmem:[%s13 + $0x120] sm:$0xff]
    %v1882 = vld [vmem:[%s13 + $0x128] sm:$0xff]
    %v1883 = vld [vmem:[%s13 + $0x130] sm:$0xff]
    %v1884 = vld [vmem:[%s13 + $0x138] sm:$0xff]
    %v1885 = vld [vmem:[%s13 + $0x140] sm:$0xff]
    %v1886 = vld [vmem:[%s13 + $0x148] sm:$0xff]
    %v1887 = vld [vmem:[%s13 + $0x150] sm:$0xff]
    %v1888 = vld [vmem:[%s13 + $0x158] sm:$0xff]
    %v1889 = vld [vmem:[%s13 + $0x160] sm:$0xff]
    %v1890 = vld [vmem:[%s13 + $0x168] sm:$0xff]
    %v1891 = vld [vmem:[%s13 + $0x170] sm:$0xff]
    %v1892 = vld [vmem:[%s13 + $0x178] sm:$0xff]
    %v1893 = vld [vmem:[%s13 + $0x180] sm:$0xff]
    %v1894 = vld [vmem:[%s13 + $0x188] sm:$0xff]
    %v1895 = vld [vmem:[%s13 + $0x190] sm:$0xff]
    %v1896 = vld [vmem:[%s13 + $0x198] sm:$0xff]
    %v1897 = vld [vmem:[%s13 + $0x1a0] sm:$0xff]
    %v1898 = vld [vmem:[%s13 + $0x1a8] sm:$0xff]
    %v1899 = vld [vmem:[%s13 + $0x1b0] sm:$0xff]
    %v1900 = vld [vmem:[%s13 + $0x1b8] sm:$0xff]
    %v1901 = vld [vmem:[%s13 + $0x1c0] sm:$0xff]
    %v1902 = vld [vmem:[%s13 + $0x1c8] sm:$0xff]
    %v1903 = vld [vmem:[%s13 + $0x1d0] sm:$0xff]
    %v1904 = vld [vmem:[%s13 + $0x1d8] sm:$0xff]
    %v1905 = vld [vmem:[%s13 + $0x1e0] sm:$0xff]
    %v1906 = vld [vmem:[%s13 + $0x1e8] sm:$0xff]
    %v1907 = vld [vmem:[%s13 + $0x1f0] sm:$0xff]
    %v1908 = vld [vmem:[%s13 + $0x1f8] sm:$0xff]
    %v1909 = vld [vmem:[%s14] sm:$0xff]
    %v1910 = vld [vmem:[%s14 + $0x8] sm:$0xff]
    %v1913 = vlaneseq
    %v1914 = vshrl.u32 %v1913, 7
    %v1915 = vsub.s32 0, %v1914
    %v1916 = vrot.slane %v1909, %v1915
    %v1917 = vlaneseq
    %v1918 = vshrl.u32 %v1917, 7
    %v1919 = vsub.s32 1, %v1918
    %v1920 = vrot.slane %v1909, %v1919
    %v1921 = vlaneseq
    %v1922 = vshrl.u32 %v1921, 7
    %v1923 = vsub.s32 2, %v1922
    %v1924 = vrot.slane %v1909, %v1923
    %v1925 = vlaneseq
    %v1926 = vshrl.u32 %v1925, 7
    %v1927 = vsub.s32 3, %v1926
    %v1928 = vrot.slane %v1909, %v1927
    %v1929 = vlaneseq
    %v1930 = vshrl.u32 %v1929, 7
    %v1931 = vsub.s32 4, %v1930
    %v1932 = vrot.slane %v1909, %v1931
    %v1933 = vlaneseq
    %v1934 = vshrl.u32 %v1933, 7
    %v1935 = vsub.s32 5, %v1934
    %v1936 = vrot.slane %v1909, %v1935
    %v1937 = vlaneseq
    %v1938 = vshrl.u32 %v1937, 7
    %v1939 = vsub.s32 6, %v1938
    %v1940 = vrot.slane %v1909, %v1939
    %v1941 = vlaneseq
    %v1942 = vshrl.u32 %v1941, 7
    %v1943 = vsub.s32 7, %v1942
    %v1944 = vrot.slane %v1909, %v1943
    %v1945 = vlaneseq
    %v1946 = vshrl.u32 %v1945, 7
    %v1947 = vsub.s32 0, %v1946
    %v1948 = vrot.slane %v1910, %v1947
    %v1949 = vlaneseq
    %v1950 = vshrl.u32 %v1949, 7
    %v1951 = vsub.s32 1, %v1950
    %v1952 = vrot.slane %v1910, %v1951
    %v1953 = vlaneseq
    %v1954 = vshrl.u32 %v1953, 7
    %v1955 = vsub.s32 2, %v1954
    %v1956 = vrot.slane %v1910, %v1955
    %v1957 = vlaneseq
    %v1958 = vshrl.u32 %v1957, 7
    %v1959 = vsub.s32 3, %v1958
    %v1960 = vrot.slane %v1910, %v1959
    %v1961 = vlaneseq
    %v1962 = vshrl.u32 %v1961, 7
    %v1963 = vsub.s32 4, %v1962
    %v1964 = vrot.slane %v1910, %v1963
    %v1965 = vlaneseq
    %v1966 = vshrl.u32 %v1965, 7
    %v1967 = vsub.s32 5, %v1966
    %v1968 = vrot.slane %v1910, %v1967
    %v1969 = vlaneseq
    %v1970 = vshrl.u32 %v1969, 7
    %v1971 = vsub.s32 6, %v1970
    %v1972 = vrot.slane %v1910, %v1971
    %v1973 = vlaneseq
    %v1974 = vshrl.u32 %v1973, 7
    %v1975 = vsub.s32 7, %v1974
    %v1976 = vrot.slane %v1910, %v1975
    %v1994 = vsel %vm91, %v1843, 0
    %v1997 = vsel %vm91, %v1844, 0
    %1999 = vmatprep.subr.mxu0 0.0
    %2000 = vmatpush1.msra.mxu0 0.0
    %2001 = vmatprep.subr.mxu0 0.0
    %2002 = vmatpush1.msra.mxu0 0.0
    %2003 = vmatprep.subr.mxu0 0.0
    %2004 = vmatpush1.msra.mxu0 0.0
    %2005 = vmatprep.subr.mxu0 0.0
    %2006 = vmatpush1.msra.mxu0 0.0
    %2007 = vmatprep.subr.mxu0 0.0
    %2008 = vmatpush1.msra.mxu0 0.0
    %2009 = vmatprep.subr.mxu0 0.0
    %2010 = vmatpush1.msra.mxu0 0.0
    %2011 = vmatprep.subr.mxu0 0.0
    %2012 = vmatpush1.msra.mxu0 0.0
    %2013 = vmatprep.subr.mxu0 0.0
    %2014 = vmatpush1.msra.mxu0 0.0
    %2015 = vmatprep.subr.mxu0 0.0
    %2016 = vmatpush1.msra.mxu0 0.0
    %2017 = vmatprep.subr.mxu0 0.0
    %2018 = vmatpush1.msra.mxu0 0.0
    %2019 = vmatprep.subr.mxu0 0.0
    %2020 = vmatpush1.msra.mxu0 0.0
    %2021 = vmatprep.subr.mxu0 0.0
    %2022 = vmatpush1.msra.mxu0 0.0
    %2023 = vmatprep.subr.mxu0 %v1894
    %2024 = vmatpush1.msra.mxu0 %v1893
    %2025 = vmatprep.subr.mxu0 %v1878
    %2026 = vmatpush1.msra.mxu0 %v1877
    %2027 = vmatprep.subr.mxu0 %v1862
    %2028 = vmatpush1.msra.mxu0 %v1861
    %2029 = vmatprep.subr.mxu0 %v1846
    %2030 = vmatpush1.msra.mxu0 %v1845
    %2031 = vmatprep.subr.mxu0 0.0
    %2032 = vmatpush2.msra.mxu0 0.0
    %2033 = vmatprep.subr.mxu0 0.0
    %2034 = vmatpush2.msra.mxu0 0.0
    %2035 = vmatprep.subr.mxu0 0.0
    %2036 = vmatpush2.msra.mxu0 0.0
    %2037 = vmatprep.subr.mxu0 0.0
    %2038 = vmatpush2.msra.mxu0 0.0
    %2039 = vmatprep.subr.mxu0 0.0
    %2040 = vmatpush2.msra.mxu0 0.0
    %2041 = vmatprep.subr.mxu0 0.0
    %2042 = vmatpush2.msra.mxu0 0.0
    %2043 = vmatprep.subr.mxu0 0.0
    %2044 = vmatpush2.msra.mxu0 0.0
    %2045 = vmatprep.subr.mxu0 0.0
    %2046 = vmatpush2.msra.mxu0 0.0
    %2047 = vmatprep.subr.mxu0 0.0
    %2048 = vmatpush2.msra.mxu0 0.0
    %2049 = vmatprep.subr.mxu0 0.0
    %2050 = vmatpush2.msra.mxu0 0.0
    %2051 = vmatprep.subr.mxu0 0.0
    %2052 = vmatpush2.msra.mxu0 0.0
    %2053 = vmatprep.subr.mxu0 0.0
    %2054 = vmatpush2.msra.mxu0 0.0
    %2055 = vmatprep.subr.mxu0 0.0
    %2056 = vmatpush2.msra.mxu0 0.0
    %2057 = vmatprep.subr.mxu0 0.0
    %2058 = vmatpush2.msra.mxu0 0.0
    %2059 = vmatprep.subr.mxu0 0.0
    %2060 = vmatpush2.msra.mxu0 0.0
    %2061 = vmatprep.subr.mxu0 0.0
    %2062 = vmatpush2.msra.mxu0 0.0
    %2063 = vmatprep.mubr.f32.mxu0 0.0
    %2064 = vmatmul.mubr.f32.gmra.mxu0 %v1994
    %v2065 = vpop.f32.mrf.mxu0
    %v2066 = vadd.f32 %v1916, %v2065
    %v2067 = vpop.f32.mrf.mxu0
    %v2068 = vadd.f32 %v1920, %v2067
    %2069 = vmatprep.mubr.f32.mxu0 0.0
    %2070 = vmatmul.mubr.f32.gmra.mxu0 %v1997
    %v2071 = vpop.f32.mrf.mxu0
    %v2072 = vadd.f32 %v1916, %v2071
    %v2073 = vpop.f32.mrf.mxu0
    %v2074 = vadd.f32 %v1920, %v2073
    %2075 = vdwg.mxu0
    %2076 = vmatprep.subr.mxu0 0.0
    %2077 = vmatpush1.msra.mxu0 0.0
    %2078 = vmatprep.subr.mxu0 0.0
    %2079 = vmatpush1.msra.mxu0 0.0
    %2080 = vmatprep.subr.mxu0 0.0
    %2081 = vmatpush1.msra.mxu0 0.0
    %2082 = vmatprep.subr.mxu0 0.0
    %2083 = vmatpush1.msra.mxu0 0.0
    %2084 = vmatprep.subr.mxu0 0.0
    %2085 = vmatpush1.msra.mxu0 0.0
    %2086 = vmatprep.subr.mxu0 0.0
    %2087 = vmatpush1.msra.mxu0 0.0
    %2088 = vmatprep.subr.mxu0 0.0
    %2089 = vmatpush1.msra.mxu0 0.0
    %2090 = vmatprep.subr.mxu0 0.0
    %2091 = vmatpush1.msra.mxu0 0.0
    %2092 = vmatprep.subr.mxu0 0.0
    %2093 = vmatpush1.msra.mxu0 0.0
    %2094 = vmatprep.subr.mxu0 0.0
    %2095 = vmatpush1.msra.mxu0 0.0
    %2096 = vmatprep.subr.mxu0 0.0
    %2097 = vmatpush1.msra.mxu0 0.0
    %2098 = vmatprep.subr.mxu0 0.0
    %2099 = vmatpush1.msra.mxu0 0.0
    %2100 = vmatprep.subr.mxu0 %v1896
    %2101 = vmatpush1.msra.mxu0 %v1895
    %2102 = vmatprep.subr.mxu0 %v1880
    %2103 = vmatpush1.msra.mxu0 %v1879
    %2104 = vmatprep.subr.mxu0 %v1864
    %2105 = vmatpush1.msra.mxu0 %v1863
    %2106 = vmatprep.subr.mxu0 %v1848
    %2107 = vmatpush1.msra.mxu0 %v1847
    %2108 = vmatprep.subr.mxu0 0.0
    %2109 = vmatpush2.msra.mxu0 0.0
    %2110 = vmatprep.subr.mxu0 0.0
    %2111 = vmatpush2.msra.mxu0 0.0
    %2112 = vmatprep.subr.mxu0 0.0
    %2113 = vmatpush2.msra.mxu0 0.0
    %2114 = vmatprep.subr.mxu0 0.0
    %2115 = vmatpush2.msra.mxu0 0.0
    %2116 = vmatprep.subr.mxu0 0.0
    %2117 = vmatpush2.msra.mxu0 0.0
    %2118 = vmatprep.subr.mxu0 0.0
    %2119 = vmatpush2.msra.mxu0 0.0
    %2120 = vmatprep.subr.mxu0 0.0
    %2121 = vmatpush2.msra.mxu0 0.0
    %2122 = vmatprep.subr.mxu0 0.0
    %2123 = vmatpush2.msra.mxu0 0.0
    %2124 = vmatprep.subr.mxu0 0.0
    %2125 = vmatpush2.msra.mxu0 0.0
    %2126 = vmatprep.subr.mxu0 0.0
    %2127 = vmatpush2.msra.mxu0 0.0
    %2128 = vmatprep.subr.mxu0 0.0
    %2129 = vmatpush2.msra.mxu0 0.0
    %2130 = vmatprep.subr.mxu0 0.0
    %2131 = vmatpush2.msra.mxu0 0.0
    %2132 = vmatprep.subr.mxu0 0.0
    %2133 = vmatpush2.msra.mxu0 0.0
    %2134 = vmatprep.subr.mxu0 0.0
    %2135 = vmatpush2.msra.mxu0 0.0
    %2136 = vmatprep.subr.mxu0 0.0
    %2137 = vmatpush2.msra.mxu0 0.0
    %2138 = vmatprep.subr.mxu0 0.0
    %2139 = vmatpush2.msra.mxu0 0.0
    %2140 = vmatprep.mubr.f32.mxu0 0.0
    %2141 = vmatmul.mubr.f32.gmra.mxu0 %v1994
    %v2142 = vpop.f32.mrf.mxu0
    %v2143 = vadd.f32 %v1924, %v2142
    %v2144 = vpop.f32.mrf.mxu0
    %v2145 = vadd.f32 %v1928, %v2144
    %2146 = vmatprep.mubr.f32.mxu0 0.0
    %2147 = vmatmul.mubr.f32.gmra.mxu0 %v1997
    %v2148 = vpop.f32.mrf.mxu0
    %v2149 = vadd.f32 %v1924, %v2148
    %v2150 = vpop.f32.mrf.mxu0
    %v2151 = vadd.f32 %v1928, %v2150
    %2152 = vdwg.mxu0
    %2153 = vmatprep.subr.mxu0 0.0
    %2154 = vmatpush1.msra.mxu0 0.0
    %2155 = vmatprep.subr.mxu0 0.0
    %2156 = vmatpush1.msra.mxu0 0.0
    %2157 = vmatprep.subr.mxu0 0.0
    %2158 = vmatpush1.msra.mxu0 0.0
    %2159 = vmatprep.subr.mxu0 0.0
    %2160 = vmatpush1.msra.mxu0 0.0
    %2161 = vmatprep.subr.mxu0 0.0
    %2162 = vmatpush1.msra.mxu0 0.0
    %2163 = vmatprep.subr.mxu0 0.0
    %2164 = vmatpush1.msra.mxu0 0.0
    %2165 = vmatprep.subr.mxu0 0.0
    %2166 = vmatpush1.msra.mxu0 0.0
    %2167 = vmatprep.subr.mxu0 0.0
    %2168 = vmatpush1.msra.mxu0 0.0
    %2169 = vmatprep.subr.mxu0 0.0
    %2170 = vmatpush1.msra.mxu0 0.0
    %2171 = vmatprep.subr.mxu0 0.0
    %2172 = vmatpush1.msra.mxu0 0.0
    %2173 = vmatprep.subr.mxu0 0.0
    %2174 = vmatpush1.msra.mxu0 0.0
    %2175 = vmatprep.subr.mxu0 0.0
    %2176 = vmatpush1.msra.mxu0 0.0
    %2177 = vmatprep.subr.mxu0 %v1898
    %2178 = vmatpush1.msra.mxu0 %v1897
    %2179 = vmatprep.subr.mxu0 %v1882
    %2180 = vmatpush1.msra.mxu0 %v1881
    %2181 = vmatprep.subr.mxu0 %v1866
    %2182 = vmatpush1.msra.mxu0 %v1865
    %2183 = vmatprep.subr.mxu0 %v1850
    %2184 = vmatpush1.msra.mxu0 %v1849
    %2185 = vmatprep.subr.mxu0 0.0
    %2186 = vmatpush2.msra.mxu0 0.0
    %2187 = vmatprep.subr.mxu0 0.0
    %2188 = vmatpush2.msra.mxu0 0.0
    %2189 = vmatprep.subr.mxu0 0.0
    %2190 = vmatpush2.msra.mxu0 0.0
    %2191 = vmatprep.subr.mxu0 0.0
    %2192 = vmatpush2.msra.mxu0 0.0
    %2193 = vmatprep.subr.mxu0 0.0
    %2194 = vmatpush2.msra.mxu0 0.0
    %2195 = vmatprep.subr.mxu0 0.0
    %2196 = vmatpush2.msra.mxu0 0.0
    %2197 = vmatprep.subr.mxu0 0.0
    %2198 = vmatpush2.msra.mxu0 0.0
    %2199 = vmatprep.subr.mxu0 0.0
    %2200 = vmatpush2.msra.mxu0 0.0
    %2201 = vmatprep.subr.mxu0 0.0
    %2202 = vmatpush2.msra.mxu0 0.0
    %2203 = vmatprep.subr.mxu0 0.0
    %2204 = vmatpush2.msra.mxu0 0.0
    %2205 = vmatprep.subr.mxu0 0.0
    %2206 = vmatpush2.msra.mxu0 0.0
    %2207 = vmatprep.subr.mxu0 0.0
    %2208 = vmatpush2.msra.mxu0 0.0
    %2209 = vmatprep.subr.mxu0 0.0
    %2210 = vmatpush2.msra.mxu0 0.0
    %2211 = vmatprep.subr.mxu0 0.0
    %2212 = vmatpush2.msra.mxu0 0.0
    %2213 = vmatprep.subr.mxu0 0.0
    %2214 = vmatpush2.msra.mxu0 0.0
    %2215 = vmatprep.subr.mxu0 0.0
    %2216 = vmatpush2.msra.mxu0 0.0
    %2217 = vmatprep.mubr.f32.mxu0 0.0
    %2218 = vmatmul.mubr.f32.gmra.mxu0 %v1994
    %v2219 = vpop.f32.mrf.mxu0
    %v2220 = vadd.f32 %v1932, %v2219
    %v2221 = vpop.f32.mrf.mxu0
    %v2222 = vadd.f32 %v1936, %v2221
    %2223 = vmatprep.mubr.f32.mxu0 0.0
    %2224 = vmatmul.mubr.f32.gmra.mxu0 %v1997
    %v2225 = vpop.f32.mrf.mxu0
    %v2226 = vadd.f32 %v1932, %v2225
    %v2227 = vpop.f32.mrf.mxu0
    %v2228 = vadd.f32 %v1936, %v2227
    %2229 = vdwg.mxu0
    %2230 = vmatprep.subr.mxu0 0.0
    %2231 = vmatpush1.msra.mxu0 0.0
    %2232 = vmatprep.subr.mxu0 0.0
    %2233 = vmatpush1.msra.mxu0 0.0
    %2234 = vmatprep.subr.mxu0 0.0
    %2235 = vmatpush1.msra.mxu0 0.0
    %2236 = vmatprep.subr.mxu0 0.0
    %2237 = vmatpush1.msra.mxu0 0.0
    %2238 = vmatprep.subr.mxu0 0.0
    %2239 = vmatpush1.msra.mxu0 0.0
    %2240 = vmatprep.subr.mxu0 0.0
    %2241 = vmatpush1.msra.mxu0 0.0
    %2242 = vmatprep.subr.mxu0 0.0
    %2243 = vmatpush1.msra.mxu0 0.0
    %2244 = vmatprep.subr.mxu0 0.0
    %2245 = vmatpush1.msra.mxu0 0.0
    %2246 = vmatprep.subr.mxu0 0.0
    %2247 = vmatpush1.msra.mxu0 0.0
    %2248 = vmatprep.subr.mxu0 0.0
    %2249 = vmatpush1.msra.mxu0 0.0
    %2250 = vmatprep.subr.mxu0 0.0
    %2251 = vmatpush1.msra.mxu0 0.0
    %2252 = vmatprep.subr.mxu0 0.0
    %2253 = vmatpush1.msra.mxu0 0.0
    %2254 = vmatprep.subr.mxu0 %v1900
    %2255 = vmatpush1.msra.mxu0 %v1899
    %2256 = vmatprep.subr.mxu0 %v1884
    %2257 = vmatpush1.msra.mxu0 %v1883
    %2258 = vmatprep.subr.mxu0 %v1868
    %2259 = vmatpush1.msra.mxu0 %v1867
    %2260 = vmatprep.subr.mxu0 %v1852
    %2261 = vmatpush1.msra.mxu0 %v1851
    %2262 = vmatprep.subr.mxu0 0.0
    %2263 = vmatpush2.msra.mxu0 0.0
    %2264 = vmatprep.subr.mxu0 0.0
    %2265 = vmatpush2.msra.mxu0 0.0
    %2266 = vmatprep.subr.mxu0 0.0
    %2267 = vmatpush2.msra.mxu0 0.0
    %2268 = vmatprep.subr.mxu0 0.0
    %2269 = vmatpush2.msra.mxu0 0.0
    %2270 = vmatprep.subr.mxu0 0.0
    %2271 = vmatpush2.msra.mxu0 0.0
    %2272 = vmatprep.subr.mxu0 0.0
    %2273 = vmatpush2.msra.mxu0 0.0
    %2274 = vmatprep.subr.mxu0 0.0
    %2275 = vmatpush2.msra.mxu0 0.0
    %2276 = vmatprep.subr.mxu0 0.0
    %2277 = vmatpush2.msra.mxu0 0.0
    %2278 = vmatprep.subr.mxu0 0.0
    %2279 = vmatpush2.msra.mxu0 0.0
    %2280 = vmatprep.subr.mxu0 0.0
    %2281 = vmatpush2.msra.mxu0 0.0
    %2282 = vmatprep.subr.mxu0 0.0
    %2283 = vmatpush2.msra.mxu0 0.0
    %2284 = vmatprep.subr.mxu0 0.0
    %2285 = vmatpush2.msra.mxu0 0.0
    %2286 = vmatprep.subr.mxu0 0.0
    %2287 = vmatpush2.msra.mxu0 0.0
    %2288 = vmatprep.subr.mxu0 0.0
    %2289 = vmatpush2.msra.mxu0 0.0
    %2290 = vmatprep.subr.mxu0 0.0
    %2291 = vmatpush2.msra.mxu0 0.0
    %2292 = vmatprep.subr.mxu0 0.0
    %2293 = vmatpush2.msra.mxu0 0.0
    %2294 = vmatprep.mubr.f32.mxu0 0.0
    %2295 = vmatmul.mubr.f32.gmra.mxu0 %v1994
    %v2296 = vpop.f32.mrf.mxu0
    %v2297 = vadd.f32 %v1940, %v2296
    %v2298 = vpop.f32.mrf.mxu0
    %v2299 = vadd.f32 %v1944, %v2298
    %2300 = vmatprep.mubr.f32.mxu0 0.0
    %2301 = vmatmul.mubr.f32.gmra.mxu0 %v1997
    %v2302 = vpop.f32.mrf.mxu0
    %v2303 = vadd.f32 %v1940, %v2302
    %v2304 = vpop.f32.mrf.mxu0
    %v2305 = vadd.f32 %v1944, %v2304
    %2306 = vdwg.mxu0
    %2307 = vmatprep.subr.mxu0 0.0
    %2308 = vmatpush1.msra.mxu0 0.0
    %2309 = vmatprep.subr.mxu0 0.0
    %2310 = vmatpush1.msra.mxu0 0.0
    %2311 = vmatprep.subr.mxu0 0.0
    %2312 = vmatpush1.msra.mxu0 0.0
    %2313 = vmatprep.subr.mxu0 0.0
    %2314 = vmatpush1.msra.mxu0 0.0
    %2315 = vmatprep.subr.mxu0 0.0
    %2316 = vmatpush1.msra.mxu0 0.0
    %2317 = vmatprep.subr.mxu0 0.0
    %2318 = vmatpush1.msra.mxu0 0.0
    %2319 = vmatprep.subr.mxu0 0.0
    %2320 = vmatpush1.msra.mxu0 0.0
    %2321 = vmatprep.subr.mxu0 0.0
    %2322 = vmatpush1.msra.mxu0 0.0
    %2323 = vmatprep.subr.mxu0 0.0
    %2324 = vmatpush1.msra.mxu0 0.0
    %2325 = vmatprep.subr.mxu0 0.0
    %2326 = vmatpush1.msra.mxu0 0.0
    %2327 = vmatprep.subr.mxu0 0.0
    %2328 = vmatpush1.msra.mxu0 0.0
    %2329 = vmatprep.subr.mxu0 0.0
    %2330 = vmatpush1.msra.mxu0 0.0
    %2331 = vmatprep.subr.mxu0 %v1902
    %2332 = vmatpush1.msra.mxu0 %v1901
    %2333 = vmatprep.subr.mxu0 %v1886
    %2334 = vmatpush1.msra.mxu0 %v1885
    %2335 = vmatprep.subr.mxu0 %v1870
    %2336 = vmatpush1.msra.mxu0 %v1869
    %2337 = vmatprep.subr.mxu0 %v1854
    %2338 = vmatpush1.msra.mxu0 %v1853
    %2339 = vmatprep.subr.mxu0 0.0
    %2340 = vmatpush2.msra.mxu0 0.0
    %2341 = vmatprep.subr.mxu0 0.0
    %2342 = vmatpush2.msra.mxu0 0.0
    %2343 = vmatprep.subr.mxu0 0.0
    %2344 = vmatpush2.msra.mxu0 0.0
    %2345 = vmatprep.subr.mxu0 0.0
    %2346 = vmatpush2.msra.mxu0 0.0
    %2347 = vmatprep.subr.mxu0 0.0
    %2348 = vmatpush2.msra.mxu0 0.0
    %2349 = vmatprep.subr.mxu0 0.0
    %2350 = vmatpush2.msra.mxu0 0.0
    %2351 = vmatprep.subr.mxu0 0.0
    %2352 = vmatpush2.msra.mxu0 0.0
    %2353 = vmatprep.subr.mxu0 0.0
    %2354 = vmatpush2.msra.mxu0 0.0
    %2355 = vmatprep.subr.mxu0 0.0
    %2356 = vmatpush2.msra.mxu0 0.0
    %2357 = vmatprep.subr.mxu0 0.0
    %2358 = vmatpush2.msra.mxu0 0.0
    %2359 = vmatprep.subr.mxu0 0.0
    %2360 = vmatpush2.msra.mxu0 0.0
    %2361 = vmatprep.subr.mxu0 0.0
    %2362 = vmatpush2.msra.mxu0 0.0
    %2363 = vmatprep.subr.mxu0 0.0
    %2364 = vmatpush2.msra.mxu0 0.0
    %2365 = vmatprep.subr.mxu0 0.0
    %2366 = vmatpush2.msra.mxu0 0.0
    %2367 = vmatprep.subr.mxu0 0.0
    %2368 = vmatpush2.msra.mxu0 0.0
    %2369 = vmatprep.subr.mxu0 0.0
    %2370 = vmatpush2.msra.mxu0 0.0
    %2371 = vmatprep.mubr.f32.mxu0 0.0
    %2372 = vmatmul.mubr.f32.gmra.mxu0 %v1994
    %v2373 = vpop.f32.mrf.mxu0
    %v2374 = vadd.f32 %v1948, %v2373
    %v2375 = vpop.f32.mrf.mxu0
    %v2376 = vadd.f32 %v1952, %v2375
    %2377 = vmatprep.mubr.f32.mxu0 0.0
    %2378 = vmatmul.mubr.f32.gmra.mxu0 %v1997
    %v2379 = vpop.f32.mrf.mxu0
    %v2380 = vadd.f32 %v1948, %v2379
    %v2381 = vpop.f32.mrf.mxu0
    %v2382 = vadd.f32 %v1952, %v2381
    %2383 = vdwg.mxu0
    %2384 = vmatprep.subr.mxu0 0.0
    %2385 = vmatpush1.msra.mxu0 0.0
    %2386 = vmatprep.subr.mxu0 0.0
    %2387 = vmatpush1.msra.mxu0 0.0
    %2388 = vmatprep.subr.mxu0 0.0
    %2389 = vmatpush1.msra.mxu0 0.0
    %2390 = vmatprep.subr.mxu0 0.0
    %2391 = vmatpush1.msra.mxu0 0.0
    %2392 = vmatprep.subr.mxu0 0.0
    %2393 = vmatpush1.msra.mxu0 0.0
    %2394 = vmatprep.subr.mxu0 0.0
    %2395 = vmatpush1.msra.mxu0 0.0
    %2396 = vmatprep.subr.mxu0 0.0
    %2397 = vmatpush1.msra.mxu0 0.0
    %2398 = vmatprep.subr.mxu0 0.0
    %2399 = vmatpush1.msra.mxu0 0.0
    %2400 = vmatprep.subr.mxu0 0.0
    %2401 = vmatpush1.msra.mxu0 0.0
    %2402 = vmatprep.subr.mxu0 0.0
    %2403 = vmatpush1.msra.mxu0 0.0
    %2404 = vmatprep.subr.mxu0 0.0
    %2405 = vmatpush1.msra.mxu0 0.0
    %2406 = vmatprep.subr.mxu0 0.0
    %2407 = vmatpush1.msra.mxu0 0.0
    %2408 = vmatprep.subr.mxu0 %v1904
    %2409 = vmatpush1.msra.mxu0 %v1903
    %2410 = vmatprep.subr.mxu0 %v1888
    %2411 = vmatpush1.msra.mxu0 %v1887
    %2412 = vmatprep.subr.mxu0 %v1872
    %2413 = vmatpush1.msra.mxu0 %v1871
    %2414 = vmatprep.subr.mxu0 %v1856
    %2415 = vmatpush1.msra.mxu0 %v1855
    %2416 = vmatprep.subr.mxu0 0.0
    %2417 = vmatpush2.msra.mxu0 0.0
    %2418 = vmatprep.subr.mxu0 0.0
    %2419 = vmatpush2.msra.mxu0 0.0
    %2420 = vmatprep.subr.mxu0 0.0
    %2421 = vmatpush2.msra.mxu0 0.0
    %2422 = vmatprep.subr.mxu0 0.0
    %2423 = vmatpush2.msra.mxu0 0.0
    %2424 = vmatprep.subr.mxu0 0.0
    %2425 = vmatpush2.msra.mxu0 0.0
    %2426 = vmatprep.subr.mxu0 0.0
    %2427 = vmatpush2.msra.mxu0 0.0
    %2428 = vmatprep.subr.mxu0 0.0
    %2429 = vmatpush2.msra.mxu0 0.0
    %2430 = vmatprep.subr.mxu0 0.0
    %2431 = vmatpush2.msra.mxu0 0.0
    %2432 = vmatprep.subr.mxu0 0.0
    %2433 = vmatpush2.msra.mxu0 0.0
    %2434 = vmatprep.subr.mxu0 0.0
    %2435 = vmatpush2.msra.mxu0 0.0
    %2436 = vmatprep.subr.mxu0 0.0
    %2437 = vmatpush2.msra.mxu0 0.0
    %2438 = vmatprep.subr.mxu0 0.0
    %2439 = vmatpush2.msra.mxu0 0.0
    %2440 = vmatprep.subr.mxu0 0.0
    %2441 = vmatpush2.msra.mxu0 0.0
    %2442 = vmatprep.subr.mxu0 0.0
    %2443 = vmatpush2.msra.mxu0 0.0
    %2444 = vmatprep.subr.mxu0 0.0
    %2445 = vmatpush2.msra.mxu0 0.0
    %2446 = vmatprep.subr.mxu0 0.0
    %2447 = vmatpush2.msra.mxu0 0.0
    %2448 = vmatprep.mubr.f32.mxu0 0.0
    %2449 = vmatmul.mubr.f32.gmra.mxu0 %v1994
    %v2450 = vpop.f32.mrf.mxu0
    %v2451 = vadd.f32 %v1956, %v2450
    %v2452 = vpop.f32.mrf.mxu0
    %v2453 = vadd.f32 %v1960, %v2452
    %2454 = vmatprep.mubr.f32.mxu0 0.0
    %2455 = vmatmul.mubr.f32.gmra.mxu0 %v1997
    %v2456 = vpop.f32.mrf.mxu0
    %v2457 = vadd.f32 %v1956, %v2456
    %v2458 = vpop.f32.mrf.mxu0
    %v2459 = vadd.f32 %v1960, %v2458
    %2460 = vdwg.mxu0
    %2461 = vmatprep.subr.mxu0 0.0
    %2462 = vmatpush1.msra.mxu0 0.0
    %2463 = vmatprep.subr.mxu0 0.0
    %2464 = vmatpush1.msra.mxu0 0.0
    %2465 = vmatprep.subr.mxu0 0.0
    %2466 = vmatpush1.msra.mxu0 0.0
    %2467 = vmatprep.subr.mxu0 0.0
    %2468 = vmatpush1.msra.mxu0 0.0
    %2469 = vmatprep.subr.mxu0 0.0
    %2470 = vmatpush1.msra.mxu0 0.0
    %2471 = vmatprep.subr.mxu0 0.0
    %2472 = vmatpush1.msra.mxu0 0.0
    %2473 = vmatprep.subr.mxu0 0.0
    %2474 = vmatpush1.msra.mxu0 0.0
    %2475 = vmatprep.subr.mxu0 0.0
    %2476 = vmatpush1.msra.mxu0 0.0
    %2477 = vmatprep.subr.mxu0 0.0
    %2478 = vmatpush1.msra.mxu0 0.0
    %2479 = vmatprep.subr.mxu0 0.0
    %2480 = vmatpush1.msra.mxu0 0.0
    %2481 = vmatprep.subr.mxu0 0.0
    %2482 = vmatpush1.msra.mxu0 0.0
    %2483 = vmatprep.subr.mxu0 0.0
    %2484 = vmatpush1.msra.mxu0 0.0
    %2485 = vmatprep.subr.mxu0 %v1906
    %2486 = vmatpush1.msra.mxu0 %v1905
    %2487 = vmatprep.subr.mxu0 %v1890
    %2488 = vmatpush1.msra.mxu0 %v1889
    %2489 = vmatprep.subr.mxu0 %v1874
    %2490 = vmatpush1.msra.mxu0 %v1873
    %2491 = vmatprep.subr.mxu0 %v1858
    %2492 = vmatpush1.msra.mxu0 %v1857
    %2493 = vmatprep.subr.mxu0 0.0
    %2494 = vmatpush2.msra.mxu0 0.0
    %2495 = vmatprep.subr.mxu0 0.0
    %2496 = vmatpush2.msra.mxu0 0.0
    %2497 = vmatprep.subr.mxu0 0.0
    %2498 = vmatpush2.msra.mxu0 0.0
    %2499 = vmatprep.subr.mxu0 0.0
    %2500 = vmatpush2.msra.mxu0 0.0
    %2501 = vmatprep.subr.mxu0 0.0
    %2502 = vmatpush2.msra.mxu0 0.0
    %2503 = vmatprep.subr.mxu0 0.0
    %2504 = vmatpush2.msra.mxu0 0.0
    %2505 = vmatprep.subr.mxu0 0.0
    %2506 = vmatpush2.msra.mxu0 0.0
    %2507 = vmatprep.subr.mxu0 0.0
    %2508 = vmatpush2.msra.mxu0 0.0
    %2509 = vmatprep.subr.mxu0 0.0
    %2510 = vmatpush2.msra.mxu0 0.0
    %2511 = vmatprep.subr.mxu0 0.0
    %2512 = vmatpush2.msra.mxu0 0.0
    %2513 = vmatprep.subr.mxu0 0.0
    %2514 = vmatpush2.msra.mxu0 0.0
    %2515 = vmatprep.subr.mxu0 0.0
    %2516 = vmatpush2.msra.mxu0 0.0
    %2517 = vmatprep.subr.mxu0 0.0
    %2518 = vmatpush2.msra.mxu0 0.0
    %2519 = vmatprep.subr.mxu0 0.0
    %2520 = vmatpush2.msra.mxu0 0.0
    %2521 = vmatprep.subr.mxu0 0.0
    %2522 = vmatpush2.msra.mxu0 0.0
    %2523 = vmatprep.subr.mxu0 0.0
    %2524 = vmatpush2.msra.mxu0 0.0
    %2525 = vmatprep.mubr.f32.mxu0 0.0
    %2526 = vmatmul.mubr.f32.gmra.mxu0 %v1994
    %v2527 = vpop.f32.mrf.mxu0
    %v2528 = vadd.f32 %v1964, %v2527
    %v2529 = vpop.f32.mrf.mxu0
    %v2530 = vadd.f32 %v1968, %v2529
    %2531 = vmatprep.mubr.f32.mxu0 0.0
    %2532 = vmatmul.mubr.f32.gmra.mxu0 %v1997
    %v2533 = vpop.f32.mrf.mxu0
    %v2534 = vadd.f32 %v1964, %v2533
    %v2535 = vpop.f32.mrf.mxu0
    %v2536 = vadd.f32 %v1968, %v2535
    %2537 = vdwg.mxu0
    %2538 = vmatprep.subr.mxu0 0.0
    %2539 = vmatpush1.msra.mxu0 0.0
    %2540 = vmatprep.subr.mxu0 0.0
    %2541 = vmatpush1.msra.mxu0 0.0
    %2542 = vmatprep.subr.mxu0 0.0
    %2543 = vmatpush1.msra.mxu0 0.0
    %2544 = vmatprep.subr.mxu0 0.0
    %2545 = vmatpush1.msra.mxu0 0.0
    %2546 = vmatprep.subr.mxu0 0.0
    %2547 = vmatpush1.msra.mxu0 0.0
    %2548 = vmatprep.subr.mxu0 0.0
    %2549 = vmatpush1.msra.mxu0 0.0
    %2550 = vmatprep.subr.mxu0 0.0
    %2551 = vmatpush1.msra.mxu0 0.0
    %2552 = vmatprep.subr.mxu0 0.0
    %2553 = vmatpush1.msra.mxu0 0.0
    %2554 = vmatprep.subr.mxu0 0.0
    %2555 = vmatpush1.msra.mxu0 0.0
    %2556 = vmatprep.subr.mxu0 0.0
    %2557 = vmatpush1.msra.mxu0 0.0
    %2558 = vmatprep.subr.mxu0 0.0
    %2559 = vmatpush1.msra.mxu0 0.0
    %2560 = vmatprep.subr.mxu0 0.0
    %2561 = vmatpush1.msra.mxu0 0.0
    %2562 = vmatprep.subr.mxu0 %v1908
    %2563 = vmatpush1.msra.mxu0 %v1907
    %2564 = vmatprep.subr.mxu0 %v1892
    %2565 = vmatpush1.msra.mxu0 %v1891
    %2566 = vmatprep.subr.mxu0 %v1876
    %2567 = vmatpush1.msra.mxu0 %v1875
    %2568 = vmatprep.subr.mxu0 %v1860
    %2569 = vmatpush1.msra.mxu0 %v1859
    %2570 = vmatprep.subr.mxu0 0.0
    %2571 = vmatpush2.msra.mxu0 0.0
    %2572 = vmatprep.subr.mxu0 0.0
    %2573 = vmatpush2.msra.mxu0 0.0
    %2574 = vmatprep.subr.mxu0 0.0
    %2575 = vmatpush2.msra.mxu0 0.0
    %2576 = vmatprep.subr.mxu0 0.0
    %2577 = vmatpush2.msra.mxu0 0.0
    %2578 = vmatprep.subr.mxu0 0.0
    %2579 = vmatpush2.msra.mxu0 0.0
    %2580 = vmatprep.subr.mxu0 0.0
    %2581 = vmatpush2.msra.mxu0 0.0
    %2582 = vmatprep.subr.mxu0 0.0
    %2583 = vmatpush2.msra.mxu0 0.0
    %2584 = vmatprep.subr.mxu0 0.0
    %2585 = vmatpush2.msra.mxu0 0.0
    %2586 = vmatprep.subr.mxu0 0.0
    %2587 = vmatpush2.msra.mxu0 0.0
    %2588 = vmatprep.subr.mxu0 0.0
    %2589 = vmatpush2.msra.mxu0 0.0
    %2590 = vmatprep.subr.mxu0 0.0
    %2591 = vmatpush2.msra.mxu0 0.0
    %2592 = vmatprep.subr.mxu0 0.0
    %2593 = vmatpush2.msra.mxu0 0.0
    %2594 = vmatprep.subr.mxu0 0.0
    %2595 = vmatpush2.msra.mxu0 0.0
    %2596 = vmatprep.subr.mxu0 0.0
    %2597 = vmatpush2.msra.mxu0 0.0
    %2598 = vmatprep.subr.mxu0 0.0
    %2599 = vmatpush2.msra.mxu0 0.0
    %2600 = vmatprep.subr.mxu0 0.0
    %2601 = vmatpush2.msra.mxu0 0.0
    %2602 = vmatprep.mubr.f32.mxu0 0.0
    %2603 = vmatmul.mubr.f32.gmra.mxu0 %v1994
    %v2604 = vpop.f32.mrf.mxu0
    %v2605 = vadd.f32 %v1972, %v2604
    %v2606 = vpop.f32.mrf.mxu0
    %v2607 = vadd.f32 %v1976, %v2606
    %2608 = vmatprep.mubr.f32.mxu0 0.0
    %2609 = vmatmul.mubr.f32.gmra.mxu0 %v1997
    %v2610 = vpop.f32.mrf.mxu0
    %v2611 = vadd.f32 %v1972, %v2610
    %v2612 = vpop.f32.mrf.mxu0
    %v2613 = vadd.f32 %v1976, %v2612
    %2614 = vdwg.mxu0
    %v2615 = vmax.f32 %v2066, 0.0
    %v2616 = vmax.f32 %v2068, 0.0
    %v2617 = vmax.f32 %v2143, 0.0
    %v2618 = vmax.f32 %v2145, 0.0
    %v2619 = vmax.f32 %v2220, 0.0
    %v2620 = vmax.f32 %v2222, 0.0
    %v2621 = vmax.f32 %v2297, 0.0
    %v2622 = vmax.f32 %v2299, 0.0
    %v2623 = vmax.f32 %v2374, 0.0
    %v2624 = vmax.f32 %v2376, 0.0
    %v2625 = vmax.f32 %v2451, 0.0
    %v2626 = vmax.f32 %v2453, 0.0
    %v2627 = vmax.f32 %v2528, 0.0
    %v2628 = vmax.f32 %v2530, 0.0
    %v2629 = vmax.f32 %v2605, 0.0
    %v2630 = vmax.f32 %v2607, 0.0
    %v2631 = vmax.f32 %v2072, 0.0
    %v2632 = vmax.f32 %v2074, 0.0
    %v2633 = vmax.f32 %v2149, 0.0
    %v2634 = vmax.f32 %v2151, 0.0
    %v2635 = vmax.f32 %v2226, 0.0
    %v2636 = vmax.f32 %v2228, 0.0
    %v2637 = vmax.f32 %v2303, 0.0
    %v2638 = vmax.f32 %v2305, 0.0
    %v2639 = vmax.f32 %v2380, 0.0
    %v2640 = vmax.f32 %v2382, 0.0
    %v2641 = vmax.f32 %v2457, 0.0
    %v2642 = vmax.f32 %v2459, 0.0
    %v2643 = vmax.f32 %v2534, 0.0
    %v2644 = vmax.f32 %v2536, 0.0
    %v2645 = vmax.f32 %v2611, 0.0
    %v2646 = vmax.f32 %v2613, 0.0
    %v2647 = vld [vmem:[%s15] sm:$0xff]
    %v2648 = vld [vmem:[%s15 + $0x8] sm:$0xff]
    %v2649 = vld [vmem:[%s15 + $0x10] sm:$0xff]
    %v2650 = vld [vmem:[%s15 + $0x18] sm:$0xff]
    %v2651 = vld [vmem:[%s15 + $0x20] sm:$0xff]
    %v2652 = vld [vmem:[%s15 + $0x28] sm:$0xff]
    %v2653 = vld [vmem:[%s15 + $0x30] sm:$0xff]
    %v2654 = vld [vmem:[%s15 + $0x38] sm:$0xff]
    %v2655 = vld [vmem:[%s15 + $0x40] sm:$0xff]
    %v2656 = vld [vmem:[%s15 + $0x48] sm:$0xff]
    %v2657 = vld [vmem:[%s15 + $0x50] sm:$0xff]
    %v2658 = vld [vmem:[%s15 + $0x58] sm:$0xff]
    %v2659 = vld [vmem:[%s15 + $0x60] sm:$0xff]
    %v2660 = vld [vmem:[%s15 + $0x68] sm:$0xff]
    %v2661 = vld [vmem:[%s15 + $0x70] sm:$0xff]
    %v2662 = vld [vmem:[%s15 + $0x78] sm:$0xff]
    %v2663 = vld [vmem:[%s15 + $0x80] sm:$0xff]
    %v2664 = vld [vmem:[%s15 + $0x88] sm:$0xff]
    %v2665 = vld [vmem:[%s15 + $0x90] sm:$0xff]
    %v2666 = vld [vmem:[%s15 + $0x98] sm:$0xff]
    %v2667 = vld [vmem:[%s15 + $0xa0] sm:$0xff]
    %v2668 = vld [vmem:[%s15 + $0xa8] sm:$0xff]
    %v2669 = vld [vmem:[%s15 + $0xb0] sm:$0xff]
    %v2670 = vld [vmem:[%s15 + $0xb8] sm:$0xff]
    %v2671 = vld [vmem:[%s15 + $0xc0] sm:$0xff]
    %v2672 = vld [vmem:[%s15 + $0xc8] sm:$0xff]
    %v2673 = vld [vmem:[%s15 + $0xd0] sm:$0xff]
    %v2674 = vld [vmem:[%s15 + $0xd8] sm:$0xff]
    %v2675 = vld [vmem:[%s15 + $0xe0] sm:$0xff]
    %v2676 = vld [vmem:[%s15 + $0xe8] sm:$0xff]
    %v2677 = vld [vmem:[%s15 + $0xf0] sm:$0xff]
    %v2678 = vld [vmem:[%s15 + $0xf8] sm:$0xff]
    %v2679 = vld [vmem:[%s15 + $0x100] sm:$0xff]
    %v2680 = vld [vmem:[%s15 + $0x108] sm:$0xff]
    %v2681 = vld [vmem:[%s15 + $0x110] sm:$0xff]
    %v2682 = vld [vmem:[%s15 + $0x118] sm:$0xff]
    %v2683 = vld [vmem:[%s15 + $0x120] sm:$0xff]
    %v2684 = vld [vmem:[%s15 + $0x128] sm:$0xff]
    %v2685 = vld [vmem:[%s15 + $0x130] sm:$0xff]
    %v2686 = vld [vmem:[%s15 + $0x138] sm:$0xff]
    %v2687 = vld [vmem:[%s15 + $0x140] sm:$0xff]
    %v2688 = vld [vmem:[%s15 + $0x148] sm:$0xff]
    %v2689 = vld [vmem:[%s15 + $0x150] sm:$0xff]
    %v2690 = vld [vmem:[%s15 + $0x158] sm:$0xff]
    %v2691 = vld [vmem:[%s15 + $0x160] sm:$0xff]
    %v2692 = vld [vmem:[%s15 + $0x168] sm:$0xff]
    %v2693 = vld [vmem:[%s15 + $0x170] sm:$0xff]
    %v2694 = vld [vmem:[%s15 + $0x178] sm:$0xff]
    %v2695 = vld [vmem:[%s15 + $0x180] sm:$0xff]
    %v2696 = vld [vmem:[%s15 + $0x188] sm:$0xff]
    %v2697 = vld [vmem:[%s15 + $0x190] sm:$0xff]
    %v2698 = vld [vmem:[%s15 + $0x198] sm:$0xff]
    %v2699 = vld [vmem:[%s15 + $0x1a0] sm:$0xff]
    %v2700 = vld [vmem:[%s15 + $0x1a8] sm:$0xff]
    %v2701 = vld [vmem:[%s15 + $0x1b0] sm:$0xff]
    %v2702 = vld [vmem:[%s15 + $0x1b8] sm:$0xff]
    %v2703 = vld [vmem:[%s15 + $0x1c0] sm:$0xff]
    %v2704 = vld [vmem:[%s15 + $0x1c8] sm:$0xff]
    %v2705 = vld [vmem:[%s15 + $0x1d0] sm:$0xff]
    %v2706 = vld [vmem:[%s15 + $0x1d8] sm:$0xff]
    %v2707 = vld [vmem:[%s15 + $0x1e0] sm:$0xff]
    %v2708 = vld [vmem:[%s15 + $0x1e8] sm:$0xff]
    %v2709 = vld [vmem:[%s15 + $0x1f0] sm:$0xff]
    %v2710 = vld [vmem:[%s15 + $0x1f8] sm:$0xff]
    %v2711 = vld [vmem:[%s15 + $0x200] sm:$0xff]
    %v2712 = vld [vmem:[%s15 + $0x208] sm:$0xff]
    %v2713 = vld [vmem:[%s15 + $0x210] sm:$0xff]
    %v2714 = vld [vmem:[%s15 + $0x218] sm:$0xff]
    %v2715 = vld [vmem:[%s15 + $0x220] sm:$0xff]
    %v2716 = vld [vmem:[%s15 + $0x228] sm:$0xff]
    %v2717 = vld [vmem:[%s15 + $0x230] sm:$0xff]
    %v2718 = vld [vmem:[%s15 + $0x238] sm:$0xff]
    %v2719 = vld [vmem:[%s15 + $0x240] sm:$0xff]
    %v2720 = vld [vmem:[%s15 + $0x248] sm:$0xff]
    %v2721 = vld [vmem:[%s15 + $0x250] sm:$0xff]
    %v2722 = vld [vmem:[%s15 + $0x258] sm:$0xff]
    %v2723 = vld [vmem:[%s15 + $0x260] sm:$0xff]
    %v2724 = vld [vmem:[%s15 + $0x268] sm:$0xff]
    %v2725 = vld [vmem:[%s15 + $0x270] sm:$0xff]
    %v2726 = vld [vmem:[%s15 + $0x278] sm:$0xff]
    %v2727 = vld [vmem:[%s15 + $0x280] sm:$0xff]
    %v2728 = vld [vmem:[%s15 + $0x288] sm:$0xff]
    %v2729 = vld [vmem:[%s15 + $0x290] sm:$0xff]
    %v2730 = vld [vmem:[%s15 + $0x298] sm:$0xff]
    %v2731 = vld [vmem:[%s15 + $0x2a0] sm:$0xff]
    %v2732 = vld [vmem:[%s15 + $0x2a8] sm:$0xff]
    %v2733 = vld [vmem:[%s15 + $0x2b0] sm:$0xff]
    %v2734 = vld [vmem:[%s15 + $0x2b8] sm:$0xff]
    %v2735 = vld [vmem:[%s15 + $0x2c0] sm:$0xff]
    %v2736 = vld [vmem:[%s15 + $0x2c8] sm:$0xff]
    %v2737 = vld [vmem:[%s15 + $0x2d0] sm:$0xff]
    %v2738 = vld [vmem:[%s15 + $0x2d8] sm:$0xff]
    %v2739 = vld [vmem:[%s15 + $0x2e0] sm:$0xff]
    %v2740 = vld [vmem:[%s15 + $0x2e8] sm:$0xff]
    %v2741 = vld [vmem:[%s15 + $0x2f0] sm:$0xff]
    %v2742 = vld [vmem:[%s15 + $0x2f8] sm:$0xff]
    %v2743 = vld [vmem:[%s15 + $0x300] sm:$0xff]
    %v2744 = vld [vmem:[%s15 + $0x308] sm:$0xff]
    %v2745 = vld [vmem:[%s15 + $0x310] sm:$0xff]
    %v2746 = vld [vmem:[%s15 + $0x318] sm:$0xff]
    %v2747 = vld [vmem:[%s15 + $0x320] sm:$0xff]
    %v2748 = vld [vmem:[%s15 + $0x328] sm:$0xff]
    %v2749 = vld [vmem:[%s15 + $0x330] sm:$0xff]
    %v2750 = vld [vmem:[%s15 + $0x338] sm:$0xff]
    %v2751 = vld [vmem:[%s15 + $0x340] sm:$0xff]
    %v2752 = vld [vmem:[%s15 + $0x348] sm:$0xff]
    %v2753 = vld [vmem:[%s15 + $0x350] sm:$0xff]
    %v2754 = vld [vmem:[%s15 + $0x358] sm:$0xff]
    %v2755 = vld [vmem:[%s15 + $0x360] sm:$0xff]
    %v2756 = vld [vmem:[%s15 + $0x368] sm:$0xff]
    %v2757 = vld [vmem:[%s15 + $0x370] sm:$0xff]
    %v2758 = vld [vmem:[%s15 + $0x378] sm:$0xff]
    %v2759 = vld [vmem:[%s15 + $0x380] sm:$0xff]
    %v2760 = vld [vmem:[%s15 + $0x388] sm:$0xff]
    %v2761 = vld [vmem:[%s15 + $0x390] sm:$0xff]
    %v2762 = vld [vmem:[%s15 + $0x398] sm:$0xff]
    %v2763 = vld [vmem:[%s15 + $0x3a0] sm:$0xff]
    %v2764 = vld [vmem:[%s15 + $0x3a8] sm:$0xff]
    %v2765 = vld [vmem:[%s15 + $0x3b0] sm:$0xff]
    %v2766 = vld [vmem:[%s15 + $0x3b8] sm:$0xff]
    %v2767 = vld [vmem:[%s15 + $0x3c0] sm:$0xff]
    %v2768 = vld [vmem:[%s15 + $0x3c8] sm:$0xff]
    %v2769 = vld [vmem:[%s15 + $0x3d0] sm:$0xff]
    %v2770 = vld [vmem:[%s15 + $0x3d8] sm:$0xff]
    %v2771 = vld [vmem:[%s15 + $0x3e0] sm:$0xff]
    %v2772 = vld [vmem:[%s15 + $0x3e8] sm:$0xff]
    %v2773 = vld [vmem:[%s15 + $0x3f0] sm:$0xff]
    %v2774 = vld [vmem:[%s15 + $0x3f8] sm:$0xff]
    %v2775 = vld [vmem:[%s15 + $0x400] sm:$0xff]
    %v2776 = vld [vmem:[%s15 + $0x408] sm:$0xff]
    %v2777 = vld [vmem:[%s15 + $0x410] sm:$0xff]
    %v2778 = vld [vmem:[%s15 + $0x418] sm:$0xff]
    %v2779 = vld [vmem:[%s15 + $0x420] sm:$0xff]
    %v2780 = vld [vmem:[%s15 + $0x428] sm:$0xff]
    %v2781 = vld [vmem:[%s15 + $0x430] sm:$0xff]
    %v2782 = vld [vmem:[%s15 + $0x438] sm:$0xff]
    %v2783 = vld [vmem:[%s15 + $0x440] sm:$0xff]
    %v2784 = vld [vmem:[%s15 + $0x448] sm:$0xff]
    %v2785 = vld [vmem:[%s15 + $0x450] sm:$0xff]
    %v2786 = vld [vmem:[%s15 + $0x458] sm:$0xff]
    %v2787 = vld [vmem:[%s15 + $0x460] sm:$0xff]
    %v2788 = vld [vmem:[%s15 + $0x468] sm:$0xff]
    %v2789 = vld [vmem:[%s15 + $0x470] sm:$0xff]
    %v2790 = vld [vmem:[%s15 + $0x478] sm:$0xff]
    %v2791 = vld [vmem:[%s15 + $0x480] sm:$0xff]
    %v2792 = vld [vmem:[%s15 + $0x488] sm:$0xff]
    %v2793 = vld [vmem:[%s15 + $0x490] sm:$0xff]
    %v2794 = vld [vmem:[%s15 + $0x498] sm:$0xff]
    %v2795 = vld [vmem:[%s15 + $0x4a0] sm:$0xff]
    %v2796 = vld [vmem:[%s15 + $0x4a8] sm:$0xff]
    %v2797 = vld [vmem:[%s15 + $0x4b0] sm:$0xff]
    %v2798 = vld [vmem:[%s15 + $0x4b8] sm:$0xff]
    %v2799 = vld [vmem:[%s15 + $0x4c0] sm:$0xff]
    %v2800 = vld [vmem:[%s15 + $0x4c8] sm:$0xff]
    %v2801 = vld [vmem:[%s15 + $0x4d0] sm:$0xff]
    %v2802 = vld [vmem:[%s15 + $0x4d8] sm:$0xff]
    %v2803 = vld [vmem:[%s15 + $0x4e0] sm:$0xff]
    %v2804 = vld [vmem:[%s15 + $0x4e8] sm:$0xff]
    %v2805 = vld [vmem:[%s15 + $0x4f0] sm:$0xff]
    %v2806 = vld [vmem:[%s15 + $0x4f8] sm:$0xff]
    %v2807 = vld [vmem:[%s15 + $0x500] sm:$0xff]
    %v2808 = vld [vmem:[%s15 + $0x508] sm:$0xff]
    %v2809 = vld [vmem:[%s15 + $0x510] sm:$0xff]
    %v2810 = vld [vmem:[%s15 + $0x518] sm:$0xff]
    %v2811 = vld [vmem:[%s15 + $0x520] sm:$0xff]
    %v2812 = vld [vmem:[%s15 + $0x528] sm:$0xff]
    %v2813 = vld [vmem:[%s15 + $0x530] sm:$0xff]
    %v2814 = vld [vmem:[%s15 + $0x538] sm:$0xff]
    %v2815 = vld [vmem:[%s15 + $0x540] sm:$0xff]
    %v2816 = vld [vmem:[%s15 + $0x548] sm:$0xff]
    %v2817 = vld [vmem:[%s15 + $0x550] sm:$0xff]
    %v2818 = vld [vmem:[%s15 + $0x558] sm:$0xff]
    %v2819 = vld [vmem:[%s15 + $0x560] sm:$0xff]
    %v2820 = vld [vmem:[%s15 + $0x568] sm:$0xff]
    %v2821 = vld [vmem:[%s15 + $0x570] sm:$0xff]
    %v2822 = vld [vmem:[%s15 + $0x578] sm:$0xff]
    %v2823 = vld [vmem:[%s15 + $0x580] sm:$0xff]
    %v2824 = vld [vmem:[%s15 + $0x588] sm:$0xff]
    %v2825 = vld [vmem:[%s15 + $0x590] sm:$0xff]
    %v2826 = vld [vmem:[%s15 + $0x598] sm:$0xff]
    %v2827 = vld [vmem:[%s15 + $0x5a0] sm:$0xff]
    %v2828 = vld [vmem:[%s15 + $0x5a8] sm:$0xff]
    %v2829 = vld [vmem:[%s15 + $0x5b0] sm:$0xff]
    %v2830 = vld [vmem:[%s15 + $0x5b8] sm:$0xff]
    %v2831 = vld [vmem:[%s15 + $0x5c0] sm:$0xff]
    %v2832 = vld [vmem:[%s15 + $0x5c8] sm:$0xff]
    %v2833 = vld [vmem:[%s15 + $0x5d0] sm:$0xff]
    %v2834 = vld [vmem:[%s15 + $0x5d8] sm:$0xff]
    %v2835 = vld [vmem:[%s15 + $0x5e0] sm:$0xff]
    %v2836 = vld [vmem:[%s15 + $0x5e8] sm:$0xff]
    %v2837 = vld [vmem:[%s15 + $0x5f0] sm:$0xff]
    %v2838 = vld [vmem:[%s15 + $0x5f8] sm:$0xff]
    %v2839 = vld [vmem:[%s15 + $0x600] sm:$0xff]
    %v2840 = vld [vmem:[%s15 + $0x608] sm:$0xff]
    %v2841 = vld [vmem:[%s15 + $0x610] sm:$0xff]
    %v2842 = vld [vmem:[%s15 + $0x618] sm:$0xff]
    %v2843 = vld [vmem:[%s15 + $0x620] sm:$0xff]
    %v2844 = vld [vmem:[%s15 + $0x628] sm:$0xff]
    %v2845 = vld [vmem:[%s15 + $0x630] sm:$0xff]
    %v2846 = vld [vmem:[%s15 + $0x638] sm:$0xff]
    %v2847 = vld [vmem:[%s15 + $0x640] sm:$0xff]
    %v2848 = vld [vmem:[%s15 + $0x648] sm:$0xff]
    %v2849 = vld [vmem:[%s15 + $0x650] sm:$0xff]
    %v2850 = vld [vmem:[%s15 + $0x658] sm:$0xff]
    %v2851 = vld [vmem:[%s15 + $0x660] sm:$0xff]
    %v2852 = vld [vmem:[%s15 + $0x668] sm:$0xff]
    %v2853 = vld [vmem:[%s15 + $0x670] sm:$0xff]
    %v2854 = vld [vmem:[%s15 + $0x678] sm:$0xff]
    %v2855 = vld [vmem:[%s15 + $0x680] sm:$0xff]
    %v2856 = vld [vmem:[%s15 + $0x688] sm:$0xff]
    %v2857 = vld [vmem:[%s15 + $0x690] sm:$0xff]
    %v2858 = vld [vmem:[%s15 + $0x698] sm:$0xff]
    %v2859 = vld [vmem:[%s15 + $0x6a0] sm:$0xff]
    %v2860 = vld [vmem:[%s15 + $0x6a8] sm:$0xff]
    %v2861 = vld [vmem:[%s15 + $0x6b0] sm:$0xff]
    %v2862 = vld [vmem:[%s15 + $0x6b8] sm:$0xff]
    %v2863 = vld [vmem:[%s15 + $0x6c0] sm:$0xff]
    %v2864 = vld [vmem:[%s15 + $0x6c8] sm:$0xff]
    %v2865 = vld [vmem:[%s15 + $0x6d0] sm:$0xff]
    %v2866 = vld [vmem:[%s15 + $0x6d8] sm:$0xff]
    %v2867 = vld [vmem:[%s15 + $0x6e0] sm:$0xff]
    %v2868 = vld [vmem:[%s15 + $0x6e8] sm:$0xff]
    %v2869 = vld [vmem:[%s15 + $0x6f0] sm:$0xff]
    %v2870 = vld [vmem:[%s15 + $0x6f8] sm:$0xff]
    %v2871 = vld [vmem:[%s15 + $0x700] sm:$0xff]
    %v2872 = vld [vmem:[%s15 + $0x708] sm:$0xff]
    %v2873 = vld [vmem:[%s15 + $0x710] sm:$0xff]
    %v2874 = vld [vmem:[%s15 + $0x718] sm:$0xff]
    %v2875 = vld [vmem:[%s15 + $0x720] sm:$0xff]
    %v2876 = vld [vmem:[%s15 + $0x728] sm:$0xff]
    %v2877 = vld [vmem:[%s15 + $0x730] sm:$0xff]
    %v2878 = vld [vmem:[%s15 + $0x738] sm:$0xff]
    %v2879 = vld [vmem:[%s15 + $0x740] sm:$0xff]
    %v2880 = vld [vmem:[%s15 + $0x748] sm:$0xff]
    %v2881 = vld [vmem:[%s15 + $0x750] sm:$0xff]
    %v2882 = vld [vmem:[%s15 + $0x758] sm:$0xff]
    %v2883 = vld [vmem:[%s15 + $0x760] sm:$0xff]
    %v2884 = vld [vmem:[%s15 + $0x768] sm:$0xff]
    %v2885 = vld [vmem:[%s15 + $0x770] sm:$0xff]
    %v2886 = vld [vmem:[%s15 + $0x778] sm:$0xff]
    %v2887 = vld [vmem:[%s15 + $0x780] sm:$0xff]
    %v2888 = vld [vmem:[%s15 + $0x788] sm:$0xff]
    %v2889 = vld [vmem:[%s15 + $0x790] sm:$0xff]
    %v2890 = vld [vmem:[%s15 + $0x798] sm:$0xff]
    %v2891 = vld [vmem:[%s15 + $0x7a0] sm:$0xff]
    %v2892 = vld [vmem:[%s15 + $0x7a8] sm:$0xff]
    %v2893 = vld [vmem:[%s15 + $0x7b0] sm:$0xff]
    %v2894 = vld [vmem:[%s15 + $0x7b8] sm:$0xff]
    %v2895 = vld [vmem:[%s15 + $0x7c0] sm:$0xff]
    %v2896 = vld [vmem:[%s15 + $0x7c8] sm:$0xff]
    %v2897 = vld [vmem:[%s15 + $0x7d0] sm:$0xff]
    %v2898 = vld [vmem:[%s15 + $0x7d8] sm:$0xff]
    %v2899 = vld [vmem:[%s15 + $0x7e0] sm:$0xff]
    %v2900 = vld [vmem:[%s15 + $0x7e8] sm:$0xff]
    %v2901 = vld [vmem:[%s15 + $0x7f0] sm:$0xff]
    %v2902 = vld [vmem:[%s15 + $0x7f8] sm:$0xff]
    %v2903 = vld [vmem:[%s16] sm:$0x1]
    %v2905 = vlaneseq
    %v2906 = vshrl.u32 %v2905, 7
    %v2907 = vsub.s32 0, %v2906
    %v2908 = vrot.slane %v2903, %v2907
    %2910 = vmatprep.subr.mxu0 0.0
    %2911 = vmatpush1.msra.mxu0 %v2662
    %2912 = vmatprep.subr.mxu0 0.0
    %2913 = vmatpush1.msra.mxu0 %v2661
    %2914 = vmatprep.subr.mxu0 0.0
    %2915 = vmatpush1.msra.mxu0 %v2660
    %2916 = vmatprep.subr.mxu0 0.0
    %2917 = vmatpush1.msra.mxu0 %v2659
    %2918 = vmatprep.subr.mxu0 0.0
    %2919 = vmatpush1.msra.mxu0 %v2658
    %2920 = vmatprep.subr.mxu0 0.0
    %2921 = vmatpush1.msra.mxu0 %v2657
    %2922 = vmatprep.subr.mxu0 0.0
    %2923 = vmatpush1.msra.mxu0 %v2656
    %2924 = vmatprep.subr.mxu0 0.0
    %2925 = vmatpush1.msra.mxu0 %v2655
    %2926 = vmatprep.subr.mxu0 0.0
    %2927 = vmatpush1.msra.mxu0 %v2654
    %2928 = vmatprep.subr.mxu0 0.0
    %2929 = vmatpush1.msra.mxu0 %v2653
    %2930 = vmatprep.subr.mxu0 0.0
    %2931 = vmatpush1.msra.mxu0 %v2652
    %2932 = vmatprep.subr.mxu0 0.0
    %2933 = vmatpush1.msra.mxu0 %v2651
    %2934 = vmatprep.subr.mxu0 0.0
    %2935 = vmatpush1.msra.mxu0 %v2650
    %2936 = vmatprep.subr.mxu0 0.0
    %2937 = vmatpush1.msra.mxu0 %v2649
    %2938 = vmatprep.subr.mxu0 0.0
    %2939 = vmatpush1.msra.mxu0 %v2648
    %2940 = vmatprep.subr.mxu0 0.0
    %2941 = vmatpush1.msra.mxu0 %v2647
    %2942 = vmatprep.subr.mxu0 0.0
    %2943 = vmatpush2.msra.mxu0 %v2678
    %2944 = vmatprep.subr.mxu0 0.0
    %2945 = vmatpush2.msra.mxu0 %v2677
    %2946 = vmatprep.subr.mxu0 0.0
    %2947 = vmatpush2.msra.mxu0 %v2676
    %2948 = vmatprep.subr.mxu0 0.0
    %2949 = vmatpush2.msra.mxu0 %v2675
    %2950 = vmatprep.subr.mxu0 0.0
    %2951 = vmatpush2.msra.mxu0 %v2674
    %2952 = vmatprep.subr.mxu0 0.0
    %2953 = vmatpush2.msra.mxu0 %v2673
    %2954 = vmatprep.subr.mxu0 0.0
    %2955 = vmatpush2.msra.mxu0 %v2672
    %2956 = vmatprep.subr.mxu0 0.0
    %2957 = vmatpush2.msra.mxu0 %v2671
    %2958 = vmatprep.subr.mxu0 0.0
    %2959 = vmatpush2.msra.mxu0 %v2670
    %2960 = vmatprep.subr.mxu0 0.0
    %2961 = vmatpush2.msra.mxu0 %v2669
    %2962 = vmatprep.subr.mxu0 0.0
    %2963 = vmatpush2.msra.mxu0 %v2668
    %2964 = vmatprep.subr.mxu0 0.0
    %2965 = vmatpush2.msra.mxu0 %v2667
    %2966 = vmatprep.subr.mxu0 0.0
    %2967 = vmatpush2.msra.mxu0 %v2666
    %2968 = vmatprep.subr.mxu0 0.0
    %2969 = vmatpush2.msra.mxu0 %v2665
    %2970 = vmatprep.subr.mxu0 0.0
    %2971 = vmatpush2.msra.mxu0 %v2664
    %2972 = vmatprep.subr.mxu0 0.0
    %2973 = vmatpush2.msra.mxu0 %v2663
    %2974 = vmatprep.mubr.f32.mxu0 %v2616
    %2975 = vmatmul.mubr.f32.gmra.mxu0 %v2615
    %v2976 = vpop.f32.mrf.mxu0
    %v2977 = vadd.f32 %v2908, %v2976
    %v2978 = vpop.f32.mrf.mxu0
    %2979 = vmatprep.mubr.f32.mxu0 %v2632
    %2980 = vmatmul.mubr.f32.gmra.mxu0 %v2631
    %v2981 = vpop.f32.mrf.mxu0
    %v2982 = vadd.f32 %v2908, %v2981
    %v2983 = vpop.f32.mrf.mxu0
    %2984 = vdwg.mxu0
    %2985 = vmatprep.subr.mxu0 0.0
    %2986 = vmatpush1.msra.mxu0 %v2694
    %2987 = vmatprep.subr.mxu0 0.0
    %2988 = vmatpush1.msra.mxu0 %v2693
    %2989 = vmatprep.subr.mxu0 0.0
    %2990 = vmatpush1.msra.mxu0 %v2692
    %2991 = vmatprep.subr.mxu0 0.0
    %2992 = vmatpush1.msra.mxu0 %v2691
    %2993 = vmatprep.subr.mxu0 0.0
    %2994 = vmatpush1.msra.mxu0 %v2690
    %2995 = vmatprep.subr.mxu0 0.0
    %2996 = vmatpush1.msra.mxu0 %v2689
    %2997 = vmatprep.subr.mxu0 0.0
    %2998 = vmatpush1.msra.mxu0 %v2688
    %2999 = vmatprep.subr.mxu0 0.0
    %3000 = vmatpush1.msra.mxu0 %v2687
    %3001 = vmatprep.subr.mxu0 0.0
    %3002 = vmatpush1.msra.mxu0 %v2686
    %3003 = vmatprep.subr.mxu0 0.0
    %3004 = vmatpush1.msra.mxu0 %v2685
    %3005 = vmatprep.subr.mxu0 0.0
    %3006 = vmatpush1.msra.mxu0 %v2684
    %3007 = vmatprep.subr.mxu0 0.0
    %3008 = vmatpush1.msra.mxu0 %v2683
    %3009 = vmatprep.subr.mxu0 0.0
    %3010 = vmatpush1.msra.mxu0 %v2682
    %3011 = vmatprep.subr.mxu0 0.0
    %3012 = vmatpush1.msra.mxu0 %v2681
    %3013 = vmatprep.subr.mxu0 0.0
    %3014 = vmatpush1.msra.mxu0 %v2680
    %3015 = vmatprep.subr.mxu0 0.0
    %3016 = vmatpush1.msra.mxu0 %v2679
    %3017 = vmatprep.subr.mxu0 0.0
    %3018 = vmatpush2.msra.mxu0 %v2710
    %3019 = vmatprep.subr.mxu0 0.0
    %3020 = vmatpush2.msra.mxu0 %v2709
    %3021 = vmatprep.subr.mxu0 0.0
    %3022 = vmatpush2.msra.mxu0 %v2708
    %3023 = vmatprep.subr.mxu0 0.0
    %3024 = vmatpush2.msra.mxu0 %v2707
    %3025 = vmatprep.subr.mxu0 0.0
    %3026 = vmatpush2.msra.mxu0 %v2706
    %3027 = vmatprep.subr.mxu0 0.0
    %3028 = vmatpush2.msra.mxu0 %v2705
    %3029 = vmatprep.subr.mxu0 0.0
    %3030 = vmatpush2.msra.mxu0 %v2704
    %3031 = vmatprep.subr.mxu0 0.0
    %3032 = vmatpush2.msra.mxu0 %v2703
    %3033 = vmatprep.subr.mxu0 0.0
    %3034 = vmatpush2.msra.mxu0 %v2702
    %3035 = vmatprep.subr.mxu0 0.0
    %3036 = vmatpush2.msra.mxu0 %v2701
    %3037 = vmatprep.subr.mxu0 0.0
    %3038 = vmatpush2.msra.mxu0 %v2700
    %3039 = vmatprep.subr.mxu0 0.0
    %3040 = vmatpush2.msra.mxu0 %v2699
    %3041 = vmatprep.subr.mxu0 0.0
    %3042 = vmatpush2.msra.mxu0 %v2698
    %3043 = vmatprep.subr.mxu0 0.0
    %3044 = vmatpush2.msra.mxu0 %v2697
    %3045 = vmatprep.subr.mxu0 0.0
    %3046 = vmatpush2.msra.mxu0 %v2696
    %3047 = vmatprep.subr.mxu0 0.0
    %3048 = vmatpush2.msra.mxu0 %v2695
    %3049 = vmatprep.mubr.f32.mxu0 %v2618
    %3050 = vmatmul.mubr.f32.gmra.mxu0 %v2617
    %v3051 = vpop.f32.mrf.mxu0
    %v3052 = vadd.f32 %v2977, %v3051
    %v3053 = vpop.f32.mrf.mxu0
    %3054 = vmatprep.mubr.f32.mxu0 %v2634
    %3055 = vmatmul.mubr.f32.gmra.mxu0 %v2633
    %v3056 = vpop.f32.mrf.mxu0
    %v3057 = vadd.f32 %v2982, %v3056
    %v3058 = vpop.f32.mrf.mxu0
    %3059 = vdwg.mxu0
    %3060 = vmatprep.subr.mxu0 0.0
    %3061 = vmatpush1.msra.mxu0 %v2726
    %3062 = vmatprep.subr.mxu0 0.0
    %3063 = vmatpush1.msra.mxu0 %v2725
    %3064 = vmatprep.subr.mxu0 0.0
    %3065 = vmatpush1.msra.mxu0 %v2724
    %3066 = vmatprep.subr.mxu0 0.0
    %3067 = vmatpush1.msra.mxu0 %v2723
    %3068 = vmatprep.subr.mxu0 0.0
    %3069 = vmatpush1.msra.mxu0 %v2722
    %3070 = vmatprep.subr.mxu0 0.0
    %3071 = vmatpush1.msra.mxu0 %v2721
    %3072 = vmatprep.subr.mxu0 0.0
    %3073 = vmatpush1.msra.mxu0 %v2720
    %3074 = vmatprep.subr.mxu0 0.0
    %3075 = vmatpush1.msra.mxu0 %v2719
    %3076 = vmatprep.subr.mxu0 0.0
    %3077 = vmatpush1.msra.mxu0 %v2718
    %3078 = vmatprep.subr.mxu0 0.0
    %3079 = vmatpush1.msra.mxu0 %v2717
    %3080 = vmatprep.subr.mxu0 0.0
    %3081 = vmatpush1.msra.mxu0 %v2716
    %3082 = vmatprep.subr.mxu0 0.0
    %3083 = vmatpush1.msra.mxu0 %v2715
    %3084 = vmatprep.subr.mxu0 0.0
    %3085 = vmatpush1.msra.mxu0 %v2714
    %3086 = vmatprep.subr.mxu0 0.0
    %3087 = vmatpush1.msra.mxu0 %v2713
    %3088 = vmatprep.subr.mxu0 0.0
    %3089 = vmatpush1.msra.mxu0 %v2712
    %3090 = vmatprep.subr.mxu0 0.0
    %3091 = vmatpush1.msra.mxu0 %v2711
    %3092 = vmatprep.subr.mxu0 0.0
    %3093 = vmatpush2.msra.mxu0 %v2742
    %3094 = vmatprep.subr.mxu0 0.0
    %3095 = vmatpush2.msra.mxu0 %v2741
    %3096 = vmatprep.subr.mxu0 0.0
    %3097 = vmatpush2.msra.mxu0 %v2740
    %3098 = vmatprep.subr.mxu0 0.0
    %3099 = vmatpush2.msra.mxu0 %v2739
    %3100 = vmatprep.subr.mxu0 0.0
    %3101 = vmatpush2.msra.mxu0 %v2738
    %3102 = vmatprep.subr.mxu0 0.0
    %3103 = vmatpush2.msra.mxu0 %v2737
    %3104 = vmatprep.subr.mxu0 0.0
    %3105 = vmatpush2.msra.mxu0 %v2736
    %3106 = vmatprep.subr.mxu0 0.0
    %3107 = vmatpush2.msra.mxu0 %v2735
    %3108 = vmatprep.subr.mxu0 0.0
    %3109 = vmatpush2.msra.mxu0 %v2734
    %3110 = vmatprep.subr.mxu0 0.0
    %3111 = vmatpush2.msra.mxu0 %v2733
    %3112 = vmatprep.subr.mxu0 0.0
    %3113 = vmatpush2.msra.mxu0 %v2732
    %3114 = vmatprep.subr.mxu0 0.0
    %3115 = vmatpush2.msra.mxu0 %v2731
    %3116 = vmatprep.subr.mxu0 0.0
    %3117 = vmatpush2.msra.mxu0 %v2730
    %3118 = vmatprep.subr.mxu0 0.0
    %3119 = vmatpush2.msra.mxu0 %v2729
    %3120 = vmatprep.subr.mxu0 0.0
    %3121 = vmatpush2.msra.mxu0 %v2728
    %3122 = vmatprep.subr.mxu0 0.0
    %3123 = vmatpush2.msra.mxu0 %v2727
    %3124 = vmatprep.mubr.f32.mxu0 %v2620
    %3125 = vmatmul.mubr.f32.gmra.mxu0 %v2619
    %v3126 = vpop.f32.mrf.mxu0
    %v3127 = vadd.f32 %v3052, %v3126
    %v3128 = vpop.f32.mrf.mxu0
    %3129 = vmatprep.mubr.f32.mxu0 %v2636
    %3130 = vmatmul.mubr.f32.gmra.mxu0 %v2635
    %v3131 = vpop.f32.mrf.mxu0
    %v3132 = vadd.f32 %v3057, %v3131
    %v3133 = vpop.f32.mrf.mxu0
    %3134 = vdwg.mxu0
    %3135 = vmatprep.subr.mxu0 0.0
    %3136 = vmatpush1.msra.mxu0 %v2758
    %3137 = vmatprep.subr.mxu0 0.0
    %3138 = vmatpush1.msra.mxu0 %v2757
    %3139 = vmatprep.subr.mxu0 0.0
    %3140 = vmatpush1.msra.mxu0 %v2756
    %3141 = vmatprep.subr.mxu0 0.0
    %3142 = vmatpush1.msra.mxu0 %v2755
    %3143 = vmatprep.subr.mxu0 0.0
    %3144 = vmatpush1.msra.mxu0 %v2754
    %3145 = vmatprep.subr.mxu0 0.0
    %3146 = vmatpush1.msra.mxu0 %v2753
    %3147 = vmatprep.subr.mxu0 0.0
    %3148 = vmatpush1.msra.mxu0 %v2752
    %3149 = vmatprep.subr.mxu0 0.0
    %3150 = vmatpush1.msra.mxu0 %v2751
    %3151 = vmatprep.subr.mxu0 0.0
    %3152 = vmatpush1.msra.mxu0 %v2750
    %3153 = vmatprep.subr.mxu0 0.0
    %3154 = vmatpush1.msra.mxu0 %v2749
    %3155 = vmatprep.subr.mxu0 0.0
    %3156 = vmatpush1.msra.mxu0 %v2748
    %3157 = vmatprep.subr.mxu0 0.0
    %3158 = vmatpush1.msra.mxu0 %v2747
    %3159 = vmatprep.subr.mxu0 0.0
    %3160 = vmatpush1.msra.mxu0 %v2746
    %3161 = vmatprep.subr.mxu0 0.0
    %3162 = vmatpush1.msra.mxu0 %v2745
    %3163 = vmatprep.subr.mxu0 0.0
    %3164 = vmatpush1.msra.mxu0 %v2744
    %3165 = vmatprep.subr.mxu0 0.0
    %3166 = vmatpush1.msra.mxu0 %v2743
    %3167 = vmatprep.subr.mxu0 0.0
    %3168 = vmatpush2.msra.mxu0 %v2774
    %3169 = vmatprep.subr.mxu0 0.0
    %3170 = vmatpush2.msra.mxu0 %v2773
    %3171 = vmatprep.subr.mxu0 0.0
    %3172 = vmatpush2.msra.mxu0 %v2772
    %3173 = vmatprep.subr.mxu0 0.0
    %3174 = vmatpush2.msra.mxu0 %v2771
    %3175 = vmatprep.subr.mxu0 0.0
    %3176 = vmatpush2.msra.mxu0 %v2770
    %3177 = vmatprep.subr.mxu0 0.0
    %3178 = vmatpush2.msra.mxu0 %v2769
    %3179 = vmatprep.subr.mxu0 0.0
    %3180 = vmatpush2.msra.mxu0 %v2768
    %3181 = vmatprep.subr.mxu0 0.0
    %3182 = vmatpush2.msra.mxu0 %v2767
    %3183 = vmatprep.subr.mxu0 0.0
    %3184 = vmatpush2.msra.mxu0 %v2766
    %3185 = vmatprep.subr.mxu0 0.0
    %3186 = vmatpush2.msra.mxu0 %v2765
    %3187 = vmatprep.subr.mxu0 0.0
    %3188 = vmatpush2.msra.mxu0 %v2764
    %3189 = vmatprep.subr.mxu0 0.0
    %3190 = vmatpush2.msra.mxu0 %v2763
    %3191 = vmatprep.subr.mxu0 0.0
    %3192 = vmatpush2.msra.mxu0 %v2762
    %3193 = vmatprep.subr.mxu0 0.0
    %3194 = vmatpush2.msra.mxu0 %v2761
    %3195 = vmatprep.subr.mxu0 0.0
    %3196 = vmatpush2.msra.mxu0 %v2760
    %3197 = vmatprep.subr.mxu0 0.0
    %3198 = vmatpush2.msra.mxu0 %v2759
    %3199 = vmatprep.mubr.f32.mxu0 %v2622
    %3200 = vmatmul.mubr.f32.gmra.mxu0 %v2621
    %v3201 = vpop.f32.mrf.mxu0
    %v3202 = vadd.f32 %v3127, %v3201
    %v3203 = vpop.f32.mrf.mxu0
    %3204 = vmatprep.mubr.f32.mxu0 %v2638
    %3205 = vmatmul.mubr.f32.gmra.mxu0 %v2637
    %v3206 = vpop.f32.mrf.mxu0
    %v3207 = vadd.f32 %v3132, %v3206
    %v3208 = vpop.f32.mrf.mxu0
    %3209 = vdwg.mxu0
    %3210 = vmatprep.subr.mxu0 0.0
    %3211 = vmatpush1.msra.mxu0 %v2790
    %3212 = vmatprep.subr.mxu0 0.0
    %3213 = vmatpush1.msra.mxu0 %v2789
    %3214 = vmatprep.subr.mxu0 0.0
    %3215 = vmatpush1.msra.mxu0 %v2788
    %3216 = vmatprep.subr.mxu0 0.0
    %3217 = vmatpush1.msra.mxu0 %v2787
    %3218 = vmatprep.subr.mxu0 0.0
    %3219 = vmatpush1.msra.mxu0 %v2786
    %3220 = vmatprep.subr.mxu0 0.0
    %3221 = vmatpush1.msra.mxu0 %v2785
    %3222 = vmatprep.subr.mxu0 0.0
    %3223 = vmatpush1.msra.mxu0 %v2784
    %3224 = vmatprep.subr.mxu0 0.0
    %3225 = vmatpush1.msra.mxu0 %v2783
    %3226 = vmatprep.subr.mxu0 0.0
    %3227 = vmatpush1.msra.mxu0 %v2782
    %3228 = vmatprep.subr.mxu0 0.0
    %3229 = vmatpush1.msra.mxu0 %v2781
    %3230 = vmatprep.subr.mxu0 0.0
    %3231 = vmatpush1.msra.mxu0 %v2780
    %3232 = vmatprep.subr.mxu0 0.0
    %3233 = vmatpush1.msra.mxu0 %v2779
    %3234 = vmatprep.subr.mxu0 0.0
    %3235 = vmatpush1.msra.mxu0 %v2778
    %3236 = vmatprep.subr.mxu0 0.0
    %3237 = vmatpush1.msra.mxu0 %v2777
    %3238 = vmatprep.subr.mxu0 0.0
    %3239 = vmatpush1.msra.mxu0 %v2776
    %3240 = vmatprep.subr.mxu0 0.0
    %3241 = vmatpush1.msra.mxu0 %v2775
    %3242 = vmatprep.subr.mxu0 0.0
    %3243 = vmatpush2.msra.mxu0 %v2806
    %3244 = vmatprep.subr.mxu0 0.0
    %3245 = vmatpush2.msra.mxu0 %v2805
    %3246 = vmatprep.subr.mxu0 0.0
    %3247 = vmatpush2.msra.mxu0 %v2804
    %3248 = vmatprep.subr.mxu0 0.0
    %3249 = vmatpush2.msra.mxu0 %v2803
    %3250 = vmatprep.subr.mxu0 0.0
    %3251 = vmatpush2.msra.mxu0 %v2802
    %3252 = vmatprep.subr.mxu0 0.0
    %3253 = vmatpush2.msra.mxu0 %v2801
    %3254 = vmatprep.subr.mxu0 0.0
    %3255 = vmatpush2.msra.mxu0 %v2800
    %3256 = vmatprep.subr.mxu0 0.0
    %3257 = vmatpush2.msra.mxu0 %v2799
    %3258 = vmatprep.subr.mxu0 0.0
    %3259 = vmatpush2.msra.mxu0 %v2798
    %3260 = vmatprep.subr.mxu0 0.0
    %3261 = vmatpush2.msra.mxu0 %v2797
    %3262 = vmatprep.subr.mxu0 0.0
    %3263 = vmatpush2.msra.mxu0 %v2796
    %3264 = vmatprep.subr.mxu0 0.0
    %3265 = vmatpush2.msra.mxu0 %v2795
    %3266 = vmatprep.subr.mxu0 0.0
    %3267 = vmatpush2.msra.mxu0 %v2794
    %3268 = vmatprep.subr.mxu0 0.0
    %3269 = vmatpush2.msra.mxu0 %v2793
    %3270 = vmatprep.subr.mxu0 0.0
    %3271 = vmatpush2.msra.mxu0 %v2792
    %3272 = vmatprep.subr.mxu0 0.0
    %3273 = vmatpush2.msra.mxu0 %v2791
    %3274 = vmatprep.mubr.f32.mxu0 %v2624
    %3275 = vmatmul.mubr.f32.gmra.mxu0 %v2623
    %v3276 = vpop.f32.mrf.mxu0
    %v3277 = vadd.f32 %v3202, %v3276
    %v3278 = vpop.f32.mrf.mxu0
    %3279 = vmatprep.mubr.f32.mxu0 %v2640
    %3280 = vmatmul.mubr.f32.gmra.mxu0 %v2639
    %v3281 = vpop.f32.mrf.mxu0
    %v3282 = vadd.f32 %v3207, %v3281
    %v3283 = vpop.f32.mrf.mxu0
    %3284 = vdwg.mxu0
    %3285 = vmatprep.subr.mxu0 0.0
    %3286 = vmatpush1.msra.mxu0 %v2822
    %3287 = vmatprep.subr.mxu0 0.0
    %3288 = vmatpush1.msra.mxu0 %v2821
    %3289 = vmatprep.subr.mxu0 0.0
    %3290 = vmatpush1.msra.mxu0 %v2820
    %3291 = vmatprep.subr.mxu0 0.0
    %3292 = vmatpush1.msra.mxu0 %v2819
    %3293 = vmatprep.subr.mxu0 0.0
    %3294 = vmatpush1.msra.mxu0 %v2818
    %3295 = vmatprep.subr.mxu0 0.0
    %3296 = vmatpush1.msra.mxu0 %v2817
    %3297 = vmatprep.subr.mxu0 0.0
    %3298 = vmatpush1.msra.mxu0 %v2816
    %3299 = vmatprep.subr.mxu0 0.0
    %3300 = vmatpush1.msra.mxu0 %v2815
    %3301 = vmatprep.subr.mxu0 0.0
    %3302 = vmatpush1.msra.mxu0 %v2814
    %3303 = vmatprep.subr.mxu0 0.0
    %3304 = vmatpush1.msra.mxu0 %v2813
    %3305 = vmatprep.subr.mxu0 0.0
    %3306 = vmatpush1.msra.mxu0 %v2812
    %3307 = vmatprep.subr.mxu0 0.0
    %3308 = vmatpush1.msra.mxu0 %v2811
    %3309 = vmatprep.subr.mxu0 0.0
    %3310 = vmatpush1.msra.mxu0 %v2810
    %3311 = vmatprep.subr.mxu0 0.0
    %3312 = vmatpush1.msra.mxu0 %v2809
    %3313 = vmatprep.subr.mxu0 0.0
    %3314 = vmatpush1.msra.mxu0 %v2808
    %3315 = vmatprep.subr.mxu0 0.0
    %3316 = vmatpush1.msra.mxu0 %v2807
    %3317 = vmatprep.subr.mxu0 0.0
    %3318 = vmatpush2.msra.mxu0 %v2838
    %3319 = vmatprep.subr.mxu0 0.0
    %3320 = vmatpush2.msra.mxu0 %v2837
    %3321 = vmatprep.subr.mxu0 0.0
    %3322 = vmatpush2.msra.mxu0 %v2836
    %3323 = vmatprep.subr.mxu0 0.0
    %3324 = vmatpush2.msra.mxu0 %v2835
    %3325 = vmatprep.subr.mxu0 0.0
    %3326 = vmatpush2.msra.mxu0 %v2834
    %3327 = vmatprep.subr.mxu0 0.0
    %3328 = vmatpush2.msra.mxu0 %v2833
    %3329 = vmatprep.subr.mxu0 0.0
    %3330 = vmatpush2.msra.mxu0 %v2832
    %3331 = vmatprep.subr.mxu0 0.0
    %3332 = vmatpush2.msra.mxu0 %v2831
    %3333 = vmatprep.subr.mxu0 0.0
    %3334 = vmatpush2.msra.mxu0 %v2830
    %3335 = vmatprep.subr.mxu0 0.0
    %3336 = vmatpush2.msra.mxu0 %v2829
    %3337 = vmatprep.subr.mxu0 0.0
    %3338 = vmatpush2.msra.mxu0 %v2828
    %3339 = vmatprep.subr.mxu0 0.0
    %3340 = vmatpush2.msra.mxu0 %v2827
    %3341 = vmatprep.subr.mxu0 0.0
    %3342 = vmatpush2.msra.mxu0 %v2826
    %3343 = vmatprep.subr.mxu0 0.0
    %3344 = vmatpush2.msra.mxu0 %v2825
    %3345 = vmatprep.subr.mxu0 0.0
    %3346 = vmatpush2.msra.mxu0 %v2824
    %3347 = vmatprep.subr.mxu0 0.0
    %3348 = vmatpush2.msra.mxu0 %v2823
    %3349 = vmatprep.mubr.f32.mxu0 %v2626
    %3350 = vmatmul.mubr.f32.gmra.mxu0 %v2625
    %v3351 = vpop.f32.mrf.mxu0
    %v3352 = vadd.f32 %v3277, %v3351
    %v3353 = vpop.f32.mrf.mxu0
    %3354 = vmatprep.mubr.f32.mxu0 %v2642
    %3355 = vmatmul.mubr.f32.gmra.mxu0 %v2641
    %v3356 = vpop.f32.mrf.mxu0
    %v3357 = vadd.f32 %v3282, %v3356
    %v3358 = vpop.f32.mrf.mxu0
    %3359 = vdwg.mxu0
    %3360 = vmatprep.subr.mxu0 0.0
    %3361 = vmatpush1.msra.mxu0 %v2854
    %3362 = vmatprep.subr.mxu0 0.0
    %3363 = vmatpush1.msra.mxu0 %v2853
    %3364 = vmatprep.subr.mxu0 0.0
    %3365 = vmatpush1.msra.mxu0 %v2852
    %3366 = vmatprep.subr.mxu0 0.0
    %3367 = vmatpush1.msra.mxu0 %v2851
    %3368 = vmatprep.subr.mxu0 0.0
    %3369 = vmatpush1.msra.mxu0 %v2850
    %3370 = vmatprep.subr.mxu0 0.0
    %3371 = vmatpush1.msra.mxu0 %v2849
    %3372 = vmatprep.subr.mxu0 0.0
    %3373 = vmatpush1.msra.mxu0 %v2848
    %3374 = vmatprep.subr.mxu0 0.0
    %3375 = vmatpush1.msra.mxu0 %v2847
    %3376 = vmatprep.subr.mxu0 0.0
    %3377 = vmatpush1.msra.mxu0 %v2846
    %3378 = vmatprep.subr.mxu0 0.0
    %3379 = vmatpush1.msra.mxu0 %v2845
    %3380 = vmatprep.subr.mxu0 0.0
    %3381 = vmatpush1.msra.mxu0 %v2844
    %3382 = vmatprep.subr.mxu0 0.0
    %3383 = vmatpush1.msra.mxu0 %v2843
    %3384 = vmatprep.subr.mxu0 0.0
    %3385 = vmatpush1.msra.mxu0 %v2842
    %3386 = vmatprep.subr.mxu0 0.0
    %3387 = vmatpush1.msra.mxu0 %v2841
    %3388 = vmatprep.subr.mxu0 0.0
    %3389 = vmatpush1.msra.mxu0 %v2840
    %3390 = vmatprep.subr.mxu0 0.0
    %3391 = vmatpush1.msra.mxu0 %v2839
    %3392 = vmatprep.subr.mxu0 0.0
    %3393 = vmatpush2.msra.mxu0 %v2870
    %3394 = vmatprep.subr.mxu0 0.0
    %3395 = vmatpush2.msra.mxu0 %v2869
    %3396 = vmatprep.subr.mxu0 0.0
    %3397 = vmatpush2.msra.mxu0 %v2868
    %3398 = vmatprep.subr.mxu0 0.0
    %3399 = vmatpush2.msra.mxu0 %v2867
    %3400 = vmatprep.subr.mxu0 0.0
    %3401 = vmatpush2.msra.mxu0 %v2866
    %3402 = vmatprep.subr.mxu0 0.0
    %3403 = vmatpush2.msra.mxu0 %v2865
    %3404 = vmatprep.subr.mxu0 0.0
    %3405 = vmatpush2.msra.mxu0 %v2864
    %3406 = vmatprep.subr.mxu0 0.0
    %3407 = vmatpush2.msra.mxu0 %v2863
    %3408 = vmatprep.subr.mxu0 0.0
    %3409 = vmatpush2.msra.mxu0 %v2862
    %3410 = vmatprep.subr.mxu0 0.0
    %3411 = vmatpush2.msra.mxu0 %v2861
    %3412 = vmatprep.subr.mxu0 0.0
    %3413 = vmatpush2.msra.mxu0 %v2860
    %3414 = vmatprep.subr.mxu0 0.0
    %3415 = vmatpush2.msra.mxu0 %v2859
    %3416 = vmatprep.subr.mxu0 0.0
    %3417 = vmatpush2.msra.mxu0 %v2858
    %3418 = vmatprep.subr.mxu0 0.0
    %3419 = vmatpush2.msra.mxu0 %v2857
    %3420 = vmatprep.subr.mxu0 0.0
    %3421 = vmatpush2.msra.mxu0 %v2856
    %3422 = vmatprep.subr.mxu0 0.0
    %3423 = vmatpush2.msra.mxu0 %v2855
    %3424 = vmatprep.mubr.f32.mxu0 %v2628
    %3425 = vmatmul.mubr.f32.gmra.mxu0 %v2627
    %v3426 = vpop.f32.mrf.mxu0
    %v3427 = vadd.f32 %v3352, %v3426
    %v3428 = vpop.f32.mrf.mxu0
    %3429 = vmatprep.mubr.f32.mxu0 %v2644
    %3430 = vmatmul.mubr.f32.gmra.mxu0 %v2643
    %v3431 = vpop.f32.mrf.mxu0
    %v3432 = vadd.f32 %v3357, %v3431
    %v3433 = vpop.f32.mrf.mxu0
    %3434 = vdwg.mxu0
    %3435 = vmatprep.subr.mxu0 0.0
    %3436 = vmatpush1.msra.mxu0 %v2886
    %3437 = vmatprep.subr.mxu0 0.0
    %3438 = vmatpush1.msra.mxu0 %v2885
    %3439 = vmatprep.subr.mxu0 0.0
    %3440 = vmatpush1.msra.mxu0 %v2884
    %3441 = vmatprep.subr.mxu0 0.0
    %3442 = vmatpush1.msra.mxu0 %v2883
    %3443 = vmatprep.subr.mxu0 0.0
    %3444 = vmatpush1.msra.mxu0 %v2882
    %3445 = vmatprep.subr.mxu0 0.0
    %3446 = vmatpush1.msra.mxu0 %v2881
    %3447 = vmatprep.subr.mxu0 0.0
    %3448 = vmatpush1.msra.mxu0 %v2880
    %3449 = vmatprep.subr.mxu0 0.0
    %3450 = vmatpush1.msra.mxu0 %v2879
    %3451 = vmatprep.subr.mxu0 0.0
    %3452 = vmatpush1.msra.mxu0 %v2878
    %3453 = vmatprep.subr.mxu0 0.0
    %3454 = vmatpush1.msra.mxu0 %v2877
    %3455 = vmatprep.subr.mxu0 0.0
    %3456 = vmatpush1.msra.mxu0 %v2876
    %3457 = vmatprep.subr.mxu0 0.0
    %3458 = vmatpush1.msra.mxu0 %v2875
    %3459 = vmatprep.subr.mxu0 0.0
    %3460 = vmatpush1.msra.mxu0 %v2874
    %3461 = vmatprep.subr.mxu0 0.0
    %3462 = vmatpush1.msra.mxu0 %v2873
    %3463 = vmatprep.subr.mxu0 0.0
    %3464 = vmatpush1.msra.mxu0 %v2872
    %3465 = vmatprep.subr.mxu0 0.0
    %3466 = vmatpush1.msra.mxu0 %v2871
    %3467 = vmatprep.subr.mxu0 0.0
    %3468 = vmatpush2.msra.mxu0 %v2902
    %3469 = vmatprep.subr.mxu0 0.0
    %3470 = vmatpush2.msra.mxu0 %v2901
    %3471 = vmatprep.subr.mxu0 0.0
    %3472 = vmatpush2.msra.mxu0 %v2900
    %3473 = vmatprep.subr.mxu0 0.0
    %3474 = vmatpush2.msra.mxu0 %v2899
    %3475 = vmatprep.subr.mxu0 0.0
    %3476 = vmatpush2.msra.mxu0 %v2898
    %3477 = vmatprep.subr.mxu0 0.0
    %3478 = vmatpush2.msra.mxu0 %v2897
    %3479 = vmatprep.subr.mxu0 0.0
    %3480 = vmatpush2.msra.mxu0 %v2896
    %3481 = vmatprep.subr.mxu0 0.0
    %3482 = vmatpush2.msra.mxu0 %v2895
    %3483 = vmatprep.subr.mxu0 0.0
    %3484 = vmatpush2.msra.mxu0 %v2894
    %3485 = vmatprep.subr.mxu0 0.0
    %3486 = vmatpush2.msra.mxu0 %v2893
    %3487 = vmatprep.subr.mxu0 0.0
    %3488 = vmatpush2.msra.mxu0 %v2892
    %3489 = vmatprep.subr.mxu0 0.0
    %3490 = vmatpush2.msra.mxu0 %v2891
    %3491 = vmatprep.subr.mxu0 0.0
    %3492 = vmatpush2.msra.mxu0 %v2890
    %3493 = vmatprep.subr.mxu0 0.0
    %3494 = vmatpush2.msra.mxu0 %v2889
    %3495 = vmatprep.subr.mxu0 0.0
    %3496 = vmatpush2.msra.mxu0 %v2888
    %3497 = vmatprep.subr.mxu0 0.0
    %3498 = vmatpush2.msra.mxu0 %v2887
    %3499 = vmatprep.mubr.f32.mxu0 %v2630
    %3500 = vmatmul.mubr.f32.gmra.mxu0 %v2629
    %v3501 = vpop.f32.mrf.mxu0
    %v3502 = vadd.f32 %v3427, %v3501
    %v3503 = vpop.f32.mrf.mxu0
    %3504 = vmatprep.mubr.f32.mxu0 %v2646
    %3505 = vmatmul.mubr.f32.gmra.mxu0 %v2645
    %v3506 = vpop.f32.mrf.mxu0
    %v3507 = vadd.f32 %v3432, %v3506
    %v3508 = vpop.f32.mrf.mxu0
    %3509 = vdwg.mxu0
    %v3510 = vadd.f32 %v1843, %v3502
    %v3511 = vadd.f32 %v1844, %v3507
    %v3512 = vld [vmem:[%s17] sm:$0x1]
    %v3513 = vld [vmem:[%s18] sm:$0x1]
    %v3514 = vsel %vm91, %v3510, 0.0
    %3515 = vadd.xlane.f32.xlu0 %v3514
    %v3516 = vpop.xlane.xlu0 %3515
    %v3517 = vsel %vm91, %v3511, 0.0
    %3518 = vadd.xlane.f32.xlu0 %v3517
    %v3519 = vpop.xlane.xlu0 %3518
    %v3520 = vmul.f32 %v3516, %v1808
    %v3521 = vmul.f32 %v3519, %v1808
    %v3522 = vsub.f32 %v3510, %v3520
    %v3523 = vsub.f32 %v3511, %v3521
    %v3524 = vmul.f32 %v3522, %v3522
    %v3525 = vmul.f32 %v3523, %v3523
    %v3526 = vsel %vm91, %v3524, 0.0
    %3527 = vadd.xlane.f32.xlu0 %v3526
    %v3528 = vpop.xlane.xlu0 %3527
    %v3529 = vsel %vm91, %v3525, 0.0
    %3530 = vadd.xlane.f32.xlu0 %v3529
    %v3531 = vpop.xlane.xlu0 %3530
    %v3532 = vmul.f32 %v3528, %v1808
    %v3533 = vmul.f32 %v3531, %v1808
    %v3534 = vadd.f32 %v3532, 1e-05
    %v3535 = vadd.f32 %v3533, 1e-05
    %v3536 = vrsqrt.pop %v3534
    %v3537 = vrsqrt.pop %v3535
    %v3538 = vmul.f32 %v3522, %v3536
    %v3539 = vmul.f32 %v3523, %v3537
    %v3541 = vlaneseq
    %v3542 = vshrl.u32 %v3541, 7
    %v3543 = vsub.s32 0, %v3542
    %v3544 = vrot.slane %v3512, %v3543
    %v3546 = vmul.f32 %v3538, %v3544
    %v3547 = vmul.f32 %v3539, %v3544
    %v3549 = vlaneseq
    %v3550 = vshrl.u32 %v3549, 7
    %v3551 = vsub.s32 0, %v3550
    %v3552 = vrot.slane %v3513, %v3551
    %v3554 = vadd.f32 %v3546, %v3552
    %v3555 = vadd.f32 %v3547, %v3552
    %v3556 = vsel %vm91, %v3554, 0.0
    %v3557 = vrot.slane %v3556, 4
    %v3558 = vadd.f32 %v3556, %v3557
    %v3559 = vrot.slane %v3558, 2
    %v3560 = vadd.f32 %v3558, %v3559
    %v3561 = vrot.slane %v3560, 1
    %v3562 = vadd.f32 %v3560, %v3561
    %v3563 = vsel %vm91, %v3555, 0.0
    %v3564 = vrot.slane %v3563, 4
    %v3565 = vadd.f32 %v3563, %v3564
    %v3566 = vrot.slane %v3565, 2
    %v3567 = vadd.f32 %v3565, %v3566
    %v3568 = vrot.slane %v3567, 1
    %v3569 = vadd.f32 %v3567, %v3568
    %v3570 = vrcp.pop 8.0
    %v3571 = vmul.f32 %v3562, %v3570
    %v3572 = vmul.f32 %v3569, %v3570
    %v3573 = vld [vmem:[%s19] sm:$0xff]
    %v3574 = vld [vmem:[%s19 + $0x8] sm:$0xff]
    %v3575 = vld [vmem:[%s19 + $0x10] sm:$0xff]
    %v3576 = vld [vmem:[%s19 + $0x18] sm:$0xff]
    %v3577 = vld [vmem:[%s20] sm:$0x1]
    %v3579 = vlaneseq
    %v3580 = vshrl.u32 %v3579, 7
    %v3581 = vsub.s32 0, %v3580
    %v3582 = vrot.slane %v3577, %v3581
    %vm3586 = vcmask 1041409
    %v3587 = vsel %vm3586, %v3572, %v3571
    %v3588 = vsel %vm91, %v3587, 0
    %3590 = vmatprep.subr.mxu0 0.0
    %3591 = vmatpush1.msra.mxu0 0.0
    %3592 = vmatprep.subr.mxu0 0.0
    %3593 = vmatpush1.msra.mxu0 0.0
    %3594 = vmatprep.subr.mxu0 0.0
    %3595 = vmatpush1.msra.mxu0 0.0
    %3596 = vmatprep.subr.mxu0 0.0
    %3597 = vmatpush1.msra.mxu0 0.0
    %3598 = vmatprep.subr.mxu0 0.0
    %3599 = vmatpush1.msra.mxu0 0.0
    %3600 = vmatprep.subr.mxu0 0.0
    %3601 = vmatpush1.msra.mxu0 0.0
    %3602 = vmatprep.subr.mxu0 0.0
    %3603 = vmatpush1.msra.mxu0 0.0
    %3604 = vmatprep.subr.mxu0 0.0
    %3605 = vmatpush1.msra.mxu0 0.0
    %3606 = vmatprep.subr.mxu0 0.0
    %3607 = vmatpush1.msra.mxu0 0.0
    %3608 = vmatprep.subr.mxu0 0.0
    %3609 = vmatpush1.msra.mxu0 0.0
    %3610 = vmatprep.subr.mxu0 0.0
    %3611 = vmatpush1.msra.mxu0 0.0
    %3612 = vmatprep.subr.mxu0 0.0
    %3613 = vmatpush1.msra.mxu0 0.0
    %3614 = vmatprep.subr.mxu0 0.0
    %3615 = vmatpush1.msra.mxu0 %v3576
    %3616 = vmatprep.subr.mxu0 0.0
    %3617 = vmatpush1.msra.mxu0 %v3575
    %3618 = vmatprep.subr.mxu0 0.0
    %3619 = vmatpush1.msra.mxu0 %v3574
    %3620 = vmatprep.subr.mxu0 0.0
    %3621 = vmatpush1.msra.mxu0 %v3573
    %3622 = vmatprep.subr.mxu0 0.0
    %3623 = vmatpush2.msra.mxu0 0.0
    %3624 = vmatprep.subr.mxu0 0.0
    %3625 = vmatpush2.msra.mxu0 0.0
    %3626 = vmatprep.subr.mxu0 0.0
    %3627 = vmatpush2.msra.mxu0 0.0
    %3628 = vmatprep.subr.mxu0 0.0
    %3629 = vmatpush2.msra.mxu0 0.0
    %3630 = vmatprep.subr.mxu0 0.0
    %3631 = vmatpush2.msra.mxu0 0.0
    %3632 = vmatprep.subr.mxu0 0.0
    %3633 = vmatpush2.msra.mxu0 0.0
    %3634 = vmatprep.subr.mxu0 0.0
    %3635 = vmatpush2.msra.mxu0 0.0
    %3636 = vmatprep.subr.mxu0 0.0
    %3637 = vmatpush2.msra.mxu0 0.0
    %3638 = vmatprep.subr.mxu0 0.0
    %3639 = vmatpush2.msra.mxu0 0.0
    %3640 = vmatprep.subr.mxu0 0.0
    %3641 = vmatpush2.msra.mxu0 0.0
    %3642 = vmatprep.subr.mxu0 0.0
    %3643 = vmatpush2.msra.mxu0 0.0
    %3644 = vmatprep.subr.mxu0 0.0
    %3645 = vmatpush2.msra.mxu0 0.0
    %3646 = vmatprep.subr.mxu0 0.0
    %3647 = vmatpush2.msra.mxu0 0.0
    %3648 = vmatprep.subr.mxu0 0.0
    %3649 = vmatpush2.msra.mxu0 0.0
    %3650 = vmatprep.subr.mxu0 0.0
    %3651 = vmatpush2.msra.mxu0 0.0
    %3652 = vmatprep.subr.mxu0 0.0
    %3653 = vmatpush2.msra.mxu0 0.0
    %3654 = vmatprep.mubr.f32.mxu0 0.0
    %3655 = vmatmul.mubr.f32.gmra.mxu0 %v3588
    %v3656 = vpop.f32.mrf.mxu0
    %v3657 = vadd.f32 %v3582, %v3656
    %v3658 = vpop.f32.mrf.mxu0
    %3659 = vdwg.mxu0
    %v3660 = vmax.f32 %v3657, 0.0
    %vm3661 = vcmask 254976
    %3662 = vst.msk [vmem:[#allocation6] sm:$0x3] %vm3661, %v3660
    %v3663 = vld [vmem:[%s21] sm:$0xff]
    %v3664 = vld [vmem:[%s21 + $0x8] sm:$0xff]
    %v3665 = vld [vmem:[%s21 + $0x10] sm:$0xff]
    %v3666 = vld [vmem:[%s21 + $0x18] sm:$0xff]
    %v3667 = vld [vmem:[%s22] sm:$0x1]
    %v3669 = vlaneseq
    %v3670 = vshrl.u32 %v3669, 7
    %v3671 = vsub.s32 0, %v3670
    %v3672 = vrot.slane %v3667, %v3671
    %v3675 = vsel %vm91, %v3660, 0
    %3677 = vmatprep.subr.mxu0 0.0
    %3678 = vmatpush1.msra.mxu0 0.0
    %3679 = vmatprep.subr.mxu0 0.0
    %3680 = vmatpush1.msra.mxu0 0.0
    %3681 = vmatprep.subr.mxu0 0.0
    %3682 = vmatpush1.msra.mxu0 0.0
    %3683 = vmatprep.subr.mxu0 0.0
    %3684 = vmatpush1.msra.mxu0 0.0
    %3685 = vmatprep.subr.mxu0 0.0
    %3686 = vmatpush1.msra.mxu0 0.0
    %3687 = vmatprep.subr.mxu0 0.0
    %3688 = vmatpush1.msra.mxu0 0.0
    %3689 = vmatprep.subr.mxu0 0.0
    %3690 = vmatpush1.msra.mxu0 0.0
    %3691 = vmatprep.subr.mxu0 0.0
    %3692 = vmatpush1.msra.mxu0 0.0
    %3693 = vmatprep.subr.mxu0 0.0
    %3694 = vmatpush1.msra.mxu0 0.0
    %3695 = vmatprep.subr.mxu0 0.0
    %3696 = vmatpush1.msra.mxu0 0.0
    %3697 = vmatprep.subr.mxu0 0.0
    %3698 = vmatpush1.msra.mxu0 0.0
    %3699 = vmatprep.subr.mxu0 0.0
    %3700 = vmatpush1.msra.mxu0 0.0
    %3701 = vmatprep.subr.mxu0 0.0
    %3702 = vmatpush1.msra.mxu0 %v3666
    %3703 = vmatprep.subr.mxu0 0.0
    %3704 = vmatpush1.msra.mxu0 %v3665
    %3705 = vmatprep.subr.mxu0 0.0
    %3706 = vmatpush1.msra.mxu0 %v3664
    %3707 = vmatprep.subr.mxu0 0.0
    %3708 = vmatpush1.msra.mxu0 %v3663
    %3709 = vmatprep.subr.mxu0 0.0
    %3710 = vmatpush2.msra.mxu0 0.0
    %3711 = vmatprep.subr.mxu0 0.0
    %3712 = vmatpush2.msra.mxu0 0.0
    %3713 = vmatprep.subr.mxu0 0.0
    %3714 = vmatpush2.msra.mxu0 0.0
    %3715 = vmatprep.subr.mxu0 0.0
    %3716 = vmatpush2.msra.mxu0 0.0
    %3717 = vmatprep.subr.mxu0 0.0
    %3718 = vmatpush2.msra.mxu0 0.0
    %3719 = vmatprep.subr.mxu0 0.0
    %3720 = vmatpush2.msra.mxu0 0.0
    %3721 = vmatprep.subr.mxu0 0.0
    %3722 = vmatpush2.msra.mxu0 0.0
    %3723 = vmatprep.subr.mxu0 0.0
    %3724 = vmatpush2.msra.mxu0 0.0
    %3725 = vmatprep.subr.mxu0 0.0
    %3726 = vmatpush2.msra.mxu0 0.0
    %3727 = vmatprep.subr.mxu0 0.0
    %3728 = vmatpush2.msra.mxu0 0.0
    %3729 = vmatprep.subr.mxu0 0.0
    %3730 = vmatpush2.msra.mxu0 0.0
    %3731 = vmatprep.subr.mxu0 0.0
    %3732 = vmatpush2.msra.mxu0 0.0
    %3733 = vmatprep.subr.mxu0 0.0
    %3734 = vmatpush2.msra.mxu0 0.0
    %3735 = vmatprep.subr.mxu0 0.0
    %3736 = vmatpush2.msra.mxu0 0.0
    %3737 = vmatprep.subr.mxu0 0.0
    %3738 = vmatpush2.msra.mxu0 0.0
    %3739 = vmatprep.subr.mxu0 0.0
    %3740 = vmatpush2.msra.mxu0 0.0
    %3741 = vmatprep.mubr.f32.mxu0 0.0
    %3742 = vmatmul.mubr.f32.gmra.mxu0 %v3675
    %v3743 = vpop.f32.mrf.mxu0
    %v3744 = vadd.f32 %v3672, %v3743
    %v3745 = vpop.f32.mrf.mxu0
    %3746 = vdwg.mxu0
    %vm3747 = vcmask 17408
    %3748 = vst.msk [vmem:[#allocation4] sm:$0x3] %vm3747, %v3744
    // Predicated region
    $region94: #{tpu_custom_call.1} parent=1 // pred_check
      _
    $region95: #{tpu_custom_call.1} parent=1 // pred_check_branch
      %3750 = sbr.rel (0) target = $region97
    $region96: #{tpu_custom_call.1} parent=1 // pred_region
      %s3752 = ssub.s32 64, 64
      %3753 = vsyncadd [#allocation3], %s3752
      %s3755 = sshll.u32 [#allocation2], 4
      %s3756 = int_to_ptr.vmem [resolvable:$true] %s3755
      %3758 = dma.vmem_to_hbm [thread:$0]  %s3756, 64, %s23, [#allocation3]
    $region97: #{tpu_custom_call.1} parent=1 // pred_fallthru
      _
    // Predicated region
    $region98: #{tpu_custom_call.1} parent=1 // pred_check
      _
    $region99: #{tpu_custom_call.1} parent=1 // pred_check_branch
      %3760 = sbr.rel (0) target = $region101
    $region100: #{tpu_custom_call.1} parent=1 // pred_region
      %s3762 = ssub.s32 32, 32
      %3763 = vsyncadd [#allocation5], %s3762
      %s3765 = sshll.u32 [#allocation4], 4
      %s3766 = int_to_ptr.vmem [resolvable:$true] %s3765
      %3768 = dma.vmem_to_hbm [thread:$0]  %s3766, 32, %s24, [#allocation5]
    $region101: #{tpu_custom_call.1} parent=1 // pred_fallthru
      _
    // Predicated region
    $region102: #{tpu_custom_call.1} parent=1 // pred_check
      _
    $region103: #{tpu_custom_call.1} parent=1 // pred_check_branch
      %3770 = sbr.rel (0) target = $region105
    $region104: #{tpu_custom_call.1} parent=1 // pred_region
      %s3772 = ssub.s32 32, 32
      %3773 = vsyncadd [#allocation5], %s3772
      %s3775 = sshll.u32 [#allocation6], 4
      %s3776 = int_to_ptr.vmem [resolvable:$true] %s3775
      %3778 = dma.vmem_to_hbm [thread:$0]  %s3776, 32, %s25, [#allocation5]
    $region105: #{tpu_custom_call.1} parent=1 // pred_fallthru
      _
    // Predicated region
    $region106: #{tpu_custom_call.1} parent=1 // pred_check
      _
    $region107: #{tpu_custom_call.1} parent=1 // pred_check_branch
      %3780 = sbr.rel (0) target = $region109
    $region108: #{tpu_custom_call.1} parent=1 // pred_region
      %3781 = dma.done [#allocation3], 64
    $region109: #{tpu_custom_call.1} parent=1 // pred_fallthru
      _
    // Predicated region
    $region110: #{tpu_custom_call.1} parent=1 // pred_check
      _
    $region111: #{tpu_custom_call.1} parent=1 // pred_check_branch
      %3783 = sbr.rel (0) target = $region113
    $region112: #{tpu_custom_call.1} parent=1 // pred_region
      %3784 = dma.done [#allocation5], 32
    $region113: #{tpu_custom_call.1} parent=1 // pred_fallthru
      _
    // Predicated region
    $region114: #{tpu_custom_call.1} parent=1 // pred_check
      _
    $region115: #{tpu_custom_call.1} parent=1 // pred_check_branch
      %3786 = sbr.rel (0) target = $region117
    $region116: #{tpu_custom_call.1} parent=1 // pred_region
      %3787 = dma.done [#allocation5], 32
    $region117: #{tpu_custom_call.1} parent=1 // pred_fallthru
      _
    %3788 = vsyncpa [#allocation3], 1
    %3789 = vsyncpa [#allocation5], 1

</llo_original>
